<compile_context>
chip_gen: v7x
topology: tpu7x:2x2x1
jax: 0.10.0
libtpu: 0.0.40
codegen_flags: <defaults>
</compile_context>

<pallas_src>
import jax
import jax.numpy as jnp
from jax import lax
from jax.experimental import pallas as pl
from jax.experimental.pallas import tpu as pltpu


# --------------------------------------------------------------------------
# Fused encoder + decoder Pallas kernel (single grid point, everything VMEM)
# --------------------------------------------------------------------------
def seq2seq_fused_kernel(
    x_ids_ref, y_ids_ref, lab_ids_ref,
    emb_enc_ref, emb_dec_ref, emb_lab_ref,
    enc_wih_ref, enc_whh_ref, enc_bih_ref, enc_bhh_ref,
    dec_wih_tok_ref, dec_wih_lab_ref, dec_whh_ref, dec_bih_ref, dec_bhh_ref,
    wout_ref, bout_ref,
    logits_ref, hout_ref):
    f32 = jnp.float32
    Te, B = x_ids_ref.shape
    Td = y_ids_ref.shape[0]
    V = emb_enc_ref.shape[0]
    Lv = emb_lab_ref.shape[0]
    H = enc_whh_ref.shape[0]
    O = wout_ref.shape[1]

    # ---- in-kernel embedding gathers as one-hot MXU matmuls (no dynamic
    #      indexing; (t, b) row order built directly, so no [B,T,D] transpose
    #      or HBM round-trip ever exists) ----
    def onehot_flat(ids2d, n):                         # [T, B] i32 -> [T*B, n] f32
        t_, b_ = ids2d.shape
        iota = lax.broadcasted_iota(jnp.int32, (t_, b_, n), 2)
        return (ids2d[:, :, None] == iota).astype(f32).reshape(t_ * b_, n)

    oh_x = onehot_flat(x_ids_ref[...], V)              # [Te*B, V]
    oh_y = onehot_flat(y_ids_ref[...], V)              # [Td*B, V]
    oh_l = (lab_ids_ref[...] ==
            lax.broadcasted_iota(jnp.int32, (B, Lv), 1)).astype(f32)   # [B, Lv]

    # ---- hoisted input projections: gather(x) @ W_ih, off the serial path ----
    gi_enc = jnp.dot(jnp.dot(oh_x, emb_enc_ref[...], preferred_element_type=f32),
                     enc_wih_ref[...], preferred_element_type=f32)      # [Te*B, 3H]
    gi_dec = jnp.dot(jnp.dot(oh_y, emb_dec_ref[...], preferred_element_type=f32),
                     dec_wih_tok_ref[...], preferred_element_type=f32)  # [Td*B, 3H]
    gi_lab = jnp.dot(jnp.dot(oh_l, emb_lab_ref[...], preferred_element_type=f32),
                     dec_wih_lab_ref[...], preferred_element_type=f32)  # [B, 3H]

    # Fold the r/z gate b_hh into the precomputed gi (the n-gate b_hh must
    # stay inside r * (h @ W_hh_n + b_hh_n) and is pre-broadcast once).
    gi_enc_rz = gi_enc[:, :2 * H] + (enc_bih_ref[:, :2 * H] + enc_bhh_ref[:, :2 * H])
    gi_enc_n = gi_enc[:, 2 * H:] + enc_bih_ref[:, 2 * H:]
    gi_dec_rz = gi_dec[:, :2 * H]
    gi_dec_n = gi_dec[:, 2 * H:]
    gi_lab_rz = gi_lab[:, :2 * H] + (dec_bih_ref[:, :2 * H] + dec_bhh_ref[:, :2 * H])
    gi_lab_n = gi_lab[:, 2 * H:] + dec_bih_ref[:, 2 * H:]

    enc_whh = enc_whh_ref[...]
    dec_whh = dec_whh_ref[...]
    enc_bhh_n = jnp.broadcast_to(enc_bhh_ref[:, 2 * H:], (B, H))   # hoisted, once
    dec_bhh_n = jnp.broadcast_to(dec_bhh_ref[:, 2 * H:], (B, H))

    def merged_sigmoid(x):
        # one EUP op (tanh) instead of exp + divide; covers r and z together
        return 0.5 * jnp.tanh(0.5 * x) + 0.5

    def gru_step(gi_rz, gi_n, h, w_hh, bhh_n):
        # PyTorch GRU semantics; gi_* already hold x @ W_ih + biases (r/z folded)
        gh = jnp.dot(h, w_hh, preferred_element_type=f32)           # [B, 3H]
        rz = merged_sigmoid(gi_rz + gh[:, :2 * H])                  # one sigmoid for r|z
        r = rz[:, :H]
        z = rz[:, H:]
        n = jnp.tanh(gi_n + r * (gh[:, 2 * H:] + bhh_n))
        return (1.0 - z) * n + z * h

    # ---- encoder recurrence (static trip count -> fully unrolled) ----
    h = jnp.zeros((B, H), f32)
    for t in range(Te):
        h = gru_step(gi_enc_rz[t * B:(t + 1) * B],
                     gi_enc_n[t * B:(t + 1) * B], h, enc_whh, enc_bhh_n)

    # ---- decoder recurrence; hidden states kept as register values ----
    h_list = []
    for t in range(Td):
        # label contribution is time-invariant and off the h-dependency chain
        h = gru_step(gi_dec_rz[t * B:(t + 1) * B] + gi_lab_rz,
                     gi_dec_n[t * B:(t + 1) * B] + gi_lab_n,
                     h, dec_whh, dec_bhh_n)
        h_list.append(h)

    hout_ref[...] = h.astype(hout_ref.dtype)

    # ---- deferred output projection: ONE matmul, ONE lane-dense store ----
    hseq = jnp.stack(h_list, axis=1).reshape(B * Td, H)             # (b, t) row order
    logits = jnp.dot(hseq, wout_ref[...],
                     preferred_element_type=f32) + bout_ref[...]    # [B*Td, O]
    logits_ref[...] = logits.reshape(B, Td * O).astype(logits_ref.dtype)


def run_seq2seq(x_ids_tm, y_ids_tm, lab_ids,
                emb_enc, emb_dec, emb_lab,
                enc_w_ih, enc_w_hh, enc_b_ih, enc_b_hh,
                dec_w_ih_tok, dec_w_ih_lab, dec_w_hh, dec_b_ih, dec_b_hh,
                w_out, b_out):
    """x_ids_tm:[Te,B] i32, y_ids_tm:[Td,B] i32, lab_ids:[B,1] i32.
    Returns (logits [B, Td*O] in (b, t, o) order, final decoder hidden [B, H])."""
    Te, B = x_ids_tm.shape
    Td = y_ids_tm.shape[0]
    H = enc_w_hh.shape[0]
    O = w_out.shape[1]

    vmem = lambda: pl.BlockSpec(memory_space=pltpu.MemorySpace.VMEM)
    n_in = 17
    return pl.pallas_call(
        seq2seq_fused_kernel,
        out_shape=(
            jax.ShapeDtypeStruct((B, Td * O), jnp.float32),
            jax.ShapeDtypeStruct((B, H), jnp.float32),
        ),
        in_specs=[vmem() for _ in range(n_in)],
        out_specs=(vmem(), vmem()),
    )(x_ids_tm, y_ids_tm, lab_ids,
      emb_enc, emb_dec, emb_lab,
      enc_w_ih, enc_w_hh, enc_b_ih, enc_b_hh,
      dec_w_ih_tok, dec_w_ih_lab, dec_w_hh, dec_b_ih, dec_b_hh,
      w_out, b_out)


# --------------------------------------------------------------------------
# Parameter init + forward wrapper
# --------------------------------------------------------------------------
def init_params(key, n_vocabs, decoder_output_size, hidden_size, label_size):
    ks = jax.random.split(key, 10)
    H, L, O = hidden_size, label_size, decoder_output_size
    D = hidden_size  # embedding dim == hidden_size (StepGAN convention)
    s = 0.1
    return dict(
        emb_enc=jax.random.normal(ks[0], (n_vocabs, D), jnp.float32) * s,
        emb_dec=jax.random.normal(ks[1], (n_vocabs, D), jnp.float32) * s,
        emb_lab=jax.random.normal(ks[2], (label_size, L), jnp.float32) * s,
        enc_w_ih=jax.random.normal(ks[3], (D, 3 * H), jnp.float32) * s,
        enc_w_hh=jax.random.normal(ks[4], (H, 3 * H), jnp.float32) * s,
        enc_b_ih=jnp.zeros((1, 3 * H), jnp.float32),
        enc_b_hh=jnp.zeros((1, 3 * H), jnp.float32),
        dec_w_ih=jax.random.normal(ks[5], (D + L, 3 * H), jnp.float32) * s,
        dec_w_hh=jax.random.normal(ks[6], (H, 3 * H), jnp.float32) * s,
        dec_b_ih=jnp.zeros((1, 3 * H), jnp.float32),
        dec_b_hh=jnp.zeros((1, 3 * H), jnp.float32),
        w_out=jax.random.normal(ks[7], (H, O), jnp.float32) * s,
        b_out=jnp.zeros((1, O), jnp.float32),
    )


@jax.jit
def discriminator_forward(params, x_tokens, label_batch, y_tokens):
    """x_tokens:[B,Te] i32, label_batch:[B] i32, y_tokens:[B,Td] i32.
    Returns (pred_logits [B, Td, decoder_output_size], decoder_hidden [B, H])."""
    B, Te = x_tokens.shape
    Td = y_tokens.shape[1]
    D = params["emb_dec"].shape[1]
    O = params["w_out"].shape[1]

    # Only 64-byte id transposes + one metadata reshape remain outside the
    # kernel; all gathers / embedding transposes happen in-kernel.
    dec_w_ih_tok = params["dec_w_ih"][:D, :]      # [D, 3H]
    dec_w_ih_lab = params["dec_w_ih"][D:, :]      # [L, 3H]

    logits_bt, dec_h = run_seq2seq(
        x_tokens.T, y_tokens.T, label_batch[:, None],
        params["emb_enc"], params["emb_dec"], params["emb_lab"],
        params["enc_w_ih"], params["enc_w_hh"],
        params["enc_b_ih"], params["enc_b_hh"],
        dec_w_ih_tok, dec_w_ih_lab,
        params["dec_w_hh"], params["dec_b_ih"], params["dec_b_hh"],
        params["w_out"], params["b_out"])

    pred_logits = logits_bt.reshape(B, Td, O)
    return pred_logits, dec_h


# --------------------------------------------------------------------------
# Pure-JAX reference (for correctness check only)
# --------------------------------------------------------------------------
def _ref_forward(params, x_tokens, label_batch, y_tokens):
    def cell(x, h, w_ih, w_hh, b_ih, b_hh):
        H = h.shape[-1]
        gi = x @ w_ih + b_ih
        gh = h @ w_hh + b_hh
        r = jax.nn.sigmoid(gi[:, :H] + gh[:, :H])
        z = jax.nn.sigmoid(gi[:, H:2 * H] + gh[:, H:2 * H])
        n = jnp.tanh(gi[:, 2 * H:] + r * gh[:, 2 * H:])
        return (1.0 - z) * n + z * h

    B = x_tokens.shape[0]
    H = params["enc_w_hh"].shape[0]
    x_emb = jnp.take(params["emb_enc"], x_tokens, axis=0)
    h = jnp.zeros((B, H), jnp.float32)
    for t in range(x_tokens.shape[1]):
        h = cell(x_emb[:, t], h, params["enc_w_ih"], params["enc_w_hh"],
                 params["enc_b_ih"], params["enc_b_hh"])
    y_emb = jnp.take(params["emb_dec"], y_tokens, axis=0)
    lab = jnp.take(params["emb_lab"], label_batch, axis=0)
    outs = []
    for t in range(y_tokens.shape[1]):
        xt = jnp.concatenate([y_emb[:, t], lab], axis=-1)
        h = cell(xt, h, params["dec_w_ih"], params["dec_w_hh"],
                 params["dec_b_ih"], params["dec_b_hh"])
        outs.append(h @ params["w_out"] + params["b_out"])
    return jnp.stack(outs, axis=1), h


# --------------------------------------------------------------------------
if __name__ == "__main__":
    # small, forward-consistent shapes
    n_vocabs = 16
    decoder_output_size = 1   # discriminator: squeeze(2) + sigmoid downstream
    hidden_size = 32
    label_size = 4
    encoder_seq_len = 8
    decoder_seq_len = 8
    batch = 2

    key = jax.random.PRNGKey(0)
    kp, kx, ky, kl = jax.random.split(key, 4)
    params = init_params(kp, n_vocabs, decoder_output_size,
                         hidden_size, label_size)

    x_tokens = jax.random.randint(kx, (batch, encoder_seq_len), 0, n_vocabs,
                                  dtype=jnp.int32)
    y_tokens = jax.random.randint(ky, (batch, decoder_seq_len), 0, n_vocabs,
                                  dtype=jnp.int32)
    label_batch = jax.random.randint(kl, (batch,), 0, label_size,
                                     dtype=jnp.int32)

    pred_logits, dec_hidden = discriminator_forward(
        params, x_tokens, label_batch, y_tokens)
    jax.block_until_ready((pred_logits, dec_hidden))

    # correctness check against pure-JAX reference
    ref_logits, ref_hidden = _ref_forward(params, x_tokens, label_batch,
                                          y_tokens)
    assert pred_logits.shape == (batch, decoder_seq_len, decoder_output_size)
    assert dec_hidden.shape == (batch, hidden_size)
    assert jnp.allclose(pred_logits, ref_logits, rtol=2e-3, atol=2e-3)
    assert jnp.allclose(dec_hidden, ref_hidden, rtol=2e-3, atol=2e-3)

    # downstream discriminator score (as in train_discriminator_model)
    q_values = jax.nn.sigmoid(jnp.squeeze(pred_logits, axis=2))
    _ = q_values.mean(axis=0)

    # TODO(synk): training methods (criterion/optimizers/backward) are host-side
    # PyTorch logic and are intentionally not ported; forward pass only.
    print("KERNEL_OK")
</pallas_src>

<mosaic_0001>
module attributes {stable_mosaic.version = 11 : i64} {
  func.func @seq2seq_fused_kernel(%arg0: memref<8x2xi32, #tpu.memory_space<vmem>>, %arg1: memref<8x2xi32, #tpu.memory_space<vmem>>, %arg2: memref<2x1xi32, #tpu.memory_space<vmem>>, %arg3: memref<16x32xf32, #tpu.memory_space<vmem>>, %arg4: memref<16x32xf32, #tpu.memory_space<vmem>>, %arg5: memref<4x4xf32, #tpu.memory_space<vmem>>, %arg6: memref<32x96xf32, #tpu.memory_space<vmem>>, %arg7: memref<32x96xf32, #tpu.memory_space<vmem>>, %arg8: memref<1x96xf32, #tpu.memory_space<vmem>>, %arg9: memref<1x96xf32, #tpu.memory_space<vmem>>, %arg10: memref<32x96xf32, #tpu.memory_space<vmem>>, %arg11: memref<4x96xf32, #tpu.memory_space<vmem>>, %arg12: memref<32x96xf32, #tpu.memory_space<vmem>>, %arg13: memref<1x96xf32, #tpu.memory_space<vmem>>, %arg14: memref<1x96xf32, #tpu.memory_space<vmem>>, %arg15: memref<32x1xf32, #tpu.memory_space<vmem>>, %arg16: memref<1x1xf32, #tpu.memory_space<vmem>>, %arg17: memref<2x8xf32, #tpu.memory_space<vmem>>, %arg18: memref<2x32xf32, #tpu.memory_space<vmem>>) attributes {dimension_semantics = [], scalar_prefetch = 0 : i64, scratch_operands = 0 : i64, tpu.core_type = #tpu.core_type<tc>} {
    %c0 = arith.constant 0 : index
    %c0_0 = arith.constant 0 : index
    %0 = vector.load %arg0[%c0, %c0_0] : memref<8x2xi32, #tpu.memory_space<vmem>>, vector<8x2xi32>
    %1 = tpu.iota {dimensions = array<i32: 2>} : vector<8x2x16xi32>
    %2 = vector.shape_cast %0 : vector<8x2xi32> to vector<8x2x1xi32>
    %3 = vector.broadcast %2 : vector<8x2x1xi32> to vector<8x2x16xi32>
    %4 = arith.cmpi eq, %3, %1 : vector<8x2x16xi32>
    %5 = arith.extui %4 : vector<8x2x16xi1> to vector<8x2x16xi32>
    %6 = arith.sitofp %5 : vector<8x2x16xi32> to vector<8x2x16xf32>
    %7 = vector.shape_cast %6 : vector<8x2x16xf32> to vector<16x16xf32>
    %c0_1 = arith.constant 0 : index
    %c0_2 = arith.constant 0 : index
    %8 = vector.load %arg1[%c0_1, %c0_2] : memref<8x2xi32, #tpu.memory_space<vmem>>, vector<8x2xi32>
    %9 = tpu.iota {dimensions = array<i32: 2>} : vector<8x2x16xi32>
    %10 = vector.shape_cast %8 : vector<8x2xi32> to vector<8x2x1xi32>
    %11 = vector.broadcast %10 : vector<8x2x1xi32> to vector<8x2x16xi32>
    %12 = arith.cmpi eq, %11, %9 : vector<8x2x16xi32>
    %13 = arith.extui %12 : vector<8x2x16xi1> to vector<8x2x16xi32>
    %14 = arith.sitofp %13 : vector<8x2x16xi32> to vector<8x2x16xf32>
    %15 = vector.shape_cast %14 : vector<8x2x16xf32> to vector<16x16xf32>
    %c0_3 = arith.constant 0 : index
    %c0_4 = arith.constant 0 : index
    %16 = vector.load %arg2[%c0_3, %c0_4] : memref<2x1xi32, #tpu.memory_space<vmem>>, vector<2x1xi32>
    %17 = tpu.iota {dimensions = array<i32: 1>} : vector<2x4xi32>
    %18 = vector.broadcast %16 : vector<2x1xi32> to vector<2x4xi32>
    %19 = arith.cmpi eq, %18, %17 : vector<2x4xi32>
    %20 = arith.extui %19 : vector<2x4xi1> to vector<2x4xi32>
    %21 = arith.sitofp %20 : vector<2x4xi32> to vector<2x4xf32>
    %c0_5 = arith.constant 0 : index
    %c0_6 = arith.constant 0 : index
    %22 = vector.load %arg3[%c0_5, %c0_6] : memref<16x32xf32, #tpu.memory_space<vmem>>, vector<16x32xf32>
    %cst = arith.constant dense<0.000000e+00> : vector<16x32xf32>
    %23 = tpu.matmul %7, %22, %cst {dimension_numbers = #tpu.dot_dimension_numbers<[1], [0], [0], [1], [0, 0, 1, 1], [], []>} : vector<16x16xf32>, vector<16x32xf32>, vector<16x32xf32> -> vector<16x32xf32>
    %c0_7 = arith.constant 0 : index
    %c0_8 = arith.constant 0 : index
    %24 = vector.load %arg6[%c0_7, %c0_8] : memref<32x96xf32, #tpu.memory_space<vmem>>, vector<32x96xf32>
    %cst_9 = arith.constant dense<0.000000e+00> : vector<16x96xf32>
    %25 = tpu.matmul %23, %24, %cst_9 {dimension_numbers = #tpu.dot_dimension_numbers<[1], [0], [0], [1], [0, 0, 1, 1], [], []>} : vector<16x32xf32>, vector<32x96xf32>, vector<16x96xf32> -> vector<16x96xf32>
    %c0_10 = arith.constant 0 : index
    %c0_11 = arith.constant 0 : index
    %26 = vector.load %arg4[%c0_10, %c0_11] : memref<16x32xf32, #tpu.memory_space<vmem>>, vector<16x32xf32>
    %cst_12 = arith.constant dense<0.000000e+00> : vector<16x32xf32>
    %27 = tpu.matmul %15, %26, %cst_12 {dimension_numbers = #tpu.dot_dimension_numbers<[1], [0], [0], [1], [0, 0, 1, 1], [], []>} : vector<16x16xf32>, vector<16x32xf32>, vector<16x32xf32> -> vector<16x32xf32>
    %c0_13 = arith.constant 0 : index
    %c0_14 = arith.constant 0 : index
    %28 = vector.load %arg10[%c0_13, %c0_14] : memref<32x96xf32, #tpu.memory_space<vmem>>, vector<32x96xf32>
    %cst_15 = arith.constant dense<0.000000e+00> : vector<16x96xf32>
    %29 = tpu.matmul %27, %28, %cst_15 {dimension_numbers = #tpu.dot_dimension_numbers<[1], [0], [0], [1], [0, 0, 1, 1], [], []>} : vector<16x32xf32>, vector<32x96xf32>, vector<16x96xf32> -> vector<16x96xf32>
    %c0_16 = arith.constant 0 : index
    %c0_17 = arith.constant 0 : index
    %30 = vector.load %arg5[%c0_16, %c0_17] : memref<4x4xf32, #tpu.memory_space<vmem>>, vector<4x4xf32>
    %cst_18 = arith.constant dense<0.000000e+00> : vector<2x4xf32>
    %31 = tpu.matmul %21, %30, %cst_18 {dimension_numbers = #tpu.dot_dimension_numbers<[1], [0], [0], [1], [0, 0, 1, 1], [], []>} : vector<2x4xf32>, vector<4x4xf32>, vector<2x4xf32> -> vector<2x4xf32>
    %c0_19 = arith.constant 0 : index
    %c0_20 = arith.constant 0 : index
    %32 = vector.load %arg11[%c0_19, %c0_20] : memref<4x96xf32, #tpu.memory_space<vmem>>, vector<4x96xf32>
    %cst_21 = arith.constant dense<0.000000e+00> : vector<2x96xf32>
    %33 = tpu.matmul %31, %32, %cst_21 {dimension_numbers = #tpu.dot_dimension_numbers<[1], [0], [0], [1], [0, 0, 1, 1], [], []>} : vector<2x4xf32>, vector<4x96xf32>, vector<2x96xf32> -> vector<2x96xf32>
    %34 = vector.extract_strided_slice %25 {offsets = [0, 0], sizes = [16, 64], strides = [1, 1]} : vector<16x96xf32> to vector<16x64xf32>
    %c0_22 = arith.constant 0 : index
    %c0_23 = arith.constant 0 : index
    %35 = vector.load %arg8[%c0_22, %c0_23] : memref<1x96xf32, #tpu.memory_space<vmem>>, vector<1x64xf32>
    %c0_24 = arith.constant 0 : index
    %c0_25 = arith.constant 0 : index
    %36 = vector.load %arg9[%c0_24, %c0_25] : memref<1x96xf32, #tpu.memory_space<vmem>>, vector<1x64xf32>
    %37 = arith.addf %35, %36 : vector<1x64xf32>
    %38 = vector.broadcast %37 : vector<1x64xf32> to vector<16x64xf32>
    %39 = arith.addf %34, %38 : vector<16x64xf32>
    %40 = vector.extract_strided_slice %25 {offsets = [0, 64], sizes = [16, 32], strides = [1, 1]} : vector<16x96xf32> to vector<16x32xf32>
    %c0_26 = arith.constant 0 : index
    %c64 = arith.constant 64 : index
    %41 = vector.load %arg8[%c0_26, %c64] : memref<1x96xf32, #tpu.memory_space<vmem>>, vector<1x32xf32>
    %42 = vector.broadcast %41 : vector<1x32xf32> to vector<16x32xf32>
    %43 = arith.addf %40, %42 : vector<16x32xf32>
    %44 = vector.extract_strided_slice %29 {offsets = [0, 0], sizes = [16, 64], strides = [1, 1]} : vector<16x96xf32> to vector<16x64xf32>
    %45 = vector.extract_strided_slice %29 {offsets = [0, 64], sizes = [16, 32], strides = [1, 1]} : vector<16x96xf32> to vector<16x32xf32>
    %46 = vector.extract_strided_slice %33 {offsets = [0, 0], sizes = [2, 64], strides = [1, 1]} : vector<2x96xf32> to vector<2x64xf32>
    %c0_27 = arith.constant 0 : index
    %c0_28 = arith.constant 0 : index
    %47 = vector.load %arg13[%c0_27, %c0_28] : memref<1x96xf32, #tpu.memory_space<vmem>>, vector<1x64xf32>
    %c0_29 = arith.constant 0 : index
    %c0_30 = arith.constant 0 : index
    %48 = vector.load %arg14[%c0_29, %c0_30] : memref<1x96xf32, #tpu.memory_space<vmem>>, vector<1x64xf32>
    %49 = arith.addf %47, %48 : vector<1x64xf32>
    %50 = vector.broadcast %49 : vector<1x64xf32> to vector<2x64xf32>
    %51 = arith.addf %46, %50 : vector<2x64xf32>
    %52 = vector.extract_strided_slice %33 {offsets = [0, 64], sizes = [2, 32], strides = [1, 1]} : vector<2x96xf32> to vector<2x32xf32>
    %c0_31 = arith.constant 0 : index
    %c64_32 = arith.constant 64 : index
    %53 = vector.load %arg13[%c0_31, %c64_32] : memref<1x96xf32, #tpu.memory_space<vmem>>, vector<1x32xf32>
    %54 = vector.broadcast %53 : vector<1x32xf32> to vector<2x32xf32>
    %55 = arith.addf %52, %54 : vector<2x32xf32>
    %c0_33 = arith.constant 0 : index
    %c0_34 = arith.constant 0 : index
    %56 = vector.load %arg7[%c0_33, %c0_34] : memref<32x96xf32, #tpu.memory_space<vmem>>, vector<32x96xf32>
    %c0_35 = arith.constant 0 : index
    %c0_36 = arith.constant 0 : index
    %57 = vector.load %arg12[%c0_35, %c0_36] : memref<32x96xf32, #tpu.memory_space<vmem>>, vector<32x96xf32>
    %c0_37 = arith.constant 0 : index
    %c64_38 = arith.constant 64 : index
    %58 = vector.load %arg9[%c0_37, %c64_38] : memref<1x96xf32, #tpu.memory_space<vmem>>, vector<1x32xf32>
    %59 = vector.shape_cast %58 : vector<1x32xf32> to vector<1x32xf32>
    %60 = vector.broadcast %59 : vector<1x32xf32> to vector<2x32xf32>
    %c0_39 = arith.constant 0 : index
    %c64_40 = arith.constant 64 : index
    %61 = vector.load %arg14[%c0_39, %c64_40] : memref<1x96xf32, #tpu.memory_space<vmem>>, vector<1x32xf32>
    %62 = vector.shape_cast %61 : vector<1x32xf32> to vector<1x32xf32>
    %63 = vector.broadcast %62 : vector<1x32xf32> to vector<2x32xf32>
    %cst_41 = arith.constant 0.000000e+00 : f32
    %64 = vector.broadcast %cst_41 : f32 to vector<2x32xf32>
    %65 = vector.extract_strided_slice %39 {offsets = [0, 0], sizes = [2, 64], strides = [1, 1]} : vector<16x64xf32> to vector<2x64xf32>
    %66 = vector.extract_strided_slice %43 {offsets = [0, 0], sizes = [2, 32], strides = [1, 1]} : vector<16x32xf32> to vector<2x32xf32>
    %cst_42 = arith.constant dense<0.000000e+00> : vector<2x96xf32>
    %67 = tpu.matmul %64, %56, %cst_42 {dimension_numbers = #tpu.dot_dimension_numbers<[1], [0], [0], [1], [0, 0, 1, 1], [], []>} : vector<2x32xf32>, vector<32x96xf32>, vector<2x96xf32> -> vector<2x96xf32>
    %68 = vector.extract_strided_slice %67 {offsets = [0, 0], sizes = [2, 64], strides = [1, 1]} : vector<2x96xf32> to vector<2x64xf32>
    %69 = arith.addf %65, %68 : vector<2x64xf32>
    %cst_43 = arith.constant 5.000000e-01 : f32
    %70 = vector.broadcast %cst_43 : f32 to vector<2x64xf32>
    %71 = arith.mulf %70, %69 : vector<2x64xf32>
    %72 = math.tanh %71 : vector<2x64xf32>
    %cst_44 = arith.constant 5.000000e-01 : f32
    %73 = vector.broadcast %cst_44 : f32 to vector<2x64xf32>
    %74 = arith.mulf %73, %72 : vector<2x64xf32>
    %cst_45 = arith.constant 5.000000e-01 : f32
    %75 = vector.broadcast %cst_45 : f32 to vector<2x64xf32>
    %76 = arith.addf %74, %75 : vector<2x64xf32>
    %77 = vector.extract_strided_slice %76 {offsets = [0, 0], sizes = [2, 32], strides = [1, 1]} : vector<2x64xf32> to vector<2x32xf32>
    %78 = vector.extract_strided_slice %76 {offsets = [0, 32], sizes = [2, 32], strides = [1, 1]} : vector<2x64xf32> to vector<2x32xf32>
    %79 = vector.extract_strided_slice %67 {offsets = [0, 64], sizes = [2, 32], strides = [1, 1]} : vector<2x96xf32> to vector<2x32xf32>
    %80 = arith.addf %79, %60 : vector<2x32xf32>
    %81 = arith.mulf %77, %80 : vector<2x32xf32>
    %82 = arith.addf %66, %81 : vector<2x32xf32>
    %83 = math.tanh %82 : vector<2x32xf32>
    %cst_46 = arith.constant 1.000000e+00 : f32
    %84 = vector.broadcast %cst_46 : f32 to vector<2x32xf32>
    %85 = arith.subf %84, %78 : vector<2x32xf32>
    %86 = arith.mulf %85, %83 : vector<2x32xf32>
    %87 = arith.mulf %78, %64 : vector<2x32xf32>
    %88 = arith.addf %86, %87 : vector<2x32xf32>
    %89 = vector.extract_strided_slice %39 {offsets = [2, 0], sizes = [2, 64], strides = [1, 1]} : vector<16x64xf32> to vector<2x64xf32>
    %90 = vector.extract_strided_slice %43 {offsets = [2, 0], sizes = [2, 32], strides = [1, 1]} : vector<16x32xf32> to vector<2x32xf32>
    %cst_47 = arith.constant dense<0.000000e+00> : vector<2x96xf32>
    %91 = tpu.matmul %88, %56, %cst_47 {dimension_numbers = #tpu.dot_dimension_numbers<[1], [0], [0], [1], [0, 0, 1, 1], [], []>} : vector<2x32xf32>, vector<32x96xf32>, vector<2x96xf32> -> vector<2x96xf32>
    %92 = vector.extract_strided_slice %91 {offsets = [0, 0], sizes = [2, 64], strides = [1, 1]} : vector<2x96xf32> to vector<2x64xf32>
    %93 = arith.addf %89, %92 : vector<2x64xf32>
    %cst_48 = arith.constant 5.000000e-01 : f32
    %94 = vector.broadcast %cst_48 : f32 to vector<2x64xf32>
    %95 = arith.mulf %94, %93 : vector<2x64xf32>
    %96 = math.tanh %95 : vector<2x64xf32>
    %cst_49 = arith.constant 5.000000e-01 : f32
    %97 = vector.broadcast %cst_49 : f32 to vector<2x64xf32>
    %98 = arith.mulf %97, %96 : vector<2x64xf32>
    %cst_50 = arith.constant 5.000000e-01 : f32
    %99 = vector.broadcast %cst_50 : f32 to vector<2x64xf32>
    %100 = arith.addf %98, %99 : vector<2x64xf32>
    %101 = vector.extract_strided_slice %100 {offsets = [0, 0], sizes = [2, 32], strides = [1, 1]} : vector<2x64xf32> to vector<2x32xf32>
    %102 = vector.extract_strided_slice %100 {offsets = [0, 32], sizes = [2, 32], strides = [1, 1]} : vector<2x64xf32> to vector<2x32xf32>
    %103 = vector.extract_strided_slice %91 {offsets = [0, 64], sizes = [2, 32], strides = [1, 1]} : vector<2x96xf32> to vector<2x32xf32>
    %104 = arith.addf %103, %60 : vector<2x32xf32>
    %105 = arith.mulf %101, %104 : vector<2x32xf32>
    %106 = arith.addf %90, %105 : vector<2x32xf32>
    %107 = math.tanh %106 : vector<2x32xf32>
    %cst_51 = arith.constant 1.000000e+00 : f32
    %108 = vector.broadcast %cst_51 : f32 to vector<2x32xf32>
    %109 = arith.subf %108, %102 : vector<2x32xf32>
    %110 = arith.mulf %109, %107 : vector<2x32xf32>
    %111 = arith.mulf %102, %88 : vector<2x32xf32>
    %112 = arith.addf %110, %111 : vector<2x32xf32>
    %113 = vector.extract_strided_slice %39 {offsets = [4, 0], sizes = [2, 64], strides = [1, 1]} : vector<16x64xf32> to vector<2x64xf32>
    %114 = vector.extract_strided_slice %43 {offsets = [4, 0], sizes = [2, 32], strides = [1, 1]} : vector<16x32xf32> to vector<2x32xf32>
    %cst_52 = arith.constant dense<0.000000e+00> : vector<2x96xf32>
    %115 = tpu.matmul %112, %56, %cst_52 {dimension_numbers = #tpu.dot_dimension_numbers<[1], [0], [0], [1], [0, 0, 1, 1], [], []>} : vector<2x32xf32>, vector<32x96xf32>, vector<2x96xf32> -> vector<2x96xf32>
    %116 = vector.extract_strided_slice %115 {offsets = [0, 0], sizes = [2, 64], strides = [1, 1]} : vector<2x96xf32> to vector<2x64xf32>
    %117 = arith.addf %113, %116 : vector<2x64xf32>
    %cst_53 = arith.constant 5.000000e-01 : f32
    %118 = vector.broadcast %cst_53 : f32 to vector<2x64xf32>
    %119 = arith.mulf %118, %117 : vector<2x64xf32>
    %120 = math.tanh %119 : vector<2x64xf32>
    %cst_54 = arith.constant 5.000000e-01 : f32
    %121 = vector.broadcast %cst_54 : f32 to vector<2x64xf32>
    %122 = arith.mulf %121, %120 : vector<2x64xf32>
    %cst_55 = arith.constant 5.000000e-01 : f32
    %123 = vector.broadcast %cst_55 : f32 to vector<2x64xf32>
    %124 = arith.addf %122, %123 : vector<2x64xf32>
    %125 = vector.extract_strided_slice %124 {offsets = [0, 0], sizes = [2, 32], strides = [1, 1]} : vector<2x64xf32> to vector<2x32xf32>
    %126 = vector.extract_strided_slice %124 {offsets = [0, 32], sizes = [2, 32], strides = [1, 1]} : vector<2x64xf32> to vector<2x32xf32>
    %127 = vector.extract_strided_slice %115 {offsets = [0, 64], sizes = [2, 32], strides = [1, 1]} : vector<2x96xf32> to vector<2x32xf32>
    %128 = arith.addf %127, %60 : vector<2x32xf32>
    %129 = arith.mulf %125, %128 : vector<2x32xf32>
    %130 = arith.addf %114, %129 : vector<2x32xf32>
    %131 = math.tanh %130 : vector<2x32xf32>
    %cst_56 = arith.constant 1.000000e+00 : f32
    %132 = vector.broadcast %cst_56 : f32 to vector<2x32xf32>
    %133 = arith.subf %132, %126 : vector<2x32xf32>
    %134 = arith.mulf %133, %131 : vector<2x32xf32>
    %135 = arith.mulf %126, %112 : vector<2x32xf32>
    %136 = arith.addf %134, %135 : vector<2x32xf32>
    %137 = vector.extract_strided_slice %39 {offsets = [6, 0], sizes = [2, 64], strides = [1, 1]} : vector<16x64xf32> to vector<2x64xf32>
    %138 = vector.extract_strided_slice %43 {offsets = [6, 0], sizes = [2, 32], strides = [1, 1]} : vector<16x32xf32> to vector<2x32xf32>
    %cst_57 = arith.constant dense<0.000000e+00> : vector<2x96xf32>
    %139 = tpu.matmul %136, %56, %cst_57 {dimension_numbers = #tpu.dot_dimension_numbers<[1], [0], [0], [1], [0, 0, 1, 1], [], []>} : vector<2x32xf32>, vector<32x96xf32>, vector<2x96xf32> -> vector<2x96xf32>
    %140 = vector.extract_strided_slice %139 {offsets = [0, 0], sizes = [2, 64], strides = [1, 1]} : vector<2x96xf32> to vector<2x64xf32>
    %141 = arith.addf %137, %140 : vector<2x64xf32>
    %cst_58 = arith.constant 5.000000e-01 : f32
    %142 = vector.broadcast %cst_58 : f32 to vector<2x64xf32>
    %143 = arith.mulf %142, %141 : vector<2x64xf32>
    %144 = math.tanh %143 : vector<2x64xf32>
    %cst_59 = arith.constant 5.000000e-01 : f32
    %145 = vector.broadcast %cst_59 : f32 to vector<2x64xf32>
    %146 = arith.mulf %145, %144 : vector<2x64xf32>
    %cst_60 = arith.constant 5.000000e-01 : f32
    %147 = vector.broadcast %cst_60 : f32 to vector<2x64xf32>
    %148 = arith.addf %146, %147 : vector<2x64xf32>
    %149 = vector.extract_strided_slice %148 {offsets = [0, 0], sizes = [2, 32], strides = [1, 1]} : vector<2x64xf32> to vector<2x32xf32>
    %150 = vector.extract_strided_slice %148 {offsets = [0, 32], sizes = [2, 32], strides = [1, 1]} : vector<2x64xf32> to vector<2x32xf32>
    %151 = vector.extract_strided_slice %139 {offsets = [0, 64], sizes = [2, 32], strides = [1, 1]} : vector<2x96xf32> to vector<2x32xf32>
    %152 = arith.addf %151, %60 : vector<2x32xf32>
    %153 = arith.mulf %149, %152 : vector<2x32xf32>
    %154 = arith.addf %138, %153 : vector<2x32xf32>
    %155 = math.tanh %154 : vector<2x32xf32>
    %cst_61 = arith.constant 1.000000e+00 : f32
    %156 = vector.broadcast %cst_61 : f32 to vector<2x32xf32>
    %157 = arith.subf %156, %150 : vector<2x32xf32>
    %158 = arith.mulf %157, %155 : vector<2x32xf32>
    %159 = arith.mulf %150, %136 : vector<2x32xf32>
    %160 = arith.addf %158, %159 : vector<2x32xf32>
    %161 = vector.extract_strided_slice %39 {offsets = [8, 0], sizes = [2, 64], strides = [1, 1]} : vector<16x64xf32> to vector<2x64xf32>
    %162 = vector.extract_strided_slice %43 {offsets = [8, 0], sizes = [2, 32], strides = [1, 1]} : vector<16x32xf32> to vector<2x32xf32>
    %cst_62 = arith.constant dense<0.000000e+00> : vector<2x96xf32>
    %163 = tpu.matmul %160, %56, %cst_62 {dimension_numbers = #tpu.dot_dimension_numbers<[1], [0], [0], [1], [0, 0, 1, 1], [], []>} : vector<2x32xf32>, vector<32x96xf32>, vector<2x96xf32> -> vector<2x96xf32>
    %164 = vector.extract_strided_slice %163 {offsets = [0, 0], sizes = [2, 64], strides = [1, 1]} : vector<2x96xf32> to vector<2x64xf32>
    %165 = arith.addf %161, %164 : vector<2x64xf32>
    %cst_63 = arith.constant 5.000000e-01 : f32
    %166 = vector.broadcast %cst_63 : f32 to vector<2x64xf32>
    %167 = arith.mulf %166, %165 : vector<2x64xf32>
    %168 = math.tanh %167 : vector<2x64xf32>
    %cst_64 = arith.constant 5.000000e-01 : f32
    %169 = vector.broadcast %cst_64 : f32 to vector<2x64xf32>
    %170 = arith.mulf %169, %168 : vector<2x64xf32>
    %cst_65 = arith.constant 5.000000e-01 : f32
    %171 = vector.broadcast %cst_65 : f32 to vector<2x64xf32>
    %172 = arith.addf %170, %171 : vector<2x64xf32>
    %173 = vector.extract_strided_slice %172 {offsets = [0, 0], sizes = [2, 32], strides = [1, 1]} : vector<2x64xf32> to vector<2x32xf32>
    %174 = vector.extract_strided_slice %172 {offsets = [0, 32], sizes = [2, 32], strides = [1, 1]} : vector<2x64xf32> to vector<2x32xf32>
    %175 = vector.extract_strided_slice %163 {offsets = [0, 64], sizes = [2, 32], strides = [1, 1]} : vector<2x96xf32> to vector<2x32xf32>
    %176 = arith.addf %175, %60 : vector<2x32xf32>
    %177 = arith.mulf %173, %176 : vector<2x32xf32>
    %178 = arith.addf %162, %177 : vector<2x32xf32>
    %179 = math.tanh %178 : vector<2x32xf32>
    %cst_66 = arith.constant 1.000000e+00 : f32
    %180 = vector.broadcast %cst_66 : f32 to vector<2x32xf32>
    %181 = arith.subf %180, %174 : vector<2x32xf32>
    %182 = arith.mulf %181, %179 : vector<2x32xf32>
    %183 = arith.mulf %174, %160 : vector<2x32xf32>
    %184 = arith.addf %182, %183 : vector<2x32xf32>
    %185 = vector.extract_strided_slice %39 {offsets = [10, 0], sizes = [2, 64], strides = [1, 1]} : vector<16x64xf32> to vector<2x64xf32>
    %186 = vector.extract_strided_slice %43 {offsets = [10, 0], sizes = [2, 32], strides = [1, 1]} : vector<16x32xf32> to vector<2x32xf32>
    %cst_67 = arith.constant dense<0.000000e+00> : vector<2x96xf32>
    %187 = tpu.matmul %184, %56, %cst_67 {dimension_numbers = #tpu.dot_dimension_numbers<[1], [0], [0], [1], [0, 0, 1, 1], [], []>} : vector<2x32xf32>, vector<32x96xf32>, vector<2x96xf32> -> vector<2x96xf32>
    %188 = vector.extract_strided_slice %187 {offsets = [0, 0], sizes = [2, 64], strides = [1, 1]} : vector<2x96xf32> to vector<2x64xf32>
    %189 = arith.addf %185, %188 : vector<2x64xf32>
    %cst_68 = arith.constant 5.000000e-01 : f32
    %190 = vector.broadcast %cst_68 : f32 to vector<2x64xf32>
    %191 = arith.mulf %190, %189 : vector<2x64xf32>
    %192 = math.tanh %191 : vector<2x64xf32>
    %cst_69 = arith.constant 5.000000e-01 : f32
    %193 = vector.broadcast %cst_69 : f32 to vector<2x64xf32>
    %194 = arith.mulf %193, %192 : vector<2x64xf32>
    %cst_70 = arith.constant 5.000000e-01 : f32
    %195 = vector.broadcast %cst_70 : f32 to vector<2x64xf32>
    %196 = arith.addf %194, %195 : vector<2x64xf32>
    %197 = vector.extract_strided_slice %196 {offsets = [0, 0], sizes = [2, 32], strides = [1, 1]} : vector<2x64xf32> to vector<2x32xf32>
    %198 = vector.extract_strided_slice %196 {offsets = [0, 32], sizes = [2, 32], strides = [1, 1]} : vector<2x64xf32> to vector<2x32xf32>
    %199 = vector.extract_strided_slice %187 {offsets = [0, 64], sizes = [2, 32], strides = [1, 1]} : vector<2x96xf32> to vector<2x32xf32>
    %200 = arith.addf %199, %60 : vector<2x32xf32>
    %201 = arith.mulf %197, %200 : vector<2x32xf32>
    %202 = arith.addf %186, %201 : vector<2x32xf32>
    %203 = math.tanh %202 : vector<2x32xf32>
    %cst_71 = arith.constant 1.000000e+00 : f32
    %204 = vector.broadcast %cst_71 : f32 to vector<2x32xf32>
    %205 = arith.subf %204, %198 : vector<2x32xf32>
    %206 = arith.mulf %205, %203 : vector<2x32xf32>
    %207 = arith.mulf %198, %184 : vector<2x32xf32>
    %208 = arith.addf %206, %207 : vector<2x32xf32>
    %209 = vector.extract_strided_slice %39 {offsets = [12, 0], sizes = [2, 64], strides = [1, 1]} : vector<16x64xf32> to vector<2x64xf32>
    %210 = vector.extract_strided_slice %43 {offsets = [12, 0], sizes = [2, 32], strides = [1, 1]} : vector<16x32xf32> to vector<2x32xf32>
    %cst_72 = arith.constant dense<0.000000e+00> : vector<2x96xf32>
    %211 = tpu.matmul %208, %56, %cst_72 {dimension_numbers = #tpu.dot_dimension_numbers<[1], [0], [0], [1], [0, 0, 1, 1], [], []>} : vector<2x32xf32>, vector<32x96xf32>, vector<2x96xf32> -> vector<2x96xf32>
    %212 = vector.extract_strided_slice %211 {offsets = [0, 0], sizes = [2, 64], strides = [1, 1]} : vector<2x96xf32> to vector<2x64xf32>
    %213 = arith.addf %209, %212 : vector<2x64xf32>
    %cst_73 = arith.constant 5.000000e-01 : f32
    %214 = vector.broadcast %cst_73 : f32 to vector<2x64xf32>
    %215 = arith.mulf %214, %213 : vector<2x64xf32>
    %216 = math.tanh %215 : vector<2x64xf32>
    %cst_74 = arith.constant 5.000000e-01 : f32
    %217 = vector.broadcast %cst_74 : f32 to vector<2x64xf32>
    %218 = arith.mulf %217, %216 : vector<2x64xf32>
    %cst_75 = arith.constant 5.000000e-01 : f32
    %219 = vector.broadcast %cst_75 : f32 to vector<2x64xf32>
    %220 = arith.addf %218, %219 : vector<2x64xf32>
    %221 = vector.extract_strided_slice %220 {offsets = [0, 0], sizes = [2, 32], strides = [1, 1]} : vector<2x64xf32> to vector<2x32xf32>
    %222 = vector.extract_strided_slice %220 {offsets = [0, 32], sizes = [2, 32], strides = [1, 1]} : vector<2x64xf32> to vector<2x32xf32>
    %223 = vector.extract_strided_slice %211 {offsets = [0, 64], sizes = [2, 32], strides = [1, 1]} : vector<2x96xf32> to vector<2x32xf32>
    %224 = arith.addf %223, %60 : vector<2x32xf32>
    %225 = arith.mulf %221, %224 : vector<2x32xf32>
    %226 = arith.addf %210, %225 : vector<2x32xf32>
    %227 = math.tanh %226 : vector<2x32xf32>
    %cst_76 = arith.constant 1.000000e+00 : f32
    %228 = vector.broadcast %cst_76 : f32 to vector<2x32xf32>
    %229 = arith.subf %228, %222 : vector<2x32xf32>
    %230 = arith.mulf %229, %227 : vector<2x32xf32>
    %231 = arith.mulf %222, %208 : vector<2x32xf32>
    %232 = arith.addf %230, %231 : vector<2x32xf32>
    %233 = vector.extract_strided_slice %39 {offsets = [14, 0], sizes = [2, 64], strides = [1, 1]} : vector<16x64xf32> to vector<2x64xf32>
    %234 = vector.extract_strided_slice %43 {offsets = [14, 0], sizes = [2, 32], strides = [1, 1]} : vector<16x32xf32> to vector<2x32xf32>
    %cst_77 = arith.constant dense<0.000000e+00> : vector<2x96xf32>
    %235 = tpu.matmul %232, %56, %cst_77 {dimension_numbers = #tpu.dot_dimension_numbers<[1], [0], [0], [1], [0, 0, 1, 1], [], []>} : vector<2x32xf32>, vector<32x96xf32>, vector<2x96xf32> -> vector<2x96xf32>
    %236 = vector.extract_strided_slice %235 {offsets = [0, 0], sizes = [2, 64], strides = [1, 1]} : vector<2x96xf32> to vector<2x64xf32>
    %237 = arith.addf %233, %236 : vector<2x64xf32>
    %cst_78 = arith.constant 5.000000e-01 : f32
    %238 = vector.broadcast %cst_78 : f32 to vector<2x64xf32>
    %239 = arith.mulf %238, %237 : vector<2x64xf32>
    %240 = math.tanh %239 : vector<2x64xf32>
    %cst_79 = arith.constant 5.000000e-01 : f32
    %241 = vector.broadcast %cst_79 : f32 to vector<2x64xf32>
    %242 = arith.mulf %241, %240 : vector<2x64xf32>
    %cst_80 = arith.constant 5.000000e-01 : f32
    %243 = vector.broadcast %cst_80 : f32 to vector<2x64xf32>
    %244 = arith.addf %242, %243 : vector<2x64xf32>
    %245 = vector.extract_strided_slice %244 {offsets = [0, 0], sizes = [2, 32], strides = [1, 1]} : vector<2x64xf32> to vector<2x32xf32>
    %246 = vector.extract_strided_slice %244 {offsets = [0, 32], sizes = [2, 32], strides = [1, 1]} : vector<2x64xf32> to vector<2x32xf32>
    %247 = vector.extract_strided_slice %235 {offsets = [0, 64], sizes = [2, 32], strides = [1, 1]} : vector<2x96xf32> to vector<2x32xf32>
    %248 = arith.addf %247, %60 : vector<2x32xf32>
    %249 = arith.mulf %245, %248 : vector<2x32xf32>
    %250 = arith.addf %234, %249 : vector<2x32xf32>
    %251 = math.tanh %250 : vector<2x32xf32>
    %cst_81 = arith.constant 1.000000e+00 : f32
    %252 = vector.broadcast %cst_81 : f32 to vector<2x32xf32>
    %253 = arith.subf %252, %246 : vector<2x32xf32>
    %254 = arith.mulf %253, %251 : vector<2x32xf32>
    %255 = arith.mulf %246, %232 : vector<2x32xf32>
    %256 = arith.addf %254, %255 : vector<2x32xf32>
    %257 = vector.extract_strided_slice %44 {offsets = [0, 0], sizes = [2, 64], strides = [1, 1]} : vector<16x64xf32> to vector<2x64xf32>
    %258 = arith.addf %257, %51 : vector<2x64xf32>
    %259 = vector.extract_strided_slice %45 {offsets = [0, 0], sizes = [2, 32], strides = [1, 1]} : vector<16x32xf32> to vector<2x32xf32>
    %260 = arith.addf %259, %55 : vector<2x32xf32>
    %cst_82 = arith.constant dense<0.000000e+00> : vector<2x96xf32>
    %261 = tpu.matmul %256, %57, %cst_82 {dimension_numbers = #tpu.dot_dimension_numbers<[1], [0], [0], [1], [0, 0, 1, 1], [], []>} : vector<2x32xf32>, vector<32x96xf32>, vector<2x96xf32> -> vector<2x96xf32>
    %262 = vector.extract_strided_slice %261 {offsets = [0, 0], sizes = [2, 64], strides = [1, 1]} : vector<2x96xf32> to vector<2x64xf32>
    %263 = arith.addf %258, %262 : vector<2x64xf32>
    %cst_83 = arith.constant 5.000000e-01 : f32
    %264 = vector.broadcast %cst_83 : f32 to vector<2x64xf32>
    %265 = arith.mulf %264, %263 : vector<2x64xf32>
    %266 = math.tanh %265 : vector<2x64xf32>
    %cst_84 = arith.constant 5.000000e-01 : f32
    %267 = vector.broadcast %cst_84 : f32 to vector<2x64xf32>
    %268 = arith.mulf %267, %266 : vector<2x64xf32>
    %cst_85 = arith.constant 5.000000e-01 : f32
    %269 = vector.broadcast %cst_85 : f32 to vector<2x64xf32>
    %270 = arith.addf %268, %269 : vector<2x64xf32>
    %271 = vector.extract_strided_slice %270 {offsets = [0, 0], sizes = [2, 32], strides = [1, 1]} : vector<2x64xf32> to vector<2x32xf32>
    %272 = vector.extract_strided_slice %270 {offsets = [0, 32], sizes = [2, 32], strides = [1, 1]} : vector<2x64xf32> to vector<2x32xf32>
    %273 = vector.extract_strided_slice %261 {offsets = [0, 64], sizes = [2, 32], strides = [1, 1]} : vector<2x96xf32> to vector<2x32xf32>
    %274 = arith.addf %273, %63 : vector<2x32xf32>
    %275 = arith.mulf %271, %274 : vector<2x32xf32>
    %276 = arith.addf %260, %275 : vector<2x32xf32>
    %277 = math.tanh %276 : vector<2x32xf32>
    %cst_86 = arith.constant 1.000000e+00 : f32
    %278 = vector.broadcast %cst_86 : f32 to vector<2x32xf32>
    %279 = arith.subf %278, %272 : vector<2x32xf32>
    %280 = arith.mulf %279, %277 : vector<2x32xf32>
    %281 = arith.mulf %272, %256 : vector<2x32xf32>
    %282 = arith.addf %280, %281 : vector<2x32xf32>
    %283 = vector.extract_strided_slice %44 {offsets = [2, 0], sizes = [2, 64], strides = [1, 1]} : vector<16x64xf32> to vector<2x64xf32>
    %284 = arith.addf %283, %51 : vector<2x64xf32>
    %285 = vector.extract_strided_slice %45 {offsets = [2, 0], sizes = [2, 32], strides = [1, 1]} : vector<16x32xf32> to vector<2x32xf32>
    %286 = arith.addf %285, %55 : vector<2x32xf32>
    %cst_87 = arith.constant dense<0.000000e+00> : vector<2x96xf32>
    %287 = tpu.matmul %282, %57, %cst_87 {dimension_numbers = #tpu.dot_dimension_numbers<[1], [0], [0], [1], [0, 0, 1, 1], [], []>} : vector<2x32xf32>, vector<32x96xf32>, vector<2x96xf32> -> vector<2x96xf32>
    %288 = vector.extract_strided_slice %287 {offsets = [0, 0], sizes = [2, 64], strides = [1, 1]} : vector<2x96xf32> to vector<2x64xf32>
    %289 = arith.addf %284, %288 : vector<2x64xf32>
    %cst_88 = arith.constant 5.000000e-01 : f32
    %290 = vector.broadcast %cst_88 : f32 to vector<2x64xf32>
    %291 = arith.mulf %290, %289 : vector<2x64xf32>
    %292 = math.tanh %291 : vector<2x64xf32>
    %cst_89 = arith.constant 5.000000e-01 : f32
    %293 = vector.broadcast %cst_89 : f32 to vector<2x64xf32>
    %294 = arith.mulf %293, %292 : vector<2x64xf32>
    %cst_90 = arith.constant 5.000000e-01 : f32
    %295 = vector.broadcast %cst_90 : f32 to vector<2x64xf32>
    %296 = arith.addf %294, %295 : vector<2x64xf32>
    %297 = vector.extract_strided_slice %296 {offsets = [0, 0], sizes = [2, 32], strides = [1, 1]} : vector<2x64xf32> to vector<2x32xf32>
    %298 = vector.extract_strided_slice %296 {offsets = [0, 32], sizes = [2, 32], strides = [1, 1]} : vector<2x64xf32> to vector<2x32xf32>
    %299 = vector.extract_strided_slice %287 {offsets = [0, 64], sizes = [2, 32], strides = [1, 1]} : vector<2x96xf32> to vector<2x32xf32>
    %300 = arith.addf %299, %63 : vector<2x32xf32>
    %301 = arith.mulf %297, %300 : vector<2x32xf32>
    %302 = arith.addf %286, %301 : vector<2x32xf32>
    %303 = math.tanh %302 : vector<2x32xf32>
    %cst_91 = arith.constant 1.000000e+00 : f32
    %304 = vector.broadcast %cst_91 : f32 to vector<2x32xf32>
    %305 = arith.subf %304, %298 : vector<2x32xf32>
    %306 = arith.mulf %305, %303 : vector<2x32xf32>
    %307 = arith.mulf %298, %282 : vector<2x32xf32>
    %308 = arith.addf %306, %307 : vector<2x32xf32>
    %309 = vector.extract_strided_slice %44 {offsets = [4, 0], sizes = [2, 64], strides = [1, 1]} : vector<16x64xf32> to vector<2x64xf32>
    %310 = arith.addf %309, %51 : vector<2x64xf32>
    %311 = vector.extract_strided_slice %45 {offsets = [4, 0], sizes = [2, 32], strides = [1, 1]} : vector<16x32xf32> to vector<2x32xf32>
    %312 = arith.addf %311, %55 : vector<2x32xf32>
    %cst_92 = arith.constant dense<0.000000e+00> : vector<2x96xf32>
    %313 = tpu.matmul %308, %57, %cst_92 {dimension_numbers = #tpu.dot_dimension_numbers<[1], [0], [0], [1], [0, 0, 1, 1], [], []>} : vector<2x32xf32>, vector<32x96xf32>, vector<2x96xf32> -> vector<2x96xf32>
    %314 = vector.extract_strided_slice %313 {offsets = [0, 0], sizes = [2, 64], strides = [1, 1]} : vector<2x96xf32> to vector<2x64xf32>
    %315 = arith.addf %310, %314 : vector<2x64xf32>
    %cst_93 = arith.constant 5.000000e-01 : f32
    %316 = vector.broadcast %cst_93 : f32 to vector<2x64xf32>
    %317 = arith.mulf %316, %315 : vector<2x64xf32>
    %318 = math.tanh %317 : vector<2x64xf32>
    %cst_94 = arith.constant 5.000000e-01 : f32
    %319 = vector.broadcast %cst_94 : f32 to vector<2x64xf32>
    %320 = arith.mulf %319, %318 : vector<2x64xf32>
    %cst_95 = arith.constant 5.000000e-01 : f32
    %321 = vector.broadcast %cst_95 : f32 to vector<2x64xf32>
    %322 = arith.addf %320, %321 : vector<2x64xf32>
    %323 = vector.extract_strided_slice %322 {offsets = [0, 0], sizes = [2, 32], strides = [1, 1]} : vector<2x64xf32> to vector<2x32xf32>
    %324 = vector.extract_strided_slice %322 {offsets = [0, 32], sizes = [2, 32], strides = [1, 1]} : vector<2x64xf32> to vector<2x32xf32>
    %325 = vector.extract_strided_slice %313 {offsets = [0, 64], sizes = [2, 32], strides = [1, 1]} : vector<2x96xf32> to vector<2x32xf32>
    %326 = arith.addf %325, %63 : vector<2x32xf32>
    %327 = arith.mulf %323, %326 : vector<2x32xf32>
    %328 = arith.addf %312, %327 : vector<2x32xf32>
    %329 = math.tanh %328 : vector<2x32xf32>
    %cst_96 = arith.constant 1.000000e+00 : f32
    %330 = vector.broadcast %cst_96 : f32 to vector<2x32xf32>
    %331 = arith.subf %330, %324 : vector<2x32xf32>
    %332 = arith.mulf %331, %329 : vector<2x32xf32>
    %333 = arith.mulf %324, %308 : vector<2x32xf32>
    %334 = arith.addf %332, %333 : vector<2x32xf32>
    %335 = vector.extract_strided_slice %44 {offsets = [6, 0], sizes = [2, 64], strides = [1, 1]} : vector<16x64xf32> to vector<2x64xf32>
    %336 = arith.addf %335, %51 : vector<2x64xf32>
    %337 = vector.extract_strided_slice %45 {offsets = [6, 0], sizes = [2, 32], strides = [1, 1]} : vector<16x32xf32> to vector<2x32xf32>
    %338 = arith.addf %337, %55 : vector<2x32xf32>
    %cst_97 = arith.constant dense<0.000000e+00> : vector<2x96xf32>
    %339 = tpu.matmul %334, %57, %cst_97 {dimension_numbers = #tpu.dot_dimension_numbers<[1], [0], [0], [1], [0, 0, 1, 1], [], []>} : vector<2x32xf32>, vector<32x96xf32>, vector<2x96xf32> -> vector<2x96xf32>
    %340 = vector.extract_strided_slice %339 {offsets = [0, 0], sizes = [2, 64], strides = [1, 1]} : vector<2x96xf32> to vector<2x64xf32>
    %341 = arith.addf %336, %340 : vector<2x64xf32>
    %cst_98 = arith.constant 5.000000e-01 : f32
    %342 = vector.broadcast %cst_98 : f32 to vector<2x64xf32>
    %343 = arith.mulf %342, %341 : vector<2x64xf32>
    %344 = math.tanh %343 : vector<2x64xf32>
    %cst_99 = arith.constant 5.000000e-01 : f32
    %345 = vector.broadcast %cst_99 : f32 to vector<2x64xf32>
    %346 = arith.mulf %345, %344 : vector<2x64xf32>
    %cst_100 = arith.constant 5.000000e-01 : f32
    %347 = vector.broadcast %cst_100 : f32 to vector<2x64xf32>
    %348 = arith.addf %346, %347 : vector<2x64xf32>
    %349 = vector.extract_strided_slice %348 {offsets = [0, 0], sizes = [2, 32], strides = [1, 1]} : vector<2x64xf32> to vector<2x32xf32>
    %350 = vector.extract_strided_slice %348 {offsets = [0, 32], sizes = [2, 32], strides = [1, 1]} : vector<2x64xf32> to vector<2x32xf32>
    %351 = vector.extract_strided_slice %339 {offsets = [0, 64], sizes = [2, 32], strides = [1, 1]} : vector<2x96xf32> to vector<2x32xf32>
    %352 = arith.addf %351, %63 : vector<2x32xf32>
    %353 = arith.mulf %349, %352 : vector<2x32xf32>
    %354 = arith.addf %338, %353 : vector<2x32xf32>
    %355 = math.tanh %354 : vector<2x32xf32>
    %cst_101 = arith.constant 1.000000e+00 : f32
    %356 = vector.broadcast %cst_101 : f32 to vector<2x32xf32>
    %357 = arith.subf %356, %350 : vector<2x32xf32>
    %358 = arith.mulf %357, %355 : vector<2x32xf32>
    %359 = arith.mulf %350, %334 : vector<2x32xf32>
    %360 = arith.addf %358, %359 : vector<2x32xf32>
    %361 = vector.extract_strided_slice %44 {offsets = [8, 0], sizes = [2, 64], strides = [1, 1]} : vector<16x64xf32> to vector<2x64xf32>
    %362 = arith.addf %361, %51 : vector<2x64xf32>
    %363 = vector.extract_strided_slice %45 {offsets = [8, 0], sizes = [2, 32], strides = [1, 1]} : vector<16x32xf32> to vector<2x32xf32>
    %364 = arith.addf %363, %55 : vector<2x32xf32>
    %cst_102 = arith.constant dense<0.000000e+00> : vector<2x96xf32>
    %365 = tpu.matmul %360, %57, %cst_102 {dimension_numbers = #tpu.dot_dimension_numbers<[1], [0], [0], [1], [0, 0, 1, 1], [], []>} : vector<2x32xf32>, vector<32x96xf32>, vector<2x96xf32> -> vector<2x96xf32>
    %366 = vector.extract_strided_slice %365 {offsets = [0, 0], sizes = [2, 64], strides = [1, 1]} : vector<2x96xf32> to vector<2x64xf32>
    %367 = arith.addf %362, %366 : vector<2x64xf32>
    %cst_103 = arith.constant 5.000000e-01 : f32
    %368 = vector.broadcast %cst_103 : f32 to vector<2x64xf32>
    %369 = arith.mulf %368, %367 : vector<2x64xf32>
    %370 = math.tanh %369 : vector<2x64xf32>
    %cst_104 = arith.constant 5.000000e-01 : f32
    %371 = vector.broadcast %cst_104 : f32 to vector<2x64xf32>
    %372 = arith.mulf %371, %370 : vector<2x64xf32>
    %cst_105 = arith.constant 5.000000e-01 : f32
    %373 = vector.broadcast %cst_105 : f32 to vector<2x64xf32>
    %374 = arith.addf %372, %373 : vector<2x64xf32>
    %375 = vector.extract_strided_slice %374 {offsets = [0, 0], sizes = [2, 32], strides = [1, 1]} : vector<2x64xf32> to vector<2x32xf32>
    %376 = vector.extract_strided_slice %374 {offsets = [0, 32], sizes = [2, 32], strides = [1, 1]} : vector<2x64xf32> to vector<2x32xf32>
    %377 = vector.extract_strided_slice %365 {offsets = [0, 64], sizes = [2, 32], strides = [1, 1]} : vector<2x96xf32> to vector<2x32xf32>
    %378 = arith.addf %377, %63 : vector<2x32xf32>
    %379 = arith.mulf %375, %378 : vector<2x32xf32>
    %380 = arith.addf %364, %379 : vector<2x32xf32>
    %381 = math.tanh %380 : vector<2x32xf32>
    %cst_106 = arith.constant 1.000000e+00 : f32
    %382 = vector.broadcast %cst_106 : f32 to vector<2x32xf32>
    %383 = arith.subf %382, %376 : vector<2x32xf32>
    %384 = arith.mulf %383, %381 : vector<2x32xf32>
    %385 = arith.mulf %376, %360 : vector<2x32xf32>
    %386 = arith.addf %384, %385 : vector<2x32xf32>
    %387 = vector.extract_strided_slice %44 {offsets = [10, 0], sizes = [2, 64], strides = [1, 1]} : vector<16x64xf32> to vector<2x64xf32>
    %388 = arith.addf %387, %51 : vector<2x64xf32>
    %389 = vector.extract_strided_slice %45 {offsets = [10, 0], sizes = [2, 32], strides = [1, 1]} : vector<16x32xf32> to vector<2x32xf32>
    %390 = arith.addf %389, %55 : vector<2x32xf32>
    %cst_107 = arith.constant dense<0.000000e+00> : vector<2x96xf32>
    %391 = tpu.matmul %386, %57, %cst_107 {dimension_numbers = #tpu.dot_dimension_numbers<[1], [0], [0], [1], [0, 0, 1, 1], [], []>} : vector<2x32xf32>, vector<32x96xf32>, vector<2x96xf32> -> vector<2x96xf32>
    %392 = vector.extract_strided_slice %391 {offsets = [0, 0], sizes = [2, 64], strides = [1, 1]} : vector<2x96xf32> to vector<2x64xf32>
    %393 = arith.addf %388, %392 : vector<2x64xf32>
    %cst_108 = arith.constant 5.000000e-01 : f32
    %394 = vector.broadcast %cst_108 : f32 to vector<2x64xf32>
    %395 = arith.mulf %394, %393 : vector<2x64xf32>
    %396 = math.tanh %395 : vector<2x64xf32>
    %cst_109 = arith.constant 5.000000e-01 : f32
    %397 = vector.broadcast %cst_109 : f32 to vector<2x64xf32>
    %398 = arith.mulf %397, %396 : vector<2x64xf32>
    %cst_110 = arith.constant 5.000000e-01 : f32
    %399 = vector.broadcast %cst_110 : f32 to vector<2x64xf32>
    %400 = arith.addf %398, %399 : vector<2x64xf32>
    %401 = vector.extract_strided_slice %400 {offsets = [0, 0], sizes = [2, 32], strides = [1, 1]} : vector<2x64xf32> to vector<2x32xf32>
    %402 = vector.extract_strided_slice %400 {offsets = [0, 32], sizes = [2, 32], strides = [1, 1]} : vector<2x64xf32> to vector<2x32xf32>
    %403 = vector.extract_strided_slice %391 {offsets = [0, 64], sizes = [2, 32], strides = [1, 1]} : vector<2x96xf32> to vector<2x32xf32>
    %404 = arith.addf %403, %63 : vector<2x32xf32>
    %405 = arith.mulf %401, %404 : vector<2x32xf32>
    %406 = arith.addf %390, %405 : vector<2x32xf32>
    %407 = math.tanh %406 : vector<2x32xf32>
    %cst_111 = arith.constant 1.000000e+00 : f32
    %408 = vector.broadcast %cst_111 : f32 to vector<2x32xf32>
    %409 = arith.subf %408, %402 : vector<2x32xf32>
    %410 = arith.mulf %409, %407 : vector<2x32xf32>
    %411 = arith.mulf %402, %386 : vector<2x32xf32>
    %412 = arith.addf %410, %411 : vector<2x32xf32>
    %413 = vector.extract_strided_slice %44 {offsets = [12, 0], sizes = [2, 64], strides = [1, 1]} : vector<16x64xf32> to vector<2x64xf32>
    %414 = arith.addf %413, %51 : vector<2x64xf32>
    %415 = vector.extract_strided_slice %45 {offsets = [12, 0], sizes = [2, 32], strides = [1, 1]} : vector<16x32xf32> to vector<2x32xf32>
    %416 = arith.addf %415, %55 : vector<2x32xf32>
    %cst_112 = arith.constant dense<0.000000e+00> : vector<2x96xf32>
    %417 = tpu.matmul %412, %57, %cst_112 {dimension_numbers = #tpu.dot_dimension_numbers<[1], [0], [0], [1], [0, 0, 1, 1], [], []>} : vector<2x32xf32>, vector<32x96xf32>, vector<2x96xf32> -> vector<2x96xf32>
    %418 = vector.extract_strided_slice %417 {offsets = [0, 0], sizes = [2, 64], strides = [1, 1]} : vector<2x96xf32> to vector<2x64xf32>
    %419 = arith.addf %414, %418 : vector<2x64xf32>
    %cst_113 = arith.constant 5.000000e-01 : f32
    %420 = vector.broadcast %cst_113 : f32 to vector<2x64xf32>
    %421 = arith.mulf %420, %419 : vector<2x64xf32>
    %422 = math.tanh %421 : vector<2x64xf32>
    %cst_114 = arith.constant 5.000000e-01 : f32
    %423 = vector.broadcast %cst_114 : f32 to vector<2x64xf32>
    %424 = arith.mulf %423, %422 : vector<2x64xf32>
    %cst_115 = arith.constant 5.000000e-01 : f32
    %425 = vector.broadcast %cst_115 : f32 to vector<2x64xf32>
    %426 = arith.addf %424, %425 : vector<2x64xf32>
    %427 = vector.extract_strided_slice %426 {offsets = [0, 0], sizes = [2, 32], strides = [1, 1]} : vector<2x64xf32> to vector<2x32xf32>
    %428 = vector.extract_strided_slice %426 {offsets = [0, 32], sizes = [2, 32], strides = [1, 1]} : vector<2x64xf32> to vector<2x32xf32>
    %429 = vector.extract_strided_slice %417 {offsets = [0, 64], sizes = [2, 32], strides = [1, 1]} : vector<2x96xf32> to vector<2x32xf32>
    %430 = arith.addf %429, %63 : vector<2x32xf32>
    %431 = arith.mulf %427, %430 : vector<2x32xf32>
    %432 = arith.addf %416, %431 : vector<2x32xf32>
    %433 = math.tanh %432 : vector<2x32xf32>
    %cst_116 = arith.constant 1.000000e+00 : f32
    %434 = vector.broadcast %cst_116 : f32 to vector<2x32xf32>
    %435 = arith.subf %434, %428 : vector<2x32xf32>
    %436 = arith.mulf %435, %433 : vector<2x32xf32>
    %437 = arith.mulf %428, %412 : vector<2x32xf32>
    %438 = arith.addf %436, %437 : vector<2x32xf32>
    %439 = vector.extract_strided_slice %44 {offsets = [14, 0], sizes = [2, 64], strides = [1, 1]} : vector<16x64xf32> to vector<2x64xf32>
    %440 = arith.addf %439, %51 : vector<2x64xf32>
    %441 = vector.extract_strided_slice %45 {offsets = [14, 0], sizes = [2, 32], strides = [1, 1]} : vector<16x32xf32> to vector<2x32xf32>
    %442 = arith.addf %441, %55 : vector<2x32xf32>
    %cst_117 = arith.constant dense<0.000000e+00> : vector<2x96xf32>
    %443 = tpu.matmul %438, %57, %cst_117 {dimension_numbers = #tpu.dot_dimension_numbers<[1], [0], [0], [1], [0, 0, 1, 1], [], []>} : vector<2x32xf32>, vector<32x96xf32>, vector<2x96xf32> -> vector<2x96xf32>
    %444 = vector.extract_strided_slice %443 {offsets = [0, 0], sizes = [2, 64], strides = [1, 1]} : vector<2x96xf32> to vector<2x64xf32>
    %445 = arith.addf %440, %444 : vector<2x64xf32>
    %cst_118 = arith.constant 5.000000e-01 : f32
    %446 = vector.broadcast %cst_118 : f32 to vector<2x64xf32>
    %447 = arith.mulf %446, %445 : vector<2x64xf32>
    %448 = math.tanh %447 : vector<2x64xf32>
    %cst_119 = arith.constant 5.000000e-01 : f32
    %449 = vector.broadcast %cst_119 : f32 to vector<2x64xf32>
    %450 = arith.mulf %449, %448 : vector<2x64xf32>
    %cst_120 = arith.constant 5.000000e-01 : f32
    %451 = vector.broadcast %cst_120 : f32 to vector<2x64xf32>
    %452 = arith.addf %450, %451 : vector<2x64xf32>
    %453 = vector.extract_strided_slice %452 {offsets = [0, 0], sizes = [2, 32], strides = [1, 1]} : vector<2x64xf32> to vector<2x32xf32>
    %454 = vector.extract_strided_slice %452 {offsets = [0, 32], sizes = [2, 32], strides = [1, 1]} : vector<2x64xf32> to vector<2x32xf32>
    %455 = vector.extract_strided_slice %443 {offsets = [0, 64], sizes = [2, 32], strides = [1, 1]} : vector<2x96xf32> to vector<2x32xf32>
    %456 = arith.addf %455, %63 : vector<2x32xf32>
    %457 = arith.mulf %453, %456 : vector<2x32xf32>
    %458 = arith.addf %442, %457 : vector<2x32xf32>
    %459 = math.tanh %458 : vector<2x32xf32>
    %cst_121 = arith.constant 1.000000e+00 : f32
    %460 = vector.broadcast %cst_121 : f32 to vector<2x32xf32>
    %461 = arith.subf %460, %454 : vector<2x32xf32>
    %462 = arith.mulf %461, %459 : vector<2x32xf32>
    %463 = arith.mulf %454, %438 : vector<2x32xf32>
    %464 = arith.addf %462, %463 : vector<2x32xf32>
    %c0_122 = arith.constant 0 : index
    %c0_123 = arith.constant 0 : index
    %465 = vector.load %arg18[%c0_122, %c0_123] : memref<2x32xf32, #tpu.memory_space<vmem>>, vector<2x32xf32>
    tpu.vector_store %arg18[%c0_122, %c0_123], %464 {strides = array<i32>} : memref<2x32xf32, #tpu.memory_space<vmem>>, vector<2x32xf32>,
    %466 = vector.shape_cast %282 : vector<2x32xf32> to vector<2x1x32xf32>
    %467 = vector.shape_cast %308 : vector<2x32xf32> to vector<2x1x32xf32>
    %468 = vector.shape_cast %334 : vector<2x32xf32> to vector<2x1x32xf32>
    %469 = vector.shape_cast %360 : vector<2x32xf32> to vector<2x1x32xf32>
    %470 = vector.shape_cast %386 : vector<2x32xf32> to vector<2x1x32xf32>
    %471 = vector.shape_cast %412 : vector<2x32xf32> to vector<2x1x32xf32>
    %472 = vector.shape_cast %438 : vector<2x32xf32> to vector<2x1x32xf32>
    %473 = vector.shape_cast %464 : vector<2x32xf32> to vector<2x1x32xf32>
    %474 = tpu.concatenate %466, %467, %468, %469, %470, %471, %472, %473 in 1 : vector<2x1x32xf32>, vector<2x1x32xf32>, vector<2x1x32xf32>, vector<2x1x32xf32>, vector<2x1x32xf32>, vector<2x1x32xf32>, vector<2x1x32xf32>, vector<2x1x32xf32> -> vector<2x8x32xf32>
    %475 = vector.shape_cast %474 : vector<2x8x32xf32> to vector<16x32xf32>
    %c0_124 = arith.constant 0 : index
    %c0_125 = arith.constant 0 : index
    %476 = vector.load %arg15[%c0_124, %c0_125] : memref<32x1xf32, #tpu.memory_space<vmem>>, vector<32x1xf32>
    %cst_126 = arith.constant dense<0.000000e+00> : vector<16x1xf32>
    %477 = tpu.matmul %475, %476, %cst_126 {dimension_numbers = #tpu.dot_dimension_numbers<[1], [0], [0], [1], [0, 0, 1, 1], [], []>} : vector<16x32xf32>, vector<32x1xf32>, vector<16x1xf32> -> vector<16x1xf32>
    %c0_127 = arith.constant 0 : index
    %c0_128 = arith.constant 0 : index
    %478 = vector.load %arg16[%c0_127, %c0_128] : memref<1x1xf32, #tpu.memory_space<vmem>>, vector<1x1xf32>
    %479 = vector.broadcast %478 : vector<1x1xf32> to vector<16x1xf32>
    %480 = arith.addf %477, %479 : vector<16x1xf32>
    %481 = vector.shape_cast %480 : vector<16x1xf32> to vector<2x8xf32>
    %c0_129 = arith.constant 0 : index
    %c0_130 = arith.constant 0 : index
    %482 = vector.load %arg17[%c0_129, %c0_130] : memref<2x8xf32, #tpu.memory_space<vmem>>, vector<2x8xf32>
    tpu.vector_store %arg17[%c0_129, %c0_130], %481 {strides = array<i32>} : memref<2x8xf32, #tpu.memory_space<vmem>>, vector<2x8xf32>,
    return
  }
}

</mosaic_0001>

<llo_original>
// kernel: discriminator_forward.1
$region0: #{discriminator_forward.1}
  #allocation0 [shape = 'u32[]', space=smem, size = 0x4, offset = 0x4, fixed_abs, tag = 'smem constant byte address 0x4 - core index']
  #allocation1 [shape = 'u32[144,128]{1,0:T(1,128)}', space=vmem, size = 0x12000, scoped, tag = 'internal scratch']
  #allocation2 [shape = 'f32[1,1]{1,0:T(1,128)S(1)}', space=vmem, size = 0x200, scoped, tag = 'scoped memory for discriminator_forward.1']
  %s0 = inlined_call_operand.vmem [shape: s32[8,2], index: 0, kind: input, shape index: {}]
  %s1 = inlined_call_operand.vmem [shape: s32[8,2], index: 1, kind: input, shape index: {}]
  %s2 = inlined_call_operand.vmem [shape: s32[2,1], index: 2, kind: input, shape index: {}]
  %s3 = inlined_call_operand.vmem [shape: f32[16,32], index: 3, kind: input, shape index: {}]
  %s4 = inlined_call_operand.hbm [shape: f32[16,32], index: 4, kind: input, shape index: {}]
  %s5 = inlined_call_operand.vmem [shape: f32[4,4], index: 5, kind: input, shape index: {}]
  %s6 = inlined_call_operand.vmem [shape: f32[32,96], index: 6, kind: input, shape index: {}]
  %s7 = inlined_call_operand.vmem [shape: f32[32,96], index: 7, kind: input, shape index: {}]
  %s8 = inlined_call_operand.vmem [shape: f32[1,96], index: 8, kind: input, shape index: {}]
  %s9 = inlined_call_operand.vmem [shape: f32[1,96], index: 9, kind: input, shape index: {}]
  %s10 = inlined_call_operand.vmem [shape: f32[32,96], index: 10, kind: input, shape index: {}]
  %s11 = inlined_call_operand.vmem [shape: f32[4,96], index: 11, kind: input, shape index: {}]
  %s12 = inlined_call_operand.vmem [shape: f32[32,96], index: 12, kind: input, shape index: {}]
  %s13 = inlined_call_operand.hbm [shape: f32[1,96], index: 13, kind: input, shape index: {}]
  %s14 = inlined_call_operand.hbm [shape: f32[1,96], index: 14, kind: input, shape index: {}]
  %s15 = inlined_call_operand.vmem [shape: f32[32,1], index: 15, kind: input, shape index: {}]
  %s16 = inlined_call_operand.<no memory space> [shape: f32[1,1], index: 16, kind: input, shape index: {}]
  %s17 = inlined_call_operand.hbm [shape: f32[2,8], index: 17, kind: output, shape index: {0}]
  %s18 = inlined_call_operand.hbm [shape: f32[2,32], index: 18, kind: output, shape index: {1}]
  %19 = xla_tuple %s17, %s18
  %s20 = sld [smem:[#allocation0]]
  $region98: #{discriminator_forward.1} parent=0
    _
  %s22 = ssub.s32 1, %s20
  %s23 = scalar_select 0, %s22, %s20
  %v24 = vstv %s16
  %25 = vst [vmem:[#allocation2] sm:$0x1] %v24
  $region1: #{discriminator_forward.1} parent=0
    #allocation3 [shape = 'u8[8192]{0}', space=vmem, size = 0x2000, scoped, tag = 'input window, operand 4, single buffered']
    #allocation4 [shape = 's32[1]{0}', space=sflag, size = 0x4, scoped, tag = 'scoped memory for discriminator_forward.1']
    #allocation5 [shape = 's32[1]{0}', space=sflag, size = 0x4, scoped, tag = 'scoped memory for discriminator_forward.1']
    #allocation6 [shape = 'u8[512]{0}', space=vmem, size = 0x400, scoped, tag = 'input window, operand 13, single buffered']
    #allocation7 [shape = 's32[1]{0}', space=sflag, size = 0x4, scoped, tag = 'scoped memory for discriminator_forward.1']
    #allocation8 [shape = 'u8[512]{0}', space=vmem, size = 0x400, scoped, tag = 'input window, operand 14, single buffered']
    #allocation9 [shape = 'u8[1024]{0}', space=vmem, size = 0x400, scoped, tag = 'output window, operand 0, single buffered']
    #allocation10 [shape = 'u8[1024]{0}', space=vmem, size = 0x400, scoped, tag = 'output window, operand 1, single buffered']
    #allocation11 [shape = 's32[1]{0}', space=sflag, size = 0x4, scoped, tag = 'scoped memory for discriminator_forward.1']
    %26 = vsyncpa [#allocation4], 0
    %27 = vsyncpa [#allocation7], 0
    %28 = vsyncpa [#allocation5], 0
    %29 = vsyncpa [#allocation11], 0
    // Predicated region
    $region2: #{discriminator_forward.1} parent=1 // pred_check
      _
    $region3: #{discriminator_forward.1} parent=1 // pred_check_branch
      %31 = sbr.rel (0) target = $region5
    $region4: #{discriminator_forward.1} parent=1 // pred_region
      _
    $region5: #{discriminator_forward.1} parent=1 // pred_fallthru
      _
    // Predicated region
    $region6: #{discriminator_forward.1} parent=1 // pred_check
      _
    $region7: #{discriminator_forward.1} parent=1 // pred_check_branch
      %33 = sbr.rel (0) target = $region9
    $region8: #{discriminator_forward.1} parent=1 // pred_region
      _
    $region9: #{discriminator_forward.1} parent=1 // pred_fallthru
      _
    // Predicated region
    $region10: #{discriminator_forward.1} parent=1 // pred_check
      _
    $region11: #{discriminator_forward.1} parent=1 // pred_check_branch
      %35 = sbr.rel (0) target = $region13
    $region12: #{discriminator_forward.1} parent=1 // pred_region
      _
    $region13: #{discriminator_forward.1} parent=1 // pred_fallthru
      _
    // Predicated region
    $region14: #{discriminator_forward.1} parent=1 // pred_check
      _
    $region15: #{discriminator_forward.1} parent=1 // pred_check_branch
      %37 = sbr.rel (0) target = $region17
    $region16: #{discriminator_forward.1} parent=1 // pred_region
      _
    $region17: #{discriminator_forward.1} parent=1 // pred_fallthru
      _
    // Predicated region
    $region18: #{discriminator_forward.1} parent=1 // pred_check
      _
    $region19: #{discriminator_forward.1} parent=1 // pred_check_branch
      %39 = sbr.rel (0) target = $region21
    $region20: #{discriminator_forward.1} parent=1 // pred_region
      %s41 = ssub.s32 256, 256
      %42 = vsyncadd [#allocation4], %s41
      %s43 = sshll.u32 [#allocation3], 4
      %s44 = int_to_ptr.vmem [resolvable:$true] %s43
      %49 = dma.hbm_to_vmem [thread:$0]  %s4, 256, %s44, [#allocation4], 128, 128, 8
    $region21: #{discriminator_forward.1} parent=1 // pred_fallthru
      _
    // Predicated region
    $region22: #{discriminator_forward.1} parent=1 // pred_check
      _
    $region23: #{discriminator_forward.1} parent=1 // pred_check_branch
      %51 = sbr.rel (0) target = $region25
    $region24: #{discriminator_forward.1} parent=1 // pred_region
      _
    $region25: #{discriminator_forward.1} parent=1 // pred_fallthru
      _
    // Predicated region
    $region26: #{discriminator_forward.1} parent=1 // pred_check
      _
    $region27: #{discriminator_forward.1} parent=1 // pred_check_branch
      %53 = sbr.rel (0) target = $region29
    $region28: #{discriminator_forward.1} parent=1 // pred_region
      _
    $region29: #{discriminator_forward.1} parent=1 // pred_fallthru
      _
    // Predicated region
    $region30: #{discriminator_forward.1} parent=1 // pred_check
      _
    $region31: #{discriminator_forward.1} parent=1 // pred_check_branch
      %55 = sbr.rel (0) target = $region33
    $region32: #{discriminator_forward.1} parent=1 // pred_region
      _
    $region33: #{discriminator_forward.1} parent=1 // pred_fallthru
      _
    // Predicated region
    $region34: #{discriminator_forward.1} parent=1 // pred_check
      _
    $region35: #{discriminator_forward.1} parent=1 // pred_check_branch
      %57 = sbr.rel (0) target = $region37
    $region36: #{discriminator_forward.1} parent=1 // pred_region
      _
    $region37: #{discriminator_forward.1} parent=1 // pred_fallthru
      _
    // Predicated region
    $region38: #{discriminator_forward.1} parent=1 // pred_check
      _
    $region39: #{discriminator_forward.1} parent=1 // pred_check_branch
      %59 = sbr.rel (0) target = $region41
    $region40: #{discriminator_forward.1} parent=1 // pred_region
      _
    $region41: #{discriminator_forward.1} parent=1 // pred_fallthru
      _
    // Predicated region
    $region42: #{discriminator_forward.1} parent=1 // pred_check
      _
    $region43: #{discriminator_forward.1} parent=1 // pred_check_branch
      %61 = sbr.rel (0) target = $region45
    $region44: #{discriminator_forward.1} parent=1 // pred_region
      _
    $region45: #{discriminator_forward.1} parent=1 // pred_fallthru
      _
    // Predicated region
    $region46: #{discriminator_forward.1} parent=1 // pred_check
      _
    $region47: #{discriminator_forward.1} parent=1 // pred_check_branch
      %63 = sbr.rel (0) target = $region49
    $region48: #{discriminator_forward.1} parent=1 // pred_region
      _
    $region49: #{discriminator_forward.1} parent=1 // pred_fallthru
      _
    // Predicated region
    $region50: #{discriminator_forward.1} parent=1 // pred_check
      _
    $region51: #{discriminator_forward.1} parent=1 // pred_check_branch
      %65 = sbr.rel (0) target = $region53
    $region52: #{discriminator_forward.1} parent=1 // pred_region
      _
    $region53: #{discriminator_forward.1} parent=1 // pred_fallthru
      _
    // Predicated region
    $region54: #{discriminator_forward.1} parent=1 // pred_check
      _
    $region55: #{discriminator_forward.1} parent=1 // pred_check_branch
      %67 = sbr.rel (0) target = $region57
    $region56: #{discriminator_forward.1} parent=1 // pred_region
      %s69 = ssub.s32 16, 16
      %70 = vsyncadd [#allocation7], %s69
      %s72 = sshll.u32 [#allocation6], 4
      %s73 = int_to_ptr.vmem [resolvable:$true] %s72
      %75 = dma.hbm_to_vmem [thread:$0]  %s13, 16, %s73, [#allocation7]
    $region57: #{discriminator_forward.1} parent=1 // pred_fallthru
      _
    // Predicated region
    $region58: #{discriminator_forward.1} parent=1 // pred_check
      _
    $region59: #{discriminator_forward.1} parent=1 // pred_check_branch
      %77 = sbr.rel (0) target = $region61
    $region60: #{discriminator_forward.1} parent=1 // pred_region
      %s79 = ssub.s32 16, 16
      %80 = vsyncadd [#allocation7], %s79
      %s82 = sshll.u32 [#allocation8], 4
      %s83 = int_to_ptr.vmem [resolvable:$true] %s82
      %85 = dma.hbm_to_vmem [thread:$0]  %s14, 16, %s83, [#allocation7]
    $region61: #{discriminator_forward.1} parent=1 // pred_fallthru
      _
    // Predicated region
    $region62: #{discriminator_forward.1} parent=1 // pred_check
      _
    $region63: #{discriminator_forward.1} parent=1 // pred_check_branch
      %87 = sbr.rel (0) target = $region65
    $region64: #{discriminator_forward.1} parent=1 // pred_region
      _
    $region65: #{discriminator_forward.1} parent=1 // pred_fallthru
      _
    // Predicated region
    $region66: #{discriminator_forward.1} parent=1 // pred_check
      _
    $region67: #{discriminator_forward.1} parent=1 // pred_check_branch
      %89 = sbr.rel (0) target = $region69
    $region68: #{discriminator_forward.1} parent=1 // pred_region
      _
    $region69: #{discriminator_forward.1} parent=1 // pred_fallthru
      _
    // Predicated region
    $region70: #{discriminator_forward.1} parent=1 // pred_check
      _
    $region71: #{discriminator_forward.1} parent=1 // pred_check_branch
      %91 = sbr.rel (0) target = $region73
    $region72: #{discriminator_forward.1} parent=1 // pred_region
      %92 = dma.done [#allocation4], 256
    $region73: #{discriminator_forward.1} parent=1 // pred_fallthru
      _
    // Predicated region
    $region74: #{discriminator_forward.1} parent=1 // pred_check
      _
    $region75: #{discriminator_forward.1} parent=1 // pred_check_branch
      %94 = sbr.rel (0) target = $region77
    $region76: #{discriminator_forward.1} parent=1 // pred_region
      %95 = dma.done [#allocation7], 16
    $region77: #{discriminator_forward.1} parent=1 // pred_fallthru
      _
    // Predicated region
    $region78: #{discriminator_forward.1} parent=1 // pred_check
      _
    $region79: #{discriminator_forward.1} parent=1 // pred_check_branch
      %97 = sbr.rel (0) target = $region81
    $region80: #{discriminator_forward.1} parent=1 // pred_region
      %98 = dma.done [#allocation7], 16
    $region81: #{discriminator_forward.1} parent=1 // pred_fallthru
      _
    %v99 = vld [vmem:[%s0] sm:$0xff]
    %v100 = vlaneseq
    %v101 = vand.u32 %v100, 127
    %v102 = vlaneseq
    %v103 = vshrl.u32 %v102, 7
    %v104 = vsub.s32 0, %v103
    %v105 = vrot.slane %v99, %v104
    %107 = vbcast.lane.b32.xlu0 %v105, 256
    %v108 = vpop.permute.xlu0 %107
    %v109 = vlaneseq
    %v110 = vshrl.u32 %v109, 7
    %v111 = vsub.s32 1, %v110
    %v112 = vrot.slane %v99, %v111
    %114 = vbcast.lane.b32.xlu0 %v112, 256
    %v115 = vpop.permute.xlu0 %114
    %v116 = vlaneseq
    %v117 = vshrl.u32 %v116, 7
    %v118 = vsub.s32 2, %v117
    %v119 = vrot.slane %v99, %v118
    %121 = vbcast.lane.b32.xlu0 %v119, 256
    %v122 = vpop.permute.xlu0 %121
    %v123 = vlaneseq
    %v124 = vshrl.u32 %v123, 7
    %v125 = vsub.s32 3, %v124
    %v126 = vrot.slane %v99, %v125
    %128 = vbcast.lane.b32.xlu0 %v126, 256
    %v129 = vpop.permute.xlu0 %128
    %v130 = vlaneseq
    %v131 = vshrl.u32 %v130, 7
    %v132 = vsub.s32 4, %v131
    %v133 = vrot.slane %v99, %v132
    %135 = vbcast.lane.b32.xlu0 %v133, 256
    %v136 = vpop.permute.xlu0 %135
    %v137 = vlaneseq
    %v138 = vshrl.u32 %v137, 7
    %v139 = vsub.s32 5, %v138
    %v140 = vrot.slane %v99, %v139
    %142 = vbcast.lane.b32.xlu0 %v140, 256
    %v143 = vpop.permute.xlu0 %142
    %v144 = vlaneseq
    %v145 = vshrl.u32 %v144, 7
    %v146 = vsub.s32 6, %v145
    %v147 = vrot.slane %v99, %v146
    %149 = vbcast.lane.b32.xlu0 %v147, 256
    %v150 = vpop.permute.xlu0 %149
    %v151 = vlaneseq
    %v152 = vshrl.u32 %v151, 7
    %v153 = vsub.s32 7, %v152
    %v154 = vrot.slane %v99, %v153
    %156 = vbcast.lane.b32.xlu0 %v154, 256
    %v157 = vpop.permute.xlu0 %156
    %vm158 = vcmp.eq.s32.totalorder %v108, %v101
    %vm159 = vcmp.eq.s32.totalorder %v115, %v101
    %vm160 = vcmp.eq.s32.totalorder %v122, %v101
    %vm161 = vcmp.eq.s32.totalorder %v129, %v101
    %vm162 = vcmp.eq.s32.totalorder %v136, %v101
    %vm163 = vcmp.eq.s32.totalorder %v143, %v101
    %vm164 = vcmp.eq.s32.totalorder %v150, %v101
    %vm165 = vcmp.eq.s32.totalorder %v157, %v101
    %v166 = vsel %vm158, 1, 0
    %v167 = vsel %vm159, 1, 0
    %v168 = vsel %vm160, 1, 0
    %v169 = vsel %vm161, 1, 0
    %v170 = vsel %vm162, 1, 0
    %v171 = vsel %vm163, 1, 0
    %v172 = vsel %vm164, 1, 0
    %v173 = vsel %vm165, 1, 0
    %v174 = vcvt.s32.f32 %v166
    %v175 = vcvt.s32.f32 %v167
    %v176 = vcvt.s32.f32 %v168
    %v177 = vcvt.s32.f32 %v169
    %v178 = vcvt.s32.f32 %v170
    %v179 = vcvt.s32.f32 %v171
    %v180 = vcvt.s32.f32 %v172
    %v181 = vcvt.s32.f32 %v173
    %v182 = vld [vmem:[%s1] sm:$0xff]
    %v183 = vlaneseq
    %v184 = vshrl.u32 %v183, 7
    %v185 = vsub.s32 0, %v184
    %v186 = vrot.slane %v182, %v185
    %188 = vbcast.lane.b32.xlu0 %v186, 256
    %v189 = vpop.permute.xlu0 %188
    %v190 = vlaneseq
    %v191 = vshrl.u32 %v190, 7
    %v192 = vsub.s32 1, %v191
    %v193 = vrot.slane %v182, %v192
    %195 = vbcast.lane.b32.xlu0 %v193, 256
    %v196 = vpop.permute.xlu0 %195
    %v197 = vlaneseq
    %v198 = vshrl.u32 %v197, 7
    %v199 = vsub.s32 2, %v198
    %v200 = vrot.slane %v182, %v199
    %202 = vbcast.lane.b32.xlu0 %v200, 256
    %v203 = vpop.permute.xlu0 %202
    %v204 = vlaneseq
    %v205 = vshrl.u32 %v204, 7
    %v206 = vsub.s32 3, %v205
    %v207 = vrot.slane %v182, %v206
    %209 = vbcast.lane.b32.xlu0 %v207, 256
    %v210 = vpop.permute.xlu0 %209
    %v211 = vlaneseq
    %v212 = vshrl.u32 %v211, 7
    %v213 = vsub.s32 4, %v212
    %v214 = vrot.slane %v182, %v213
    %216 = vbcast.lane.b32.xlu0 %v214, 256
    %v217 = vpop.permute.xlu0 %216
    %v218 = vlaneseq
    %v219 = vshrl.u32 %v218, 7
    %v220 = vsub.s32 5, %v219
    %v221 = vrot.slane %v182, %v220
    %223 = vbcast.lane.b32.xlu0 %v221, 256
    %v224 = vpop.permute.xlu0 %223
    %v225 = vlaneseq
    %v226 = vshrl.u32 %v225, 7
    %v227 = vsub.s32 6, %v226
    %v228 = vrot.slane %v182, %v227
    %230 = vbcast.lane.b32.xlu0 %v228, 256
    %v231 = vpop.permute.xlu0 %230
    %v232 = vlaneseq
    %v233 = vshrl.u32 %v232, 7
    %v234 = vsub.s32 7, %v233
    %v235 = vrot.slane %v182, %v234
    %237 = vbcast.lane.b32.xlu0 %v235, 256
    %v238 = vpop.permute.xlu0 %237
    %vm239 = vcmp.eq.s32.totalorder %v189, %v101
    %vm240 = vcmp.eq.s32.totalorder %v196, %v101
    %vm241 = vcmp.eq.s32.totalorder %v203, %v101
    %vm242 = vcmp.eq.s32.totalorder %v210, %v101
    %vm243 = vcmp.eq.s32.totalorder %v217, %v101
    %vm244 = vcmp.eq.s32.totalorder %v224, %v101
    %vm245 = vcmp.eq.s32.totalorder %v231, %v101
    %vm246 = vcmp.eq.s32.totalorder %v238, %v101
    %v247 = vsel %vm239, 1, 0
    %v248 = vsel %vm240, 1, 0
    %v249 = vsel %vm241, 1, 0
    %v250 = vsel %vm242, 1, 0
    %v251 = vsel %vm243, 1, 0
    %v252 = vsel %vm244, 1, 0
    %v253 = vsel %vm245, 1, 0
    %v254 = vsel %vm246, 1, 0
    %v255 = vcvt.s32.f32 %v247
    %v256 = vcvt.s32.f32 %v248
    %v257 = vcvt.s32.f32 %v249
    %v258 = vcvt.s32.f32 %v250
    %v259 = vcvt.s32.f32 %v251
    %v260 = vcvt.s32.f32 %v252
    %v261 = vcvt.s32.f32 %v253
    %v262 = vcvt.s32.f32 %v254
    %v263 = vld [vmem:[%s2] sm:$0x3]
    %264 = vset.pattern.permute.xlu0 0
    %265 = vperm.xlu0 %264, %v263
    %v266 = vpop.permute.xlu0 %265
    %vm267 = vcmp.eq.s32.totalorder %v266, %v101
    %v268 = vsel %vm267, 1, 0
    %v269 = vcvt.s32.f32 %v268
    %v270 = vld [vmem:[%s3] sm:$0xff]
    %v271 = vld [vmem:[%s3 + $0x8] sm:$0xff]
    %v280 = vcombine.low %v174, %v175
    %v281 = vcombine.low %v176, %v177
    %v283 = vunpack.c.l.s4 1983009808
    %v284 = vunpack.c.0.s8 %v283
    %v285 = vlaneseq
    %v286 = vshrl.u32 %v285, 7
    %v287 = vsub.s32 %v284, %v286
    %v288 = vrot.slane %v280, %v287
    %v290 = vunpack.c.l.s4 1983009808
    %v291 = vunpack.c.0.s8 %v290
    %v292 = vlaneseq
    %v293 = vshrl.u32 %v292, 7
    %v294 = vsub.s32 %v291, %v293
    %v295 = vrot.slane %v281, %v294
    %v296 = vcombine.low %v288, %v295
    %v297 = vcombine.low %v178, %v179
    %v298 = vcombine.low %v180, %v181
    %v300 = vunpack.c.l.s4 1983009808
    %v301 = vunpack.c.0.s8 %v300
    %v302 = vlaneseq
    %v303 = vshrl.u32 %v302, 7
    %v304 = vsub.s32 %v301, %v303
    %v305 = vrot.slane %v297, %v304
    %v307 = vunpack.c.l.s4 1983009808
    %v308 = vunpack.c.0.s8 %v307
    %v309 = vlaneseq
    %v310 = vshrl.u32 %v309, 7
    %v311 = vsub.s32 %v308, %v310
    %v312 = vrot.slane %v298, %v311
    %v313 = vcombine.low %v305, %v312
    %vm314 = vcmask 130048
    %v315 = vsel %vm314, %v296, 0
    %v317 = vsel %vm314, %v313, 0
    %319 = vmatprep.subr.mxu0 0.0
    %320 = vmatpush1.msra.mxu0 %v270
    %321 = vmatprep.subr.mxu0 0.0
    %322 = vmatpush1.msra.mxu0 %v271
    %323 = vmatprep.subr.mxu0 0.0
    %324 = vmatpush1.msra.mxu0 0.0
    %325 = vmatprep.subr.mxu0 0.0
    %326 = vmatpush1.msra.mxu0 0.0
    %327 = vmatprep.subr.mxu0 0.0
    %328 = vmatpush1.msra.mxu0 0.0
    %329 = vmatprep.subr.mxu0 0.0
    %330 = vmatpush1.msra.mxu0 0.0
    %331 = vmatprep.subr.mxu0 0.0
    %332 = vmatpush1.msra.mxu0 0.0
    %333 = vmatprep.subr.mxu0 0.0
    %334 = vmatpush1.msra.mxu0 0.0
    %335 = vmatprep.subr.mxu0 0.0
    %336 = vmatpush1.msra.mxu0 0.0
    %337 = vmatprep.subr.mxu0 0.0
    %338 = vmatpush1.msra.mxu0 0.0
    %339 = vmatprep.subr.mxu0 0.0
    %340 = vmatpush1.msra.mxu0 0.0
    %341 = vmatprep.subr.mxu0 0.0
    %342 = vmatpush1.msra.mxu0 0.0
    %343 = vmatprep.subr.mxu0 0.0
    %344 = vmatpush1.msra.mxu0 0.0
    %345 = vmatprep.subr.mxu0 0.0
    %346 = vmatpush1.msra.mxu0 0.0
    %347 = vmatprep.subr.mxu0 0.0
    %348 = vmatpush1.msra.mxu0 0.0
    %349 = vmatprep.subr.mxu0 0.0
    %350 = vmatpush1.msra.mxu0 0.0
    %351 = vmatprep.subr.mxu0 0.0
    %352 = vmatpush1.msra.mxu0 0.0
    %353 = vmatprep.subr.mxu0 0.0
    %354 = vmatpush1.msra.mxu0 0.0
    %355 = vmatprep.subr.mxu0 0.0
    %356 = vmatpush1.msra.mxu0 0.0
    %357 = vmatprep.subr.mxu0 0.0
    %358 = vmatpush1.msra.mxu0 0.0
    %359 = vmatprep.subr.mxu0 0.0
    %360 = vmatpush1.msra.mxu0 0.0
    %361 = vmatprep.subr.mxu0 0.0
    %362 = vmatpush1.msra.mxu0 0.0
    %363 = vmatprep.subr.mxu0 0.0
    %364 = vmatpush1.msra.mxu0 0.0
    %365 = vmatprep.subr.mxu0 0.0
    %366 = vmatpush1.msra.mxu0 0.0
    %367 = vmatprep.subr.mxu0 0.0
    %368 = vmatpush1.msra.mxu0 0.0
    %369 = vmatprep.subr.mxu0 0.0
    %370 = vmatpush1.msra.mxu0 0.0
    %371 = vmatprep.subr.mxu0 0.0
    %372 = vmatpush1.msra.mxu0 0.0
    %373 = vmatprep.subr.mxu0 0.0
    %374 = vmatpush1.msra.mxu0 0.0
    %375 = vmatprep.subr.mxu0 0.0
    %376 = vmatpush1.msra.mxu0 0.0
    %377 = vmatprep.subr.mxu0 0.0
    %378 = vmatpush1.msra.mxu0 0.0
    %379 = vmatprep.subr.mxu0 0.0
    %380 = vmatpush1.msra.mxu0 0.0
    %381 = vmatprep.subr.mxu0 0.0
    %382 = vmatpush1.msra.mxu0 0.0
    %383 = vmatprep.mubr.f32.mxu0 0.0
    %384 = vmatmul.mubr.f32.gmra.mrb[0].mxu0 %v315
    %v385 = vpop.f32.mrb[0].mxu0
    %v386 = vadd.f32 0.0, %v385
    %v387 = vpop.f32.mrb[0].mxu0
    %388 = vmatprep.mubr.f32.mxu0 0.0
    %389 = vmatmul.mubr.f32.gmra.mrb[0].mxu0 %v317
    %v390 = vpop.f32.mrb[0].mxu0
    %v391 = vadd.f32 0.0, %v390
    %v392 = vpop.f32.mrb[0].mxu0
    %393 = vdwg.mxu0
    %v394 = vld [vmem:[%s6] sm:$0xff]
    %v395 = vld [vmem:[%s6 + $0x8] sm:$0xff]
    %v396 = vld [vmem:[%s6 + $0x10] sm:$0xff]
    %v397 = vld [vmem:[%s6 + $0x18] sm:$0xff]
    %vm398 = vcmask 261120
    %v400 = vsel %vm398, %v386, 0
    %v403 = vsel %vm398, %v391, 0
    %405 = vmatprep.subr.mxu0 0.0
    %406 = vmatpush1.msra.mxu0 %v394
    %407 = vmatprep.subr.mxu0 0.0
    %408 = vmatpush1.msra.mxu0 %v395
    %409 = vmatprep.subr.mxu0 0.0
    %410 = vmatpush1.msra.mxu0 %v396
    %411 = vmatprep.subr.mxu0 0.0
    %412 = vmatpush1.msra.mxu0 %v397
    %413 = vmatprep.subr.mxu0 0.0
    %414 = vmatpush1.msra.mxu0 0.0
    %415 = vmatprep.subr.mxu0 0.0
    %416 = vmatpush1.msra.mxu0 0.0
    %417 = vmatprep.subr.mxu0 0.0
    %418 = vmatpush1.msra.mxu0 0.0
    %419 = vmatprep.subr.mxu0 0.0
    %420 = vmatpush1.msra.mxu0 0.0
    %421 = vmatprep.subr.mxu0 0.0
    %422 = vmatpush1.msra.mxu0 0.0
    %423 = vmatprep.subr.mxu0 0.0
    %424 = vmatpush1.msra.mxu0 0.0
    %425 = vmatprep.subr.mxu0 0.0
    %426 = vmatpush1.msra.mxu0 0.0
    %427 = vmatprep.subr.mxu0 0.0
    %428 = vmatpush1.msra.mxu0 0.0
    %429 = vmatprep.subr.mxu0 0.0
    %430 = vmatpush1.msra.mxu0 0.0
    %431 = vmatprep.subr.mxu0 0.0
    %432 = vmatpush1.msra.mxu0 0.0
    %433 = vmatprep.subr.mxu0 0.0
    %434 = vmatpush1.msra.mxu0 0.0
    %435 = vmatprep.subr.mxu0 0.0
    %436 = vmatpush1.msra.mxu0 0.0
    %437 = vmatprep.subr.mxu0 0.0
    %438 = vmatpush1.msra.mxu0 0.0
    %439 = vmatprep.subr.mxu0 0.0
    %440 = vmatpush1.msra.mxu0 0.0
    %441 = vmatprep.subr.mxu0 0.0
    %442 = vmatpush1.msra.mxu0 0.0
    %443 = vmatprep.subr.mxu0 0.0
    %444 = vmatpush1.msra.mxu0 0.0
    %445 = vmatprep.subr.mxu0 0.0
    %446 = vmatpush1.msra.mxu0 0.0
    %447 = vmatprep.subr.mxu0 0.0
    %448 = vmatpush1.msra.mxu0 0.0
    %449 = vmatprep.subr.mxu0 0.0
    %450 = vmatpush1.msra.mxu0 0.0
    %451 = vmatprep.subr.mxu0 0.0
    %452 = vmatpush1.msra.mxu0 0.0
    %453 = vmatprep.subr.mxu0 0.0
    %454 = vmatpush1.msra.mxu0 0.0
    %455 = vmatprep.subr.mxu0 0.0
    %456 = vmatpush1.msra.mxu0 0.0
    %457 = vmatprep.subr.mxu0 0.0
    %458 = vmatpush1.msra.mxu0 0.0
    %459 = vmatprep.subr.mxu0 0.0
    %460 = vmatpush1.msra.mxu0 0.0
    %461 = vmatprep.subr.mxu0 0.0
    %462 = vmatpush1.msra.mxu0 0.0
    %463 = vmatprep.subr.mxu0 0.0
    %464 = vmatpush1.msra.mxu0 0.0
    %465 = vmatprep.subr.mxu0 0.0
    %466 = vmatpush1.msra.mxu0 0.0
    %467 = vmatprep.subr.mxu0 0.0
    %468 = vmatpush1.msra.mxu0 0.0
    %469 = vmatprep.mubr.f32.mxu0 0.0
    %470 = vmatmul.mubr.f32.gmra.mrb[0].mxu0 %v400
    %v471 = vpop.f32.mrb[0].mxu0
    %v472 = vadd.f32 0.0, %v471
    %v473 = vpop.f32.mrb[0].mxu0
    %474 = vmatprep.mubr.f32.mxu0 0.0
    %475 = vmatmul.mubr.f32.gmra.mrb[0].mxu0 %v403
    %v476 = vpop.f32.mrb[0].mxu0
    %v477 = vadd.f32 0.0, %v476
    %v478 = vpop.f32.mrb[0].mxu0
    %479 = vdwg.mxu0
    %v480 = vld [vmem:[#allocation3] sm:$0xff]
    %v481 = vld [vmem:[#allocation3 + $0x8] sm:$0xff]
    %v490 = vcombine.low %v255, %v256
    %v491 = vcombine.low %v257, %v258
    %v493 = vunpack.c.l.s4 1983009808
    %v494 = vunpack.c.0.s8 %v493
    %v495 = vlaneseq
    %v496 = vshrl.u32 %v495, 7
    %v497 = vsub.s32 %v494, %v496
    %v498 = vrot.slane %v490, %v497
    %v500 = vunpack.c.l.s4 1983009808
    %v501 = vunpack.c.0.s8 %v500
    %v502 = vlaneseq
    %v503 = vshrl.u32 %v502, 7
    %v504 = vsub.s32 %v501, %v503
    %v505 = vrot.slane %v491, %v504
    %v506 = vcombine.low %v498, %v505
    %v507 = vcombine.low %v259, %v260
    %v508 = vcombine.low %v261, %v262
    %v510 = vunpack.c.l.s4 1983009808
    %v511 = vunpack.c.0.s8 %v510
    %v512 = vlaneseq
    %v513 = vshrl.u32 %v512, 7
    %v514 = vsub.s32 %v511, %v513
    %v515 = vrot.slane %v507, %v514
    %v517 = vunpack.c.l.s4 1983009808
    %v518 = vunpack.c.0.s8 %v517
    %v519 = vlaneseq
    %v520 = vshrl.u32 %v519, 7
    %v521 = vsub.s32 %v518, %v520
    %v522 = vrot.slane %v508, %v521
    %v523 = vcombine.low %v515, %v522
    %v524 = vsel %vm314, %v506, 0
    %v526 = vsel %vm314, %v523, 0
    %528 = vmatprep.subr.mxu0 0.0
    %529 = vmatpush1.msra.mxu0 %v480
    %530 = vmatprep.subr.mxu0 0.0
    %531 = vmatpush1.msra.mxu0 %v481
    %532 = vmatprep.subr.mxu0 0.0
    %533 = vmatpush1.msra.mxu0 0.0
    %534 = vmatprep.subr.mxu0 0.0
    %535 = vmatpush1.msra.mxu0 0.0
    %536 = vmatprep.subr.mxu0 0.0
    %537 = vmatpush1.msra.mxu0 0.0
    %538 = vmatprep.subr.mxu0 0.0
    %539 = vmatpush1.msra.mxu0 0.0
    %540 = vmatprep.subr.mxu0 0.0
    %541 = vmatpush1.msra.mxu0 0.0
    %542 = vmatprep.subr.mxu0 0.0
    %543 = vmatpush1.msra.mxu0 0.0
    %544 = vmatprep.subr.mxu0 0.0
    %545 = vmatpush1.msra.mxu0 0.0
    %546 = vmatprep.subr.mxu0 0.0
    %547 = vmatpush1.msra.mxu0 0.0
    %548 = vmatprep.subr.mxu0 0.0
    %549 = vmatpush1.msra.mxu0 0.0
    %550 = vmatprep.subr.mxu0 0.0
    %551 = vmatpush1.msra.mxu0 0.0
    %552 = vmatprep.subr.mxu0 0.0
    %553 = vmatpush1.msra.mxu0 0.0
    %554 = vmatprep.subr.mxu0 0.0
    %555 = vmatpush1.msra.mxu0 0.0
    %556 = vmatprep.subr.mxu0 0.0
    %557 = vmatpush1.msra.mxu0 0.0
    %558 = vmatprep.subr.mxu0 0.0
    %559 = vmatpush1.msra.mxu0 0.0
    %560 = vmatprep.subr.mxu0 0.0
    %561 = vmatpush1.msra.mxu0 0.0
    %562 = vmatprep.subr.mxu0 0.0
    %563 = vmatpush1.msra.mxu0 0.0
    %564 = vmatprep.subr.mxu0 0.0
    %565 = vmatpush1.msra.mxu0 0.0
    %566 = vmatprep.subr.mxu0 0.0
    %567 = vmatpush1.msra.mxu0 0.0
    %568 = vmatprep.subr.mxu0 0.0
    %569 = vmatpush1.msra.mxu0 0.0
    %570 = vmatprep.subr.mxu0 0.0
    %571 = vmatpush1.msra.mxu0 0.0
    %572 = vmatprep.subr.mxu0 0.0
    %573 = vmatpush1.msra.mxu0 0.0
    %574 = vmatprep.subr.mxu0 0.0
    %575 = vmatpush1.msra.mxu0 0.0
    %576 = vmatprep.subr.mxu0 0.0
    %577 = vmatpush1.msra.mxu0 0.0
    %578 = vmatprep.subr.mxu0 0.0
    %579 = vmatpush1.msra.mxu0 0.0
    %580 = vmatprep.subr.mxu0 0.0
    %581 = vmatpush1.msra.mxu0 0.0
    %582 = vmatprep.subr.mxu0 0.0
    %583 = vmatpush1.msra.mxu0 0.0
    %584 = vmatprep.subr.mxu0 0.0
    %585 = vmatpush1.msra.mxu0 0.0
    %586 = vmatprep.subr.mxu0 0.0
    %587 = vmatpush1.msra.mxu0 0.0
    %588 = vmatprep.subr.mxu0 0.0
    %589 = vmatpush1.msra.mxu0 0.0
    %590 = vmatprep.subr.mxu0 0.0
    %591 = vmatpush1.msra.mxu0 0.0
    %592 = vmatprep.mubr.f32.mxu0 0.0
    %593 = vmatmul.mubr.f32.gmra.mrb[0].mxu0 %v524
    %v594 = vpop.f32.mrb[0].mxu0
    %v595 = vadd.f32 0.0, %v594
    %v596 = vpop.f32.mrb[0].mxu0
    %597 = vmatprep.mubr.f32.mxu0 0.0
    %598 = vmatmul.mubr.f32.gmra.mrb[0].mxu0 %v526
    %v599 = vpop.f32.mrb[0].mxu0
    %v600 = vadd.f32 0.0, %v599
    %v601 = vpop.f32.mrb[0].mxu0
    %602 = vdwg.mxu0
    %v603 = vld [vmem:[%s10] sm:$0xff]
    %v604 = vld [vmem:[%s10 + $0x8] sm:$0xff]
    %v605 = vld [vmem:[%s10 + $0x10] sm:$0xff]
    %v606 = vld [vmem:[%s10 + $0x18] sm:$0xff]
    %v608 = vsel %vm398, %v595, 0
    %v611 = vsel %vm398, %v600, 0
    %613 = vmatprep.subr.mxu0 0.0
    %614 = vmatpush1.msra.mxu0 %v603
    %615 = vmatprep.subr.mxu0 0.0
    %616 = vmatpush1.msra.mxu0 %v604
    %617 = vmatprep.subr.mxu0 0.0
    %618 = vmatpush1.msra.mxu0 %v605
    %619 = vmatprep.subr.mxu0 0.0
    %620 = vmatpush1.msra.mxu0 %v606
    %621 = vmatprep.subr.mxu0 0.0
    %622 = vmatpush1.msra.mxu0 0.0
    %623 = vmatprep.subr.mxu0 0.0
    %624 = vmatpush1.msra.mxu0 0.0
    %625 = vmatprep.subr.mxu0 0.0
    %626 = vmatpush1.msra.mxu0 0.0
    %627 = vmatprep.subr.mxu0 0.0
    %628 = vmatpush1.msra.mxu0 0.0
    %629 = vmatprep.subr.mxu0 0.0
    %630 = vmatpush1.msra.mxu0 0.0
    %631 = vmatprep.subr.mxu0 0.0
    %632 = vmatpush1.msra.mxu0 0.0
    %633 = vmatprep.subr.mxu0 0.0
    %634 = vmatpush1.msra.mxu0 0.0
    %635 = vmatprep.subr.mxu0 0.0
    %636 = vmatpush1.msra.mxu0 0.0
    %637 = vmatprep.subr.mxu0 0.0
    %638 = vmatpush1.msra.mxu0 0.0
    %639 = vmatprep.subr.mxu0 0.0
    %640 = vmatpush1.msra.mxu0 0.0
    %641 = vmatprep.subr.mxu0 0.0
    %642 = vmatpush1.msra.mxu0 0.0
    %643 = vmatprep.subr.mxu0 0.0
    %644 = vmatpush1.msra.mxu0 0.0
    %645 = vmatprep.subr.mxu0 0.0
    %646 = vmatpush1.msra.mxu0 0.0
    %647 = vmatprep.subr.mxu0 0.0
    %648 = vmatpush1.msra.mxu0 0.0
    %649 = vmatprep.subr.mxu0 0.0
    %650 = vmatpush1.msra.mxu0 0.0
    %651 = vmatprep.subr.mxu0 0.0
    %652 = vmatpush1.msra.mxu0 0.0
    %653 = vmatprep.subr.mxu0 0.0
    %654 = vmatpush1.msra.mxu0 0.0
    %655 = vmatprep.subr.mxu0 0.0
    %656 = vmatpush1.msra.mxu0 0.0
    %657 = vmatprep.subr.mxu0 0.0
    %658 = vmatpush1.msra.mxu0 0.0
    %659 = vmatprep.subr.mxu0 0.0
    %660 = vmatpush1.msra.mxu0 0.0
    %661 = vmatprep.subr.mxu0 0.0
    %662 = vmatpush1.msra.mxu0 0.0
    %663 = vmatprep.subr.mxu0 0.0
    %664 = vmatpush1.msra.mxu0 0.0
    %665 = vmatprep.subr.mxu0 0.0
    %666 = vmatpush1.msra.mxu0 0.0
    %667 = vmatprep.subr.mxu0 0.0
    %668 = vmatpush1.msra.mxu0 0.0
    %669 = vmatprep.subr.mxu0 0.0
    %670 = vmatpush1.msra.mxu0 0.0
    %671 = vmatprep.subr.mxu0 0.0
    %672 = vmatpush1.msra.mxu0 0.0
    %673 = vmatprep.subr.mxu0 0.0
    %674 = vmatpush1.msra.mxu0 0.0
    %675 = vmatprep.subr.mxu0 0.0
    %676 = vmatpush1.msra.mxu0 0.0
    %677 = vmatprep.mubr.f32.mxu0 0.0
    %678 = vmatmul.mubr.f32.gmra.mrb[0].mxu0 %v608
    %v679 = vpop.f32.mrb[0].mxu0
    %v680 = vadd.f32 0.0, %v679
    %v681 = vpop.f32.mrb[0].mxu0
    %682 = vmatprep.mubr.f32.mxu0 0.0
    %683 = vmatmul.mubr.f32.gmra.mrb[0].mxu0 %v611
    %v684 = vpop.f32.mrb[0].mxu0
    %v685 = vadd.f32 0.0, %v684
    %v686 = vpop.f32.mrb[0].mxu0
    %687 = vdwg.mxu0
    %v688 = vld [vmem:[%s5] sm:$0xf]
    %vm689 = vcmask 31744
    %v691 = vsel %vm689, %v269, 0
    %vm693 = vcmask 1043456
    %v695 = vsel %vm693, %v688, 0
    %697 = vmatprep.subr.mxu0 0.0
    %698 = vmatpush1.msra.mxu0 %v695
    %699 = vmatprep.subr.mxu0 0.0
    %700 = vmatpush1.msra.mxu0 0.0
    %701 = vmatprep.subr.mxu0 0.0
    %702 = vmatpush1.msra.mxu0 0.0
    %703 = vmatprep.subr.mxu0 0.0
    %704 = vmatpush1.msra.mxu0 0.0
    %705 = vmatprep.subr.mxu0 0.0
    %706 = vmatpush1.msra.mxu0 0.0
    %707 = vmatprep.subr.mxu0 0.0
    %708 = vmatpush1.msra.mxu0 0.0
    %709 = vmatprep.subr.mxu0 0.0
    %710 = vmatpush1.msra.mxu0 0.0
    %711 = vmatprep.subr.mxu0 0.0
    %712 = vmatpush1.msra.mxu0 0.0
    %713 = vmatprep.subr.mxu0 0.0
    %714 = vmatpush1.msra.mxu0 0.0
    %715 = vmatprep.subr.mxu0 0.0
    %716 = vmatpush1.msra.mxu0 0.0
    %717 = vmatprep.subr.mxu0 0.0
    %718 = vmatpush1.msra.mxu0 0.0
    %719 = vmatprep.subr.mxu0 0.0
    %720 = vmatpush1.msra.mxu0 0.0
    %721 = vmatprep.subr.mxu0 0.0
    %722 = vmatpush1.msra.mxu0 0.0
    %723 = vmatprep.subr.mxu0 0.0
    %724 = vmatpush1.msra.mxu0 0.0
    %725 = vmatprep.subr.mxu0 0.0
    %726 = vmatpush1.msra.mxu0 0.0
    %727 = vmatprep.subr.mxu0 0.0
    %728 = vmatpush1.msra.mxu0 0.0
    %729 = vmatprep.subr.mxu0 0.0
    %730 = vmatpush1.msra.mxu0 0.0
    %731 = vmatprep.subr.mxu0 0.0
    %732 = vmatpush1.msra.mxu0 0.0
    %733 = vmatprep.subr.mxu0 0.0
    %734 = vmatpush1.msra.mxu0 0.0
    %735 = vmatprep.subr.mxu0 0.0
    %736 = vmatpush1.msra.mxu0 0.0
    %737 = vmatprep.subr.mxu0 0.0
    %738 = vmatpush1.msra.mxu0 0.0
    %739 = vmatprep.subr.mxu0 0.0
    %740 = vmatpush1.msra.mxu0 0.0
    %741 = vmatprep.subr.mxu0 0.0
    %742 = vmatpush1.msra.mxu0 0.0
    %743 = vmatprep.subr.mxu0 0.0
    %744 = vmatpush1.msra.mxu0 0.0
    %745 = vmatprep.subr.mxu0 0.0
    %746 = vmatpush1.msra.mxu0 0.0
    %747 = vmatprep.subr.mxu0 0.0
    %748 = vmatpush1.msra.mxu0 0.0
    %749 = vmatprep.subr.mxu0 0.0
    %750 = vmatpush1.msra.mxu0 0.0
    %751 = vmatprep.subr.mxu0 0.0
    %752 = vmatpush1.msra.mxu0 0.0
    %753 = vmatprep.subr.mxu0 0.0
    %754 = vmatpush1.msra.mxu0 0.0
    %755 = vmatprep.subr.mxu0 0.0
    %756 = vmatpush1.msra.mxu0 0.0
    %757 = vmatprep.subr.mxu0 0.0
    %758 = vmatpush1.msra.mxu0 0.0
    %759 = vmatprep.subr.mxu0 0.0
    %760 = vmatpush1.msra.mxu0 0.0
    %761 = vmatprep.mubr.f32.mxu0 0.0
    %762 = vmatmul.mubr.f32.gmra.mrb[0].mxu0 %v691
    %v763 = vpop.f32.mrb[0].mxu0
    %v764 = vadd.f32 0.0, %v763
    %v765 = vpop.f32.mrb[0].mxu0
    %766 = vdwg.mxu0
    %v767 = vld [vmem:[%s11] sm:$0xf]
    %v769 = vsel %vm689, %v764, 0
    %v772 = vsel %vm693, %v767, 0
    %774 = vmatprep.subr.mxu0 0.0
    %775 = vmatpush1.msra.mxu0 %v772
    %776 = vmatprep.subr.mxu0 0.0
    %777 = vmatpush1.msra.mxu0 0.0
    %778 = vmatprep.subr.mxu0 0.0
    %779 = vmatpush1.msra.mxu0 0.0
    %780 = vmatprep.subr.mxu0 0.0
    %781 = vmatpush1.msra.mxu0 0.0
    %782 = vmatprep.subr.mxu0 0.0
    %783 = vmatpush1.msra.mxu0 0.0
    %784 = vmatprep.subr.mxu0 0.0
    %785 = vmatpush1.msra.mxu0 0.0
    %786 = vmatprep.subr.mxu0 0.0
    %787 = vmatpush1.msra.mxu0 0.0
    %788 = vmatprep.subr.mxu0 0.0
    %789 = vmatpush1.msra.mxu0 0.0
    %790 = vmatprep.subr.mxu0 0.0
    %791 = vmatpush1.msra.mxu0 0.0
    %792 = vmatprep.subr.mxu0 0.0
    %793 = vmatpush1.msra.mxu0 0.0
    %794 = vmatprep.subr.mxu0 0.0
    %795 = vmatpush1.msra.mxu0 0.0
    %796 = vmatprep.subr.mxu0 0.0
    %797 = vmatpush1.msra.mxu0 0.0
    %798 = vmatprep.subr.mxu0 0.0
    %799 = vmatpush1.msra.mxu0 0.0
    %800 = vmatprep.subr.mxu0 0.0
    %801 = vmatpush1.msra.mxu0 0.0
    %802 = vmatprep.subr.mxu0 0.0
    %803 = vmatpush1.msra.mxu0 0.0
    %804 = vmatprep.subr.mxu0 0.0
    %805 = vmatpush1.msra.mxu0 0.0
    %806 = vmatprep.subr.mxu0 0.0
    %807 = vmatpush1.msra.mxu0 0.0
    %808 = vmatprep.subr.mxu0 0.0
    %809 = vmatpush1.msra.mxu0 0.0
    %810 = vmatprep.subr.mxu0 0.0
    %811 = vmatpush1.msra.mxu0 0.0
    %812 = vmatprep.subr.mxu0 0.0
    %813 = vmatpush1.msra.mxu0 0.0
    %814 = vmatprep.subr.mxu0 0.0
    %815 = vmatpush1.msra.mxu0 0.0
    %816 = vmatprep.subr.mxu0 0.0
    %817 = vmatpush1.msra.mxu0 0.0
    %818 = vmatprep.subr.mxu0 0.0
    %819 = vmatpush1.msra.mxu0 0.0
    %820 = vmatprep.subr.mxu0 0.0
    %821 = vmatpush1.msra.mxu0 0.0
    %822 = vmatprep.subr.mxu0 0.0
    %823 = vmatpush1.msra.mxu0 0.0
    %824 = vmatprep.subr.mxu0 0.0
    %825 = vmatpush1.msra.mxu0 0.0
    %826 = vmatprep.subr.mxu0 0.0
    %827 = vmatpush1.msra.mxu0 0.0
    %828 = vmatprep.subr.mxu0 0.0
    %829 = vmatpush1.msra.mxu0 0.0
    %830 = vmatprep.subr.mxu0 0.0
    %831 = vmatpush1.msra.mxu0 0.0
    %832 = vmatprep.subr.mxu0 0.0
    %833 = vmatpush1.msra.mxu0 0.0
    %834 = vmatprep.subr.mxu0 0.0
    %835 = vmatpush1.msra.mxu0 0.0
    %836 = vmatprep.subr.mxu0 0.0
    %837 = vmatpush1.msra.mxu0 0.0
    %838 = vmatprep.mubr.f32.mxu0 0.0
    %839 = vmatmul.mubr.f32.gmra.mrb[0].mxu0 %v769
    %v840 = vpop.f32.mrb[0].mxu0
    %v841 = vadd.f32 0.0, %v840
    %v842 = vpop.f32.mrb[0].mxu0
    %843 = vdwg.mxu0
    %v844 = vld [vmem:[%s8] sm:$0x1]
    %v845 = vld [vmem:[%s9] sm:$0x1]
    %v846 = vadd.f32 %v844, %v845
    %v848 = vlaneseq
    %v849 = vshrl.u32 %v848, 7
    %v850 = vsub.s32 0, %v849
    %v851 = vrot.slane %v846, %v850
    %v853 = vadd.f32 %v472, %v851
    %v854 = vadd.f32 %v477, %v851
    %v856 = vlaneseq
    %v857 = vshrl.u32 %v856, 7
    %v858 = vsub.s32 0, %v857
    %v859 = vrot.slane %v844, %v858
    %v861 = vadd.f32 %v472, %v859
    %v862 = vadd.f32 %v477, %v859
    %v863 = vld [vmem:[#allocation6] sm:$0x1]
    %v864 = vld [vmem:[#allocation8] sm:$0x1]
    %v865 = vadd.f32 %v863, %v864
    %v867 = vlaneseq
    %v868 = vshrl.u32 %v867, 7
    %v869 = vsub.s32 0, %v868
    %v870 = vrot.slane %v865, %v869
    %v872 = vadd.f32 %v841, %v870
    %v874 = vlaneseq
    %v875 = vshrl.u32 %v874, 7
    %v876 = vsub.s32 0, %v875
    %v877 = vrot.slane %v863, %v876
    %v879 = vadd.f32 %v841, %v877
    %v880 = vld [vmem:[%s7] sm:$0xff]
    %v881 = vld [vmem:[%s7 + $0x8] sm:$0xff]
    %v882 = vld [vmem:[%s7 + $0x10] sm:$0xff]
    %v883 = vld [vmem:[%s7 + $0x18] sm:$0xff]
    %v884 = vld [vmem:[%s12] sm:$0xff]
    %v885 = vld [vmem:[%s12 + $0x8] sm:$0xff]
    %v886 = vld [vmem:[%s12 + $0x10] sm:$0xff]
    %v887 = vld [vmem:[%s12 + $0x18] sm:$0xff]
    %v889 = vlaneseq
    %v890 = vshrl.u32 %v889, 7
    %v891 = vsub.s32 0, %v890
    %v892 = vrot.slane %v845, %v891
    %v895 = vlaneseq
    %v896 = vshrl.u32 %v895, 7
    %v897 = vsub.s32 0, %v896
    %v898 = vrot.slane %v864, %v897
    %v901 = vsel %vm398, 0.0, 0
    %903 = vmatprep.subr.mxu0 0.0
    %904 = vmatpush1.msra.mxu0 %v880
    %905 = vmatprep.subr.mxu0 0.0
    %906 = vmatpush1.msra.mxu0 %v881
    %907 = vmatprep.subr.mxu0 0.0
    %908 = vmatpush1.msra.mxu0 %v882
    %909 = vmatprep.subr.mxu0 0.0
    %910 = vmatpush1.msra.mxu0 %v883
    %911 = vmatprep.subr.mxu0 0.0
    %912 = vmatpush1.msra.mxu0 0.0
    %913 = vmatprep.subr.mxu0 0.0
    %914 = vmatpush1.msra.mxu0 0.0
    %915 = vmatprep.subr.mxu0 0.0
    %916 = vmatpush1.msra.mxu0 0.0
    %917 = vmatprep.subr.mxu0 0.0
    %918 = vmatpush1.msra.mxu0 0.0
    %919 = vmatprep.subr.mxu0 0.0
    %920 = vmatpush1.msra.mxu0 0.0
    %921 = vmatprep.subr.mxu0 0.0
    %922 = vmatpush1.msra.mxu0 0.0
    %923 = vmatprep.subr.mxu0 0.0
    %924 = vmatpush1.msra.mxu0 0.0
    %925 = vmatprep.subr.mxu0 0.0
    %926 = vmatpush1.msra.mxu0 0.0
    %927 = vmatprep.subr.mxu0 0.0
    %928 = vmatpush1.msra.mxu0 0.0
    %929 = vmatprep.subr.mxu0 0.0
    %930 = vmatpush1.msra.mxu0 0.0
    %931 = vmatprep.subr.mxu0 0.0
    %932 = vmatpush1.msra.mxu0 0.0
    %933 = vmatprep.subr.mxu0 0.0
    %934 = vmatpush1.msra.mxu0 0.0
    %935 = vmatprep.subr.mxu0 0.0
    %936 = vmatpush1.msra.mxu0 0.0
    %937 = vmatprep.subr.mxu0 0.0
    %938 = vmatpush1.msra.mxu0 0.0
    %939 = vmatprep.subr.mxu0 0.0
    %940 = vmatpush1.msra.mxu0 0.0
    %941 = vmatprep.subr.mxu0 0.0
    %942 = vmatpush1.msra.mxu0 0.0
    %943 = vmatprep.subr.mxu0 0.0
    %944 = vmatpush1.msra.mxu0 0.0
    %945 = vmatprep.subr.mxu0 0.0
    %946 = vmatpush1.msra.mxu0 0.0
    %947 = vmatprep.subr.mxu0 0.0
    %948 = vmatpush1.msra.mxu0 0.0
    %949 = vmatprep.subr.mxu0 0.0
    %950 = vmatpush1.msra.mxu0 0.0
    %951 = vmatprep.subr.mxu0 0.0
    %952 = vmatpush1.msra.mxu0 0.0
    %953 = vmatprep.subr.mxu0 0.0
    %954 = vmatpush1.msra.mxu0 0.0
    %955 = vmatprep.subr.mxu0 0.0
    %956 = vmatpush1.msra.mxu0 0.0
    %957 = vmatprep.subr.mxu0 0.0
    %958 = vmatpush1.msra.mxu0 0.0
    %959 = vmatprep.subr.mxu0 0.0
    %960 = vmatpush1.msra.mxu0 0.0
    %961 = vmatprep.subr.mxu0 0.0
    %962 = vmatpush1.msra.mxu0 0.0
    %963 = vmatprep.subr.mxu0 0.0
    %964 = vmatpush1.msra.mxu0 0.0
    %965 = vmatprep.subr.mxu0 0.0
    %966 = vmatpush1.msra.mxu0 0.0
    %967 = vmatprep.mubr.f32.mxu0 0.0
    %968 = vmatmul.mubr.f32.gmra.mrb[0].mxu0 %v901
    %v969 = vpop.f32.mrb[0].mxu0
    %v970 = vadd.f32 0.0, %v969
    %v971 = vpop.f32.mrb[0].mxu0
    %972 = vdwg.mxu0
    %v973 = vadd.f32 %v853, %v970
    %v974 = vmul.f32 %v973, 0.5
    %v975 = vtanh.pop %v974
    %v976 = vmul.f32 %v975, 0.5
    %v977 = vadd.f32 %v976, 0.5
    %v978 = vadd.f32 %v970, %v892
    %980 = vrot.lane.b32.xlu0 %v978, 64
    %v981 = vpop.permute.xlu0 %980
    %v983 = vmul.f32 %v977, %v981
    %985 = vrot.lane.b32.xlu0 %v983, 64
    %v986 = vpop.permute.xlu0 %985
    %v988 = vadd.f32 %v861, %v986
    %v989 = vtanh.pop %v988
    %v990 = vsub.f32 1.0, %v977
    %992 = vrot.lane.b32.xlu0 %v989, 96
    %v993 = vpop.permute.xlu0 %992
    %v995 = vmul.f32 %v990, %v993
    %v996 = vmul.f32 %v977, 0.0
    %v997 = vadd.f32 %v995, %v996
    %999 = vrot.lane.b32.xlu0 %v997, 96
    %v1000 = vpop.permute.xlu0 %999
    %v1001 = vsel %vm398, %v1000, 0
    %1003 = vmatprep.subr.mxu0 0.0
    %1004 = vmatpush1.msra.mxu0 %v880
    %1005 = vmatprep.subr.mxu0 0.0
    %1006 = vmatpush1.msra.mxu0 %v881
    %1007 = vmatprep.subr.mxu0 0.0
    %1008 = vmatpush1.msra.mxu0 %v882
    %1009 = vmatprep.subr.mxu0 0.0
    %1010 = vmatpush1.msra.mxu0 %v883
    %1011 = vmatprep.subr.mxu0 0.0
    %1012 = vmatpush1.msra.mxu0 0.0
    %1013 = vmatprep.subr.mxu0 0.0
    %1014 = vmatpush1.msra.mxu0 0.0
    %1015 = vmatprep.subr.mxu0 0.0
    %1016 = vmatpush1.msra.mxu0 0.0
    %1017 = vmatprep.subr.mxu0 0.0
    %1018 = vmatpush1.msra.mxu0 0.0
    %1019 = vmatprep.subr.mxu0 0.0
    %1020 = vmatpush1.msra.mxu0 0.0
    %1021 = vmatprep.subr.mxu0 0.0
    %1022 = vmatpush1.msra.mxu0 0.0
    %1023 = vmatprep.subr.mxu0 0.0
    %1024 = vmatpush1.msra.mxu0 0.0
    %1025 = vmatprep.subr.mxu0 0.0
    %1026 = vmatpush1.msra.mxu0 0.0
    %1027 = vmatprep.subr.mxu0 0.0
    %1028 = vmatpush1.msra.mxu0 0.0
    %1029 = vmatprep.subr.mxu0 0.0
    %1030 = vmatpush1.msra.mxu0 0.0
    %1031 = vmatprep.subr.mxu0 0.0
    %1032 = vmatpush1.msra.mxu0 0.0
    %1033 = vmatprep.subr.mxu0 0.0
    %1034 = vmatpush1.msra.mxu0 0.0
    %1035 = vmatprep.subr.mxu0 0.0
    %1036 = vmatpush1.msra.mxu0 0.0
    %1037 = vmatprep.subr.mxu0 0.0
    %1038 = vmatpush1.msra.mxu0 0.0
    %1039 = vmatprep.subr.mxu0 0.0
    %1040 = vmatpush1.msra.mxu0 0.0
    %1041 = vmatprep.subr.mxu0 0.0
    %1042 = vmatpush1.msra.mxu0 0.0
    %1043 = vmatprep.subr.mxu0 0.0
    %1044 = vmatpush1.msra.mxu0 0.0
    %1045 = vmatprep.subr.mxu0 0.0
    %1046 = vmatpush1.msra.mxu0 0.0
    %1047 = vmatprep.subr.mxu0 0.0
    %1048 = vmatpush1.msra.mxu0 0.0
    %1049 = vmatprep.subr.mxu0 0.0
    %1050 = vmatpush1.msra.mxu0 0.0
    %1051 = vmatprep.subr.mxu0 0.0
    %1052 = vmatpush1.msra.mxu0 0.0
    %1053 = vmatprep.subr.mxu0 0.0
    %1054 = vmatpush1.msra.mxu0 0.0
    %1055 = vmatprep.subr.mxu0 0.0
    %1056 = vmatpush1.msra.mxu0 0.0
    %1057 = vmatprep.subr.mxu0 0.0
    %1058 = vmatpush1.msra.mxu0 0.0
    %1059 = vmatprep.subr.mxu0 0.0
    %1060 = vmatpush1.msra.mxu0 0.0
    %1061 = vmatprep.subr.mxu0 0.0
    %1062 = vmatpush1.msra.mxu0 0.0
    %1063 = vmatprep.subr.mxu0 0.0
    %1064 = vmatpush1.msra.mxu0 0.0
    %1065 = vmatprep.subr.mxu0 0.0
    %1066 = vmatpush1.msra.mxu0 0.0
    %1067 = vmatprep.mubr.f32.mxu0 0.0
    %1068 = vmatmul.mubr.f32.gmra.mrb[0].mxu0 %v1001
    %v1069 = vpop.f32.mrb[0].mxu0
    %v1070 = vadd.f32 0.0, %v1069
    %v1071 = vpop.f32.mrb[0].mxu0
    %1072 = vdwg.mxu0
    %v1074 = vrot.slane %v1070, 6
    %v1076 = vadd.f32 %v853, %v1074
    %v1077 = vmul.f32 %v1076, 0.5
    %v1078 = vtanh.pop %v1077
    %v1079 = vmul.f32 %v1078, 0.5
    %v1080 = vadd.f32 %v1079, 0.5
    %v1081 = vadd.f32 %v1070, %v892
    %v1083 = vrot.slane %v1081, 6
    %1084 = vrot.lane.b32.xlu0 %v1083, 64
    %v1085 = vpop.permute.xlu0 %1084
    %v1087 = vmul.f32 %v1080, %v1085
    %1089 = vrot.lane.b32.xlu0 %v1087, 64
    %v1090 = vpop.permute.xlu0 %1089
    %v1092 = vadd.f32 %v861, %v1090
    %v1093 = vtanh.pop %v1092
    %v1094 = vsub.f32 1.0, %v1080
    %1096 = vrot.lane.b32.xlu0 %v1093, 96
    %v1097 = vpop.permute.xlu0 %1096
    %v1099 = vmul.f32 %v1094, %v1097
    %v1100 = vrot.slane %v997, 6
    %v1102 = vmul.f32 %v1080, %v1100
    %v1103 = vadd.f32 %v1099, %v1102
    %v1105 = vrot.slane %v1103, 2
    %1106 = vrot.lane.b32.xlu0 %v1105, 96
    %v1107 = vpop.permute.xlu0 %1106
    %v1108 = vsel %vm398, %v1107, 0
    %1110 = vmatprep.subr.mxu0 0.0
    %1111 = vmatpush1.msra.mxu0 %v880
    %1112 = vmatprep.subr.mxu0 0.0
    %1113 = vmatpush1.msra.mxu0 %v881
    %1114 = vmatprep.subr.mxu0 0.0
    %1115 = vmatpush1.msra.mxu0 %v882
    %1116 = vmatprep.subr.mxu0 0.0
    %1117 = vmatpush1.msra.mxu0 %v883
    %1118 = vmatprep.subr.mxu0 0.0
    %1119 = vmatpush1.msra.mxu0 0.0
    %1120 = vmatprep.subr.mxu0 0.0
    %1121 = vmatpush1.msra.mxu0 0.0
    %1122 = vmatprep.subr.mxu0 0.0
    %1123 = vmatpush1.msra.mxu0 0.0
    %1124 = vmatprep.subr.mxu0 0.0
    %1125 = vmatpush1.msra.mxu0 0.0
    %1126 = vmatprep.subr.mxu0 0.0
    %1127 = vmatpush1.msra.mxu0 0.0
    %1128 = vmatprep.subr.mxu0 0.0
    %1129 = vmatpush1.msra.mxu0 0.0
    %1130 = vmatprep.subr.mxu0 0.0
    %1131 = vmatpush1.msra.mxu0 0.0
    %1132 = vmatprep.subr.mxu0 0.0
    %1133 = vmatpush1.msra.mxu0 0.0
    %1134 = vmatprep.subr.mxu0 0.0
    %1135 = vmatpush1.msra.mxu0 0.0
    %1136 = vmatprep.subr.mxu0 0.0
    %1137 = vmatpush1.msra.mxu0 0.0
    %1138 = vmatprep.subr.mxu0 0.0
    %1139 = vmatpush1.msra.mxu0 0.0
    %1140 = vmatprep.subr.mxu0 0.0
    %1141 = vmatpush1.msra.mxu0 0.0
    %1142 = vmatprep.subr.mxu0 0.0
    %1143 = vmatpush1.msra.mxu0 0.0
    %1144 = vmatprep.subr.mxu0 0.0
    %1145 = vmatpush1.msra.mxu0 0.0
    %1146 = vmatprep.subr.mxu0 0.0
    %1147 = vmatpush1.msra.mxu0 0.0
    %1148 = vmatprep.subr.mxu0 0.0
    %1149 = vmatpush1.msra.mxu0 0.0
    %1150 = vmatprep.subr.mxu0 0.0
    %1151 = vmatpush1.msra.mxu0 0.0
    %1152 = vmatprep.subr.mxu0 0.0
    %1153 = vmatpush1.msra.mxu0 0.0
    %1154 = vmatprep.subr.mxu0 0.0
    %1155 = vmatpush1.msra.mxu0 0.0
    %1156 = vmatprep.subr.mxu0 0.0
    %1157 = vmatpush1.msra.mxu0 0.0
    %1158 = vmatprep.subr.mxu0 0.0
    %1159 = vmatpush1.msra.mxu0 0.0
    %1160 = vmatprep.subr.mxu0 0.0
    %1161 = vmatpush1.msra.mxu0 0.0
    %1162 = vmatprep.subr.mxu0 0.0
    %1163 = vmatpush1.msra.mxu0 0.0
    %1164 = vmatprep.subr.mxu0 0.0
    %1165 = vmatpush1.msra.mxu0 0.0
    %1166 = vmatprep.subr.mxu0 0.0
    %1167 = vmatpush1.msra.mxu0 0.0
    %1168 = vmatprep.subr.mxu0 0.0
    %1169 = vmatpush1.msra.mxu0 0.0
    %1170 = vmatprep.subr.mxu0 0.0
    %1171 = vmatpush1.msra.mxu0 0.0
    %1172 = vmatprep.subr.mxu0 0.0
    %1173 = vmatpush1.msra.mxu0 0.0
    %1174 = vmatprep.mubr.f32.mxu0 0.0
    %1175 = vmatmul.mubr.f32.gmra.mrb[0].mxu0 %v1108
    %v1176 = vpop.f32.mrb[0].mxu0
    %v1177 = vadd.f32 0.0, %v1176
    %v1178 = vpop.f32.mrb[0].mxu0
    %1179 = vdwg.mxu0
    %v1181 = vrot.slane %v1177, 4
    %v1183 = vadd.f32 %v853, %v1181
    %v1184 = vmul.f32 %v1183, 0.5
    %v1185 = vtanh.pop %v1184
    %v1186 = vmul.f32 %v1185, 0.5
    %v1187 = vadd.f32 %v1186, 0.5
    %v1188 = vadd.f32 %v1177, %v892
    %v1190 = vrot.slane %v1188, 4
    %1191 = vrot.lane.b32.xlu0 %v1190, 64
    %v1192 = vpop.permute.xlu0 %1191
    %v1194 = vmul.f32 %v1187, %v1192
    %1196 = vrot.lane.b32.xlu0 %v1194, 64
    %v1197 = vpop.permute.xlu0 %1196
    %v1199 = vadd.f32 %v861, %v1197
    %v1200 = vtanh.pop %v1199
    %v1201 = vsub.f32 1.0, %v1187
    %1203 = vrot.lane.b32.xlu0 %v1200, 96
    %v1204 = vpop.permute.xlu0 %1203
    %v1206 = vmul.f32 %v1201, %v1204
    %v1207 = vrot.slane %v1103, 6
    %v1209 = vmul.f32 %v1187, %v1207
    %v1210 = vadd.f32 %v1206, %v1209
    %v1212 = vrot.slane %v1210, 4
    %1213 = vrot.lane.b32.xlu0 %v1212, 96
    %v1214 = vpop.permute.xlu0 %1213
    %v1215 = vsel %vm398, %v1214, 0
    %1217 = vmatprep.subr.mxu0 0.0
    %1218 = vmatpush1.msra.mxu0 %v880
    %1219 = vmatprep.subr.mxu0 0.0
    %1220 = vmatpush1.msra.mxu0 %v881
    %1221 = vmatprep.subr.mxu0 0.0
    %1222 = vmatpush1.msra.mxu0 %v882
    %1223 = vmatprep.subr.mxu0 0.0
    %1224 = vmatpush1.msra.mxu0 %v883
    %1225 = vmatprep.subr.mxu0 0.0
    %1226 = vmatpush1.msra.mxu0 0.0
    %1227 = vmatprep.subr.mxu0 0.0
    %1228 = vmatpush1.msra.mxu0 0.0
    %1229 = vmatprep.subr.mxu0 0.0
    %1230 = vmatpush1.msra.mxu0 0.0
    %1231 = vmatprep.subr.mxu0 0.0
    %1232 = vmatpush1.msra.mxu0 0.0
    %1233 = vmatprep.subr.mxu0 0.0
    %1234 = vmatpush1.msra.mxu0 0.0
    %1235 = vmatprep.subr.mxu0 0.0
    %1236 = vmatpush1.msra.mxu0 0.0
    %1237 = vmatprep.subr.mxu0 0.0
    %1238 = vmatpush1.msra.mxu0 0.0
    %1239 = vmatprep.subr.mxu0 0.0
    %1240 = vmatpush1.msra.mxu0 0.0
    %1241 = vmatprep.subr.mxu0 0.0
    %1242 = vmatpush1.msra.mxu0 0.0
    %1243 = vmatprep.subr.mxu0 0.0
    %1244 = vmatpush1.msra.mxu0 0.0
    %1245 = vmatprep.subr.mxu0 0.0
    %1246 = vmatpush1.msra.mxu0 0.0
    %1247 = vmatprep.subr.mxu0 0.0
    %1248 = vmatpush1.msra.mxu0 0.0
    %1249 = vmatprep.subr.mxu0 0.0
    %1250 = vmatpush1.msra.mxu0 0.0
    %1251 = vmatprep.subr.mxu0 0.0
    %1252 = vmatpush1.msra.mxu0 0.0
    %1253 = vmatprep.subr.mxu0 0.0
    %1254 = vmatpush1.msra.mxu0 0.0
    %1255 = vmatprep.subr.mxu0 0.0
    %1256 = vmatpush1.msra.mxu0 0.0
    %1257 = vmatprep.subr.mxu0 0.0
    %1258 = vmatpush1.msra.mxu0 0.0
    %1259 = vmatprep.subr.mxu0 0.0
    %1260 = vmatpush1.msra.mxu0 0.0
    %1261 = vmatprep.subr.mxu0 0.0
    %1262 = vmatpush1.msra.mxu0 0.0
    %1263 = vmatprep.subr.mxu0 0.0
    %1264 = vmatpush1.msra.mxu0 0.0
    %1265 = vmatprep.subr.mxu0 0.0
    %1266 = vmatpush1.msra.mxu0 0.0
    %1267 = vmatprep.subr.mxu0 0.0
    %1268 = vmatpush1.msra.mxu0 0.0
    %1269 = vmatprep.subr.mxu0 0.0
    %1270 = vmatpush1.msra.mxu0 0.0
    %1271 = vmatprep.subr.mxu0 0.0
    %1272 = vmatpush1.msra.mxu0 0.0
    %1273 = vmatprep.subr.mxu0 0.0
    %1274 = vmatpush1.msra.mxu0 0.0
    %1275 = vmatprep.subr.mxu0 0.0
    %1276 = vmatpush1.msra.mxu0 0.0
    %1277 = vmatprep.subr.mxu0 0.0
    %1278 = vmatpush1.msra.mxu0 0.0
    %1279 = vmatprep.subr.mxu0 0.0
    %1280 = vmatpush1.msra.mxu0 0.0
    %1281 = vmatprep.mubr.f32.mxu0 0.0
    %1282 = vmatmul.mubr.f32.gmra.mrb[0].mxu0 %v1215
    %v1283 = vpop.f32.mrb[0].mxu0
    %v1284 = vadd.f32 0.0, %v1283
    %v1285 = vpop.f32.mrb[0].mxu0
    %1286 = vdwg.mxu0
    %v1288 = vrot.slane %v1284, 2
    %v1290 = vadd.f32 %v853, %v1288
    %v1291 = vmul.f32 %v1290, 0.5
    %v1292 = vtanh.pop %v1291
    %v1293 = vmul.f32 %v1292, 0.5
    %v1294 = vadd.f32 %v1293, 0.5
    %v1295 = vadd.f32 %v1284, %v892
    %v1297 = vrot.slane %v1295, 2
    %1298 = vrot.lane.b32.xlu0 %v1297, 64
    %v1299 = vpop.permute.xlu0 %1298
    %v1301 = vmul.f32 %v1294, %v1299
    %1303 = vrot.lane.b32.xlu0 %v1301, 64
    %v1304 = vpop.permute.xlu0 %1303
    %v1306 = vadd.f32 %v861, %v1304
    %v1307 = vtanh.pop %v1306
    %v1308 = vsub.f32 1.0, %v1294
    %1310 = vrot.lane.b32.xlu0 %v1307, 96
    %v1311 = vpop.permute.xlu0 %1310
    %v1313 = vmul.f32 %v1308, %v1311
    %v1314 = vrot.slane %v1210, 6
    %v1316 = vmul.f32 %v1294, %v1314
    %v1317 = vadd.f32 %v1313, %v1316
    %v1319 = vrot.slane %v1317, 6
    %1320 = vrot.lane.b32.xlu0 %v1319, 96
    %v1321 = vpop.permute.xlu0 %1320
    %v1322 = vsel %vm398, %v1321, 0
    %1324 = vmatprep.subr.mxu0 0.0
    %1325 = vmatpush1.msra.mxu0 %v880
    %1326 = vmatprep.subr.mxu0 0.0
    %1327 = vmatpush1.msra.mxu0 %v881
    %1328 = vmatprep.subr.mxu0 0.0
    %1329 = vmatpush1.msra.mxu0 %v882
    %1330 = vmatprep.subr.mxu0 0.0
    %1331 = vmatpush1.msra.mxu0 %v883
    %1332 = vmatprep.subr.mxu0 0.0
    %1333 = vmatpush1.msra.mxu0 0.0
    %1334 = vmatprep.subr.mxu0 0.0
    %1335 = vmatpush1.msra.mxu0 0.0
    %1336 = vmatprep.subr.mxu0 0.0
    %1337 = vmatpush1.msra.mxu0 0.0
    %1338 = vmatprep.subr.mxu0 0.0
    %1339 = vmatpush1.msra.mxu0 0.0
    %1340 = vmatprep.subr.mxu0 0.0
    %1341 = vmatpush1.msra.mxu0 0.0
    %1342 = vmatprep.subr.mxu0 0.0
    %1343 = vmatpush1.msra.mxu0 0.0
    %1344 = vmatprep.subr.mxu0 0.0
    %1345 = vmatpush1.msra.mxu0 0.0
    %1346 = vmatprep.subr.mxu0 0.0
    %1347 = vmatpush1.msra.mxu0 0.0
    %1348 = vmatprep.subr.mxu0 0.0
    %1349 = vmatpush1.msra.mxu0 0.0
    %1350 = vmatprep.subr.mxu0 0.0
    %1351 = vmatpush1.msra.mxu0 0.0
    %1352 = vmatprep.subr.mxu0 0.0
    %1353 = vmatpush1.msra.mxu0 0.0
    %1354 = vmatprep.subr.mxu0 0.0
    %1355 = vmatpush1.msra.mxu0 0.0
    %1356 = vmatprep.subr.mxu0 0.0
    %1357 = vmatpush1.msra.mxu0 0.0
    %1358 = vmatprep.subr.mxu0 0.0
    %1359 = vmatpush1.msra.mxu0 0.0
    %1360 = vmatprep.subr.mxu0 0.0
    %1361 = vmatpush1.msra.mxu0 0.0
    %1362 = vmatprep.subr.mxu0 0.0
    %1363 = vmatpush1.msra.mxu0 0.0
    %1364 = vmatprep.subr.mxu0 0.0
    %1365 = vmatpush1.msra.mxu0 0.0
    %1366 = vmatprep.subr.mxu0 0.0
    %1367 = vmatpush1.msra.mxu0 0.0
    %1368 = vmatprep.subr.mxu0 0.0
    %1369 = vmatpush1.msra.mxu0 0.0
    %1370 = vmatprep.subr.mxu0 0.0
    %1371 = vmatpush1.msra.mxu0 0.0
    %1372 = vmatprep.subr.mxu0 0.0
    %1373 = vmatpush1.msra.mxu0 0.0
    %1374 = vmatprep.subr.mxu0 0.0
    %1375 = vmatpush1.msra.mxu0 0.0
    %1376 = vmatprep.subr.mxu0 0.0
    %1377 = vmatpush1.msra.mxu0 0.0
    %1378 = vmatprep.subr.mxu0 0.0
    %1379 = vmatpush1.msra.mxu0 0.0
    %1380 = vmatprep.subr.mxu0 0.0
    %1381 = vmatpush1.msra.mxu0 0.0
    %1382 = vmatprep.subr.mxu0 0.0
    %1383 = vmatpush1.msra.mxu0 0.0
    %1384 = vmatprep.subr.mxu0 0.0
    %1385 = vmatpush1.msra.mxu0 0.0
    %1386 = vmatprep.subr.mxu0 0.0
    %1387 = vmatpush1.msra.mxu0 0.0
    %1388 = vmatprep.mubr.f32.mxu0 0.0
    %1389 = vmatmul.mubr.f32.gmra.mrb[0].mxu0 %v1322
    %v1390 = vpop.f32.mrb[0].mxu0
    %v1391 = vadd.f32 0.0, %v1390
    %v1392 = vpop.f32.mrb[0].mxu0
    %1393 = vdwg.mxu0
    %v1394 = vadd.f32 %v854, %v1391
    %v1395 = vmul.f32 %v1394, 0.5
    %v1396 = vtanh.pop %v1395
    %v1397 = vmul.f32 %v1396, 0.5
    %v1398 = vadd.f32 %v1397, 0.5
    %v1399 = vadd.f32 %v1391, %v892
    %1401 = vrot.lane.b32.xlu0 %v1399, 64
    %v1402 = vpop.permute.xlu0 %1401
    %v1404 = vmul.f32 %v1398, %v1402
    %1406 = vrot.lane.b32.xlu0 %v1404, 64
    %v1407 = vpop.permute.xlu0 %1406
    %v1409 = vadd.f32 %v862, %v1407
    %v1410 = vtanh.pop %v1409
    %v1411 = vsub.f32 1.0, %v1398
    %1413 = vrot.lane.b32.xlu0 %v1410, 96
    %v1414 = vpop.permute.xlu0 %1413
    %v1416 = vmul.f32 %v1411, %v1414
    %v1418 = vmul.f32 %v1398, %v1319
    %v1419 = vadd.f32 %v1416, %v1418
    %1421 = vrot.lane.b32.xlu0 %v1419, 96
    %v1422 = vpop.permute.xlu0 %1421
    %v1423 = vsel %vm398, %v1422, 0
    %1425 = vmatprep.subr.mxu0 0.0
    %1426 = vmatpush1.msra.mxu0 %v880
    %1427 = vmatprep.subr.mxu0 0.0
    %1428 = vmatpush1.msra.mxu0 %v881
    %1429 = vmatprep.subr.mxu0 0.0
    %1430 = vmatpush1.msra.mxu0 %v882
    %1431 = vmatprep.subr.mxu0 0.0
    %1432 = vmatpush1.msra.mxu0 %v883
    %1433 = vmatprep.subr.mxu0 0.0
    %1434 = vmatpush1.msra.mxu0 0.0
    %1435 = vmatprep.subr.mxu0 0.0
    %1436 = vmatpush1.msra.mxu0 0.0
    %1437 = vmatprep.subr.mxu0 0.0
    %1438 = vmatpush1.msra.mxu0 0.0
    %1439 = vmatprep.subr.mxu0 0.0
    %1440 = vmatpush1.msra.mxu0 0.0
    %1441 = vmatprep.subr.mxu0 0.0
    %1442 = vmatpush1.msra.mxu0 0.0
    %1443 = vmatprep.subr.mxu0 0.0
    %1444 = vmatpush1.msra.mxu0 0.0
    %1445 = vmatprep.subr.mxu0 0.0
    %1446 = vmatpush1.msra.mxu0 0.0
    %1447 = vmatprep.subr.mxu0 0.0
    %1448 = vmatpush1.msra.mxu0 0.0
    %1449 = vmatprep.subr.mxu0 0.0
    %1450 = vmatpush1.msra.mxu0 0.0
    %1451 = vmatprep.subr.mxu0 0.0
    %1452 = vmatpush1.msra.mxu0 0.0
    %1453 = vmatprep.subr.mxu0 0.0
    %1454 = vmatpush1.msra.mxu0 0.0
    %1455 = vmatprep.subr.mxu0 0.0
    %1456 = vmatpush1.msra.mxu0 0.0
    %1457 = vmatprep.subr.mxu0 0.0
    %1458 = vmatpush1.msra.mxu0 0.0
    %1459 = vmatprep.subr.mxu0 0.0
    %1460 = vmatpush1.msra.mxu0 0.0
    %1461 = vmatprep.subr.mxu0 0.0
    %1462 = vmatpush1.msra.mxu0 0.0
    %1463 = vmatprep.subr.mxu0 0.0
    %1464 = vmatpush1.msra.mxu0 0.0
    %1465 = vmatprep.subr.mxu0 0.0
    %1466 = vmatpush1.msra.mxu0 0.0
    %1467 = vmatprep.subr.mxu0 0.0
    %1468 = vmatpush1.msra.mxu0 0.0
    %1469 = vmatprep.subr.mxu0 0.0
    %1470 = vmatpush1.msra.mxu0 0.0
    %1471 = vmatprep.subr.mxu0 0.0
    %1472 = vmatpush1.msra.mxu0 0.0
    %1473 = vmatprep.subr.mxu0 0.0
    %1474 = vmatpush1.msra.mxu0 0.0
    %1475 = vmatprep.subr.mxu0 0.0
    %1476 = vmatpush1.msra.mxu0 0.0
    %1477 = vmatprep.subr.mxu0 0.0
    %1478 = vmatpush1.msra.mxu0 0.0
    %1479 = vmatprep.subr.mxu0 0.0
    %1480 = vmatpush1.msra.mxu0 0.0
    %1481 = vmatprep.subr.mxu0 0.0
    %1482 = vmatpush1.msra.mxu0 0.0
    %1483 = vmatprep.subr.mxu0 0.0
    %1484 = vmatpush1.msra.mxu0 0.0
    %1485 = vmatprep.subr.mxu0 0.0
    %1486 = vmatpush1.msra.mxu0 0.0
    %1487 = vmatprep.subr.mxu0 0.0
    %1488 = vmatpush1.msra.mxu0 0.0
    %1489 = vmatprep.mubr.f32.mxu0 0.0
    %1490 = vmatmul.mubr.f32.gmra.mrb[0].mxu0 %v1423
    %v1491 = vpop.f32.mrb[0].mxu0
    %v1492 = vadd.f32 0.0, %v1491
    %v1493 = vpop.f32.mrb[0].mxu0
    %1494 = vdwg.mxu0
    %v1496 = vrot.slane %v1492, 6
    %v1498 = vadd.f32 %v854, %v1496
    %v1499 = vmul.f32 %v1498, 0.5
    %v1500 = vtanh.pop %v1499
    %v1501 = vmul.f32 %v1500, 0.5
    %v1502 = vadd.f32 %v1501, 0.5
    %v1503 = vadd.f32 %v1492, %v892
    %v1505 = vrot.slane %v1503, 6
    %1506 = vrot.lane.b32.xlu0 %v1505, 64
    %v1507 = vpop.permute.xlu0 %1506
    %v1509 = vmul.f32 %v1502, %v1507
    %1511 = vrot.lane.b32.xlu0 %v1509, 64
    %v1512 = vpop.permute.xlu0 %1511
    %v1514 = vadd.f32 %v862, %v1512
    %v1515 = vtanh.pop %v1514
    %v1516 = vsub.f32 1.0, %v1502
    %1518 = vrot.lane.b32.xlu0 %v1515, 96
    %v1519 = vpop.permute.xlu0 %1518
    %v1521 = vmul.f32 %v1516, %v1519
    %v1522 = vrot.slane %v1419, 6
    %v1524 = vmul.f32 %v1502, %v1522
    %v1525 = vadd.f32 %v1521, %v1524
    %v1527 = vrot.slane %v1525, 2
    %1528 = vrot.lane.b32.xlu0 %v1527, 96
    %v1529 = vpop.permute.xlu0 %1528
    %v1530 = vsel %vm398, %v1529, 0
    %1532 = vmatprep.subr.mxu0 0.0
    %1533 = vmatpush1.msra.mxu0 %v880
    %1534 = vmatprep.subr.mxu0 0.0
    %1535 = vmatpush1.msra.mxu0 %v881
    %1536 = vmatprep.subr.mxu0 0.0
    %1537 = vmatpush1.msra.mxu0 %v882
    %1538 = vmatprep.subr.mxu0 0.0
    %1539 = vmatpush1.msra.mxu0 %v883
    %1540 = vmatprep.subr.mxu0 0.0
    %1541 = vmatpush1.msra.mxu0 0.0
    %1542 = vmatprep.subr.mxu0 0.0
    %1543 = vmatpush1.msra.mxu0 0.0
    %1544 = vmatprep.subr.mxu0 0.0
    %1545 = vmatpush1.msra.mxu0 0.0
    %1546 = vmatprep.subr.mxu0 0.0
    %1547 = vmatpush1.msra.mxu0 0.0
    %1548 = vmatprep.subr.mxu0 0.0
    %1549 = vmatpush1.msra.mxu0 0.0
    %1550 = vmatprep.subr.mxu0 0.0
    %1551 = vmatpush1.msra.mxu0 0.0
    %1552 = vmatprep.subr.mxu0 0.0
    %1553 = vmatpush1.msra.mxu0 0.0
    %1554 = vmatprep.subr.mxu0 0.0
    %1555 = vmatpush1.msra.mxu0 0.0
    %1556 = vmatprep.subr.mxu0 0.0
    %1557 = vmatpush1.msra.mxu0 0.0
    %1558 = vmatprep.subr.mxu0 0.0
    %1559 = vmatpush1.msra.mxu0 0.0
    %1560 = vmatprep.subr.mxu0 0.0
    %1561 = vmatpush1.msra.mxu0 0.0
    %1562 = vmatprep.subr.mxu0 0.0
    %1563 = vmatpush1.msra.mxu0 0.0
    %1564 = vmatprep.subr.mxu0 0.0
    %1565 = vmatpush1.msra.mxu0 0.0
    %1566 = vmatprep.subr.mxu0 0.0
    %1567 = vmatpush1.msra.mxu0 0.0
    %1568 = vmatprep.subr.mxu0 0.0
    %1569 = vmatpush1.msra.mxu0 0.0
    %1570 = vmatprep.subr.mxu0 0.0
    %1571 = vmatpush1.msra.mxu0 0.0
    %1572 = vmatprep.subr.mxu0 0.0
    %1573 = vmatpush1.msra.mxu0 0.0
    %1574 = vmatprep.subr.mxu0 0.0
    %1575 = vmatpush1.msra.mxu0 0.0
    %1576 = vmatprep.subr.mxu0 0.0
    %1577 = vmatpush1.msra.mxu0 0.0
    %1578 = vmatprep.subr.mxu0 0.0
    %1579 = vmatpush1.msra.mxu0 0.0
    %1580 = vmatprep.subr.mxu0 0.0
    %1581 = vmatpush1.msra.mxu0 0.0
    %1582 = vmatprep.subr.mxu0 0.0
    %1583 = vmatpush1.msra.mxu0 0.0
    %1584 = vmatprep.subr.mxu0 0.0
    %1585 = vmatpush1.msra.mxu0 0.0
    %1586 = vmatprep.subr.mxu0 0.0
    %1587 = vmatpush1.msra.mxu0 0.0
    %1588 = vmatprep.subr.mxu0 0.0
    %1589 = vmatpush1.msra.mxu0 0.0
    %1590 = vmatprep.subr.mxu0 0.0
    %1591 = vmatpush1.msra.mxu0 0.0
    %1592 = vmatprep.subr.mxu0 0.0
    %1593 = vmatpush1.msra.mxu0 0.0
    %1594 = vmatprep.subr.mxu0 0.0
    %1595 = vmatpush1.msra.mxu0 0.0
    %1596 = vmatprep.mubr.f32.mxu0 0.0
    %1597 = vmatmul.mubr.f32.gmra.mrb[0].mxu0 %v1530
    %v1598 = vpop.f32.mrb[0].mxu0
    %v1599 = vadd.f32 0.0, %v1598
    %v1600 = vpop.f32.mrb[0].mxu0
    %1601 = vdwg.mxu0
    %v1603 = vrot.slane %v1599, 4
    %v1605 = vadd.f32 %v854, %v1603
    %v1606 = vmul.f32 %v1605, 0.5
    %v1607 = vtanh.pop %v1606
    %v1608 = vmul.f32 %v1607, 0.5
    %v1609 = vadd.f32 %v1608, 0.5
    %v1610 = vadd.f32 %v1599, %v892
    %v1612 = vrot.slane %v1610, 4
    %1613 = vrot.lane.b32.xlu0 %v1612, 64
    %v1614 = vpop.permute.xlu0 %1613
    %v1616 = vmul.f32 %v1609, %v1614
    %1618 = vrot.lane.b32.xlu0 %v1616, 64
    %v1619 = vpop.permute.xlu0 %1618
    %v1621 = vadd.f32 %v862, %v1619
    %v1622 = vtanh.pop %v1621
    %v1623 = vsub.f32 1.0, %v1609
    %1625 = vrot.lane.b32.xlu0 %v1622, 96
    %v1626 = vpop.permute.xlu0 %1625
    %v1628 = vmul.f32 %v1623, %v1626
    %v1629 = vrot.slane %v1525, 6
    %v1631 = vmul.f32 %v1609, %v1629
    %v1632 = vadd.f32 %v1628, %v1631
    %v1634 = vrot.slane %v1632, 4
    %1635 = vrot.lane.b32.xlu0 %v1634, 96
    %v1636 = vpop.permute.xlu0 %1635
    %v1637 = vsel %vm398, %v1636, 0
    %1639 = vmatprep.subr.mxu0 0.0
    %1640 = vmatpush1.msra.mxu0 %v880
    %1641 = vmatprep.subr.mxu0 0.0
    %1642 = vmatpush1.msra.mxu0 %v881
    %1643 = vmatprep.subr.mxu0 0.0
    %1644 = vmatpush1.msra.mxu0 %v882
    %1645 = vmatprep.subr.mxu0 0.0
    %1646 = vmatpush1.msra.mxu0 %v883
    %1647 = vmatprep.subr.mxu0 0.0
    %1648 = vmatpush1.msra.mxu0 0.0
    %1649 = vmatprep.subr.mxu0 0.0
    %1650 = vmatpush1.msra.mxu0 0.0
    %1651 = vmatprep.subr.mxu0 0.0
    %1652 = vmatpush1.msra.mxu0 0.0
    %1653 = vmatprep.subr.mxu0 0.0
    %1654 = vmatpush1.msra.mxu0 0.0
    %1655 = vmatprep.subr.mxu0 0.0
    %1656 = vmatpush1.msra.mxu0 0.0
    %1657 = vmatprep.subr.mxu0 0.0
    %1658 = vmatpush1.msra.mxu0 0.0
    %1659 = vmatprep.subr.mxu0 0.0
    %1660 = vmatpush1.msra.mxu0 0.0
    %1661 = vmatprep.subr.mxu0 0.0
    %1662 = vmatpush1.msra.mxu0 0.0
    %1663 = vmatprep.subr.mxu0 0.0
    %1664 = vmatpush1.msra.mxu0 0.0
    %1665 = vmatprep.subr.mxu0 0.0
    %1666 = vmatpush1.msra.mxu0 0.0
    %1667 = vmatprep.subr.mxu0 0.0
    %1668 = vmatpush1.msra.mxu0 0.0
    %1669 = vmatprep.subr.mxu0 0.0
    %1670 = vmatpush1.msra.mxu0 0.0
    %1671 = vmatprep.subr.mxu0 0.0
    %1672 = vmatpush1.msra.mxu0 0.0
    %1673 = vmatprep.subr.mxu0 0.0
    %1674 = vmatpush1.msra.mxu0 0.0
    %1675 = vmatprep.subr.mxu0 0.0
    %1676 = vmatpush1.msra.mxu0 0.0
    %1677 = vmatprep.subr.mxu0 0.0
    %1678 = vmatpush1.msra.mxu0 0.0
    %1679 = vmatprep.subr.mxu0 0.0
    %1680 = vmatpush1.msra.mxu0 0.0
    %1681 = vmatprep.subr.mxu0 0.0
    %1682 = vmatpush1.msra.mxu0 0.0
    %1683 = vmatprep.subr.mxu0 0.0
    %1684 = vmatpush1.msra.mxu0 0.0
    %1685 = vmatprep.subr.mxu0 0.0
    %1686 = vmatpush1.msra.mxu0 0.0
    %1687 = vmatprep.subr.mxu0 0.0
    %1688 = vmatpush1.msra.mxu0 0.0
    %1689 = vmatprep.subr.mxu0 0.0
    %1690 = vmatpush1.msra.mxu0 0.0
    %1691 = vmatprep.subr.mxu0 0.0
    %1692 = vmatpush1.msra.mxu0 0.0
    %1693 = vmatprep.subr.mxu0 0.0
    %1694 = vmatpush1.msra.mxu0 0.0
    %1695 = vmatprep.subr.mxu0 0.0
    %1696 = vmatpush1.msra.mxu0 0.0
    %1697 = vmatprep.subr.mxu0 0.0
    %1698 = vmatpush1.msra.mxu0 0.0
    %1699 = vmatprep.subr.mxu0 0.0
    %1700 = vmatpush1.msra.mxu0 0.0
    %1701 = vmatprep.subr.mxu0 0.0
    %1702 = vmatpush1.msra.mxu0 0.0
    %1703 = vmatprep.mubr.f32.mxu0 0.0
    %1704 = vmatmul.mubr.f32.gmra.mrb[0].mxu0 %v1637
    %v1705 = vpop.f32.mrb[0].mxu0
    %v1706 = vadd.f32 0.0, %v1705
    %v1707 = vpop.f32.mrb[0].mxu0
    %1708 = vdwg.mxu0
    %v1710 = vrot.slane %v1706, 2
    %v1712 = vadd.f32 %v854, %v1710
    %v1713 = vmul.f32 %v1712, 0.5
    %v1714 = vtanh.pop %v1713
    %v1715 = vmul.f32 %v1714, 0.5
    %v1716 = vadd.f32 %v1715, 0.5
    %v1717 = vadd.f32 %v1706, %v892
    %v1719 = vrot.slane %v1717, 2
    %1720 = vrot.lane.b32.xlu0 %v1719, 64
    %v1721 = vpop.permute.xlu0 %1720
    %v1723 = vmul.f32 %v1716, %v1721
    %1725 = vrot.lane.b32.xlu0 %v1723, 64
    %v1726 = vpop.permute.xlu0 %1725
    %v1728 = vadd.f32 %v862, %v1726
    %v1729 = vtanh.pop %v1728
    %v1730 = vsub.f32 1.0, %v1716
    %1732 = vrot.lane.b32.xlu0 %v1729, 96
    %v1733 = vpop.permute.xlu0 %1732
    %v1735 = vmul.f32 %v1730, %v1733
    %v1736 = vrot.slane %v1632, 6
    %v1738 = vmul.f32 %v1716, %v1736
    %v1739 = vadd.f32 %v1735, %v1738
    %v1740 = vadd.f32 %v680, %v872
    %v1741 = vadd.f32 %v680, %v879
    %v1743 = vrot.slane %v1739, 6
    %1744 = vrot.lane.b32.xlu0 %v1743, 96
    %v1745 = vpop.permute.xlu0 %1744
    %v1746 = vsel %vm398, %v1745, 0
    %1748 = vmatprep.subr.mxu0 0.0
    %1749 = vmatpush1.msra.mxu0 %v884
    %1750 = vmatprep.subr.mxu0 0.0
    %1751 = vmatpush1.msra.mxu0 %v885
    %1752 = vmatprep.subr.mxu0 0.0
    %1753 = vmatpush1.msra.mxu0 %v886
    %1754 = vmatprep.subr.mxu0 0.0
    %1755 = vmatpush1.msra.mxu0 %v887
    %1756 = vmatprep.subr.mxu0 0.0
    %1757 = vmatpush1.msra.mxu0 0.0
    %1758 = vmatprep.subr.mxu0 0.0
    %1759 = vmatpush1.msra.mxu0 0.0
    %1760 = vmatprep.subr.mxu0 0.0
    %1761 = vmatpush1.msra.mxu0 0.0
    %1762 = vmatprep.subr.mxu0 0.0
    %1763 = vmatpush1.msra.mxu0 0.0
    %1764 = vmatprep.subr.mxu0 0.0
    %1765 = vmatpush1.msra.mxu0 0.0
    %1766 = vmatprep.subr.mxu0 0.0
    %1767 = vmatpush1.msra.mxu0 0.0
    %1768 = vmatprep.subr.mxu0 0.0
    %1769 = vmatpush1.msra.mxu0 0.0
    %1770 = vmatprep.subr.mxu0 0.0
    %1771 = vmatpush1.msra.mxu0 0.0
    %1772 = vmatprep.subr.mxu0 0.0
    %1773 = vmatpush1.msra.mxu0 0.0
    %1774 = vmatprep.subr.mxu0 0.0
    %1775 = vmatpush1.msra.mxu0 0.0
    %1776 = vmatprep.subr.mxu0 0.0
    %1777 = vmatpush1.msra.mxu0 0.0
    %1778 = vmatprep.subr.mxu0 0.0
    %1779 = vmatpush1.msra.mxu0 0.0
    %1780 = vmatprep.subr.mxu0 0.0
    %1781 = vmatpush1.msra.mxu0 0.0
    %1782 = vmatprep.subr.mxu0 0.0
    %1783 = vmatpush1.msra.mxu0 0.0
    %1784 = vmatprep.subr.mxu0 0.0
    %1785 = vmatpush1.msra.mxu0 0.0
    %1786 = vmatprep.subr.mxu0 0.0
    %1787 = vmatpush1.msra.mxu0 0.0
    %1788 = vmatprep.subr.mxu0 0.0
    %1789 = vmatpush1.msra.mxu0 0.0
    %1790 = vmatprep.subr.mxu0 0.0
    %1791 = vmatpush1.msra.mxu0 0.0
    %1792 = vmatprep.subr.mxu0 0.0
    %1793 = vmatpush1.msra.mxu0 0.0
    %1794 = vmatprep.subr.mxu0 0.0
    %1795 = vmatpush1.msra.mxu0 0.0
    %1796 = vmatprep.subr.mxu0 0.0
    %1797 = vmatpush1.msra.mxu0 0.0
    %1798 = vmatprep.subr.mxu0 0.0
    %1799 = vmatpush1.msra.mxu0 0.0
    %1800 = vmatprep.subr.mxu0 0.0
    %1801 = vmatpush1.msra.mxu0 0.0
    %1802 = vmatprep.subr.mxu0 0.0
    %1803 = vmatpush1.msra.mxu0 0.0
    %1804 = vmatprep.subr.mxu0 0.0
    %1805 = vmatpush1.msra.mxu0 0.0
    %1806 = vmatprep.subr.mxu0 0.0
    %1807 = vmatpush1.msra.mxu0 0.0
    %1808 = vmatprep.subr.mxu0 0.0
    %1809 = vmatpush1.msra.mxu0 0.0
    %1810 = vmatprep.subr.mxu0 0.0
    %1811 = vmatpush1.msra.mxu0 0.0
    %1812 = vmatprep.mubr.f32.mxu0 0.0
    %1813 = vmatmul.mubr.f32.gmra.mrb[0].mxu0 %v1746
    %v1814 = vpop.f32.mrb[0].mxu0
    %v1815 = vadd.f32 0.0, %v1814
    %v1816 = vpop.f32.mrb[0].mxu0
    %1817 = vdwg.mxu0
    %v1818 = vadd.f32 %v1740, %v1815
    %v1819 = vmul.f32 %v1818, 0.5
    %v1820 = vtanh.pop %v1819
    %v1821 = vmul.f32 %v1820, 0.5
    %v1822 = vadd.f32 %v1821, 0.5
    %v1823 = vadd.f32 %v1815, %v898
    %1825 = vrot.lane.b32.xlu0 %v1823, 64
    %v1826 = vpop.permute.xlu0 %1825
    %v1828 = vmul.f32 %v1822, %v1826
    %1830 = vrot.lane.b32.xlu0 %v1828, 64
    %v1831 = vpop.permute.xlu0 %1830
    %v1833 = vadd.f32 %v1741, %v1831
    %v1834 = vtanh.pop %v1833
    %v1835 = vsub.f32 1.0, %v1822
    %1837 = vrot.lane.b32.xlu0 %v1834, 96
    %v1838 = vpop.permute.xlu0 %1837
    %v1840 = vmul.f32 %v1835, %v1838
    %v1842 = vmul.f32 %v1822, %v1743
    %v1843 = vadd.f32 %v1840, %v1842
    %v1845 = vrot.slane %v872, 6
    %v1847 = vadd.f32 %v680, %v1845
    %v1849 = vrot.slane %v879, 6
    %v1851 = vadd.f32 %v680, %v1849
    %1853 = vrot.lane.b32.xlu0 %v1843, 96
    %v1854 = vpop.permute.xlu0 %1853
    %v1855 = vsel %vm398, %v1854, 0
    %1857 = vmatprep.subr.mxu0 0.0
    %1858 = vmatpush1.msra.mxu0 %v884
    %1859 = vmatprep.subr.mxu0 0.0
    %1860 = vmatpush1.msra.mxu0 %v885
    %1861 = vmatprep.subr.mxu0 0.0
    %1862 = vmatpush1.msra.mxu0 %v886
    %1863 = vmatprep.subr.mxu0 0.0
    %1864 = vmatpush1.msra.mxu0 %v887
    %1865 = vmatprep.subr.mxu0 0.0
    %1866 = vmatpush1.msra.mxu0 0.0
    %1867 = vmatprep.subr.mxu0 0.0
    %1868 = vmatpush1.msra.mxu0 0.0
    %1869 = vmatprep.subr.mxu0 0.0
    %1870 = vmatpush1.msra.mxu0 0.0
    %1871 = vmatprep.subr.mxu0 0.0
    %1872 = vmatpush1.msra.mxu0 0.0
    %1873 = vmatprep.subr.mxu0 0.0
    %1874 = vmatpush1.msra.mxu0 0.0
    %1875 = vmatprep.subr.mxu0 0.0
    %1876 = vmatpush1.msra.mxu0 0.0
    %1877 = vmatprep.subr.mxu0 0.0
    %1878 = vmatpush1.msra.mxu0 0.0
    %1879 = vmatprep.subr.mxu0 0.0
    %1880 = vmatpush1.msra.mxu0 0.0
    %1881 = vmatprep.subr.mxu0 0.0
    %1882 = vmatpush1.msra.mxu0 0.0
    %1883 = vmatprep.subr.mxu0 0.0
    %1884 = vmatpush1.msra.mxu0 0.0
    %1885 = vmatprep.subr.mxu0 0.0
    %1886 = vmatpush1.msra.mxu0 0.0
    %1887 = vmatprep.subr.mxu0 0.0
    %1888 = vmatpush1.msra.mxu0 0.0
    %1889 = vmatprep.subr.mxu0 0.0
    %1890 = vmatpush1.msra.mxu0 0.0
    %1891 = vmatprep.subr.mxu0 0.0
    %1892 = vmatpush1.msra.mxu0 0.0
    %1893 = vmatprep.subr.mxu0 0.0
    %1894 = vmatpush1.msra.mxu0 0.0
    %1895 = vmatprep.subr.mxu0 0.0
    %1896 = vmatpush1.msra.mxu0 0.0
    %1897 = vmatprep.subr.mxu0 0.0
    %1898 = vmatpush1.msra.mxu0 0.0
    %1899 = vmatprep.subr.mxu0 0.0
    %1900 = vmatpush1.msra.mxu0 0.0
    %1901 = vmatprep.subr.mxu0 0.0
    %1902 = vmatpush1.msra.mxu0 0.0
    %1903 = vmatprep.subr.mxu0 0.0
    %1904 = vmatpush1.msra.mxu0 0.0
    %1905 = vmatprep.subr.mxu0 0.0
    %1906 = vmatpush1.msra.mxu0 0.0
    %1907 = vmatprep.subr.mxu0 0.0
    %1908 = vmatpush1.msra.mxu0 0.0
    %1909 = vmatprep.subr.mxu0 0.0
    %1910 = vmatpush1.msra.mxu0 0.0
    %1911 = vmatprep.subr.mxu0 0.0
    %1912 = vmatpush1.msra.mxu0 0.0
    %1913 = vmatprep.subr.mxu0 0.0
    %1914 = vmatpush1.msra.mxu0 0.0
    %1915 = vmatprep.subr.mxu0 0.0
    %1916 = vmatpush1.msra.mxu0 0.0
    %1917 = vmatprep.subr.mxu0 0.0
    %1918 = vmatpush1.msra.mxu0 0.0
    %1919 = vmatprep.subr.mxu0 0.0
    %1920 = vmatpush1.msra.mxu0 0.0
    %1921 = vmatprep.mubr.f32.mxu0 0.0
    %1922 = vmatmul.mubr.f32.gmra.mrb[0].mxu0 %v1855
    %v1923 = vpop.f32.mrb[0].mxu0
    %v1924 = vadd.f32 0.0, %v1923
    %v1925 = vpop.f32.mrb[0].mxu0
    %1926 = vdwg.mxu0
    %v1928 = vrot.slane %v1924, 6
    %v1930 = vadd.f32 %v1847, %v1928
    %v1931 = vmul.f32 %v1930, 0.5
    %v1932 = vtanh.pop %v1931
    %v1933 = vmul.f32 %v1932, 0.5
    %v1934 = vadd.f32 %v1933, 0.5
    %v1935 = vadd.f32 %v1924, %v898
    %v1937 = vrot.slane %v1935, 6
    %1938 = vrot.lane.b32.xlu0 %v1937, 64
    %v1939 = vpop.permute.xlu0 %1938
    %v1941 = vmul.f32 %v1934, %v1939
    %1943 = vrot.lane.b32.xlu0 %v1941, 64
    %v1944 = vpop.permute.xlu0 %1943
    %v1946 = vadd.f32 %v1851, %v1944
    %v1947 = vtanh.pop %v1946
    %v1948 = vsub.f32 1.0, %v1934
    %1950 = vrot.lane.b32.xlu0 %v1947, 96
    %v1951 = vpop.permute.xlu0 %1950
    %v1953 = vmul.f32 %v1948, %v1951
    %v1954 = vrot.slane %v1843, 6
    %v1956 = vmul.f32 %v1934, %v1954
    %v1957 = vadd.f32 %v1953, %v1956
    %v1958 = vrot.slane %v872, 4
    %v1960 = vadd.f32 %v680, %v1958
    %v1961 = vrot.slane %v879, 4
    %v1963 = vadd.f32 %v680, %v1961
    %v1965 = vrot.slane %v1957, 2
    %1966 = vrot.lane.b32.xlu0 %v1965, 96
    %v1967 = vpop.permute.xlu0 %1966
    %v1968 = vsel %vm398, %v1967, 0
    %1970 = vmatprep.subr.mxu0 0.0
    %1971 = vmatpush1.msra.mxu0 %v884
    %1972 = vmatprep.subr.mxu0 0.0
    %1973 = vmatpush1.msra.mxu0 %v885
    %1974 = vmatprep.subr.mxu0 0.0
    %1975 = vmatpush1.msra.mxu0 %v886
    %1976 = vmatprep.subr.mxu0 0.0
    %1977 = vmatpush1.msra.mxu0 %v887
    %1978 = vmatprep.subr.mxu0 0.0
    %1979 = vmatpush1.msra.mxu0 0.0
    %1980 = vmatprep.subr.mxu0 0.0
    %1981 = vmatpush1.msra.mxu0 0.0
    %1982 = vmatprep.subr.mxu0 0.0
    %1983 = vmatpush1.msra.mxu0 0.0
    %1984 = vmatprep.subr.mxu0 0.0
    %1985 = vmatpush1.msra.mxu0 0.0
    %1986 = vmatprep.subr.mxu0 0.0
    %1987 = vmatpush1.msra.mxu0 0.0
    %1988 = vmatprep.subr.mxu0 0.0
    %1989 = vmatpush1.msra.mxu0 0.0
    %1990 = vmatprep.subr.mxu0 0.0
    %1991 = vmatpush1.msra.mxu0 0.0
    %1992 = vmatprep.subr.mxu0 0.0
    %1993 = vmatpush1.msra.mxu0 0.0
    %1994 = vmatprep.subr.mxu0 0.0
    %1995 = vmatpush1.msra.mxu0 0.0
    %1996 = vmatprep.subr.mxu0 0.0
    %1997 = vmatpush1.msra.mxu0 0.0
    %1998 = vmatprep.subr.mxu0 0.0
    %1999 = vmatpush1.msra.mxu0 0.0
    %2000 = vmatprep.subr.mxu0 0.0
    %2001 = vmatpush1.msra.mxu0 0.0
    %2002 = vmatprep.subr.mxu0 0.0
    %2003 = vmatpush1.msra.mxu0 0.0
    %2004 = vmatprep.subr.mxu0 0.0
    %2005 = vmatpush1.msra.mxu0 0.0
    %2006 = vmatprep.subr.mxu0 0.0
    %2007 = vmatpush1.msra.mxu0 0.0
    %2008 = vmatprep.subr.mxu0 0.0
    %2009 = vmatpush1.msra.mxu0 0.0
    %2010 = vmatprep.subr.mxu0 0.0
    %2011 = vmatpush1.msra.mxu0 0.0
    %2012 = vmatprep.subr.mxu0 0.0
    %2013 = vmatpush1.msra.mxu0 0.0
    %2014 = vmatprep.subr.mxu0 0.0
    %2015 = vmatpush1.msra.mxu0 0.0
    %2016 = vmatprep.subr.mxu0 0.0
    %2017 = vmatpush1.msra.mxu0 0.0
    %2018 = vmatprep.subr.mxu0 0.0
    %2019 = vmatpush1.msra.mxu0 0.0
    %2020 = vmatprep.subr.mxu0 0.0
    %2021 = vmatpush1.msra.mxu0 0.0
    %2022 = vmatprep.subr.mxu0 0.0
    %2023 = vmatpush1.msra.mxu0 0.0
    %2024 = vmatprep.subr.mxu0 0.0
    %2025 = vmatpush1.msra.mxu0 0.0
    %2026 = vmatprep.subr.mxu0 0.0
    %2027 = vmatpush1.msra.mxu0 0.0
    %2028 = vmatprep.subr.mxu0 0.0
    %2029 = vmatpush1.msra.mxu0 0.0
    %2030 = vmatprep.subr.mxu0 0.0
    %2031 = vmatpush1.msra.mxu0 0.0
    %2032 = vmatprep.subr.mxu0 0.0
    %2033 = vmatpush1.msra.mxu0 0.0
    %2034 = vmatprep.mubr.f32.mxu0 0.0
    %2035 = vmatmul.mubr.f32.gmra.mrb[0].mxu0 %v1968
    %v2036 = vpop.f32.mrb[0].mxu0
    %v2037 = vadd.f32 0.0, %v2036
    %v2038 = vpop.f32.mrb[0].mxu0
    %2039 = vdwg.mxu0
    %v2041 = vrot.slane %v2037, 4
    %v2043 = vadd.f32 %v1960, %v2041
    %v2044 = vmul.f32 %v2043, 0.5
    %v2045 = vtanh.pop %v2044
    %v2046 = vmul.f32 %v2045, 0.5
    %v2047 = vadd.f32 %v2046, 0.5
    %v2048 = vadd.f32 %v2037, %v898
    %v2050 = vrot.slane %v2048, 4
    %2051 = vrot.lane.b32.xlu0 %v2050, 64
    %v2052 = vpop.permute.xlu0 %2051
    %v2054 = vmul.f32 %v2047, %v2052
    %2056 = vrot.lane.b32.xlu0 %v2054, 64
    %v2057 = vpop.permute.xlu0 %2056
    %v2059 = vadd.f32 %v1963, %v2057
    %v2060 = vtanh.pop %v2059
    %v2061 = vsub.f32 1.0, %v2047
    %2063 = vrot.lane.b32.xlu0 %v2060, 96
    %v2064 = vpop.permute.xlu0 %2063
    %v2066 = vmul.f32 %v2061, %v2064
    %v2067 = vrot.slane %v1957, 6
    %v2069 = vmul.f32 %v2047, %v2067
    %v2070 = vadd.f32 %v2066, %v2069
    %v2071 = vrot.slane %v872, 2
    %v2073 = vadd.f32 %v680, %v2071
    %v2074 = vrot.slane %v879, 2
    %v2076 = vadd.f32 %v680, %v2074
    %v2078 = vrot.slane %v2070, 4
    %2079 = vrot.lane.b32.xlu0 %v2078, 96
    %v2080 = vpop.permute.xlu0 %2079
    %v2081 = vsel %vm398, %v2080, 0
    %2083 = vmatprep.subr.mxu0 0.0
    %2084 = vmatpush1.msra.mxu0 %v884
    %2085 = vmatprep.subr.mxu0 0.0
    %2086 = vmatpush1.msra.mxu0 %v885
    %2087 = vmatprep.subr.mxu0 0.0
    %2088 = vmatpush1.msra.mxu0 %v886
    %2089 = vmatprep.subr.mxu0 0.0
    %2090 = vmatpush1.msra.mxu0 %v887
    %2091 = vmatprep.subr.mxu0 0.0
    %2092 = vmatpush1.msra.mxu0 0.0
    %2093 = vmatprep.subr.mxu0 0.0
    %2094 = vmatpush1.msra.mxu0 0.0
    %2095 = vmatprep.subr.mxu0 0.0
    %2096 = vmatpush1.msra.mxu0 0.0
    %2097 = vmatprep.subr.mxu0 0.0
    %2098 = vmatpush1.msra.mxu0 0.0
    %2099 = vmatprep.subr.mxu0 0.0
    %2100 = vmatpush1.msra.mxu0 0.0
    %2101 = vmatprep.subr.mxu0 0.0
    %2102 = vmatpush1.msra.mxu0 0.0
    %2103 = vmatprep.subr.mxu0 0.0
    %2104 = vmatpush1.msra.mxu0 0.0
    %2105 = vmatprep.subr.mxu0 0.0
    %2106 = vmatpush1.msra.mxu0 0.0
    %2107 = vmatprep.subr.mxu0 0.0
    %2108 = vmatpush1.msra.mxu0 0.0
    %2109 = vmatprep.subr.mxu0 0.0
    %2110 = vmatpush1.msra.mxu0 0.0
    %2111 = vmatprep.subr.mxu0 0.0
    %2112 = vmatpush1.msra.mxu0 0.0
    %2113 = vmatprep.subr.mxu0 0.0
    %2114 = vmatpush1.msra.mxu0 0.0
    %2115 = vmatprep.subr.mxu0 0.0
    %2116 = vmatpush1.msra.mxu0 0.0
    %2117 = vmatprep.subr.mxu0 0.0
    %2118 = vmatpush1.msra.mxu0 0.0
    %2119 = vmatprep.subr.mxu0 0.0
    %2120 = vmatpush1.msra.mxu0 0.0
    %2121 = vmatprep.subr.mxu0 0.0
    %2122 = vmatpush1.msra.mxu0 0.0
    %2123 = vmatprep.subr.mxu0 0.0
    %2124 = vmatpush1.msra.mxu0 0.0
    %2125 = vmatprep.subr.mxu0 0.0
    %2126 = vmatpush1.msra.mxu0 0.0
    %2127 = vmatprep.subr.mxu0 0.0
    %2128 = vmatpush1.msra.mxu0 0.0
    %2129 = vmatprep.subr.mxu0 0.0
    %2130 = vmatpush1.msra.mxu0 0.0
    %2131 = vmatprep.subr.mxu0 0.0
    %2132 = vmatpush1.msra.mxu0 0.0
    %2133 = vmatprep.subr.mxu0 0.0
    %2134 = vmatpush1.msra.mxu0 0.0
    %2135 = vmatprep.subr.mxu0 0.0
    %2136 = vmatpush1.msra.mxu0 0.0
    %2137 = vmatprep.subr.mxu0 0.0
    %2138 = vmatpush1.msra.mxu0 0.0
    %2139 = vmatprep.subr.mxu0 0.0
    %2140 = vmatpush1.msra.mxu0 0.0
    %2141 = vmatprep.subr.mxu0 0.0
    %2142 = vmatpush1.msra.mxu0 0.0
    %2143 = vmatprep.subr.mxu0 0.0
    %2144 = vmatpush1.msra.mxu0 0.0
    %2145 = vmatprep.subr.mxu0 0.0
    %2146 = vmatpush1.msra.mxu0 0.0
    %2147 = vmatprep.mubr.f32.mxu0 0.0
    %2148 = vmatmul.mubr.f32.gmra.mrb[0].mxu0 %v2081
    %v2149 = vpop.f32.mrb[0].mxu0
    %v2150 = vadd.f32 0.0, %v2149
    %v2151 = vpop.f32.mrb[0].mxu0
    %2152 = vdwg.mxu0
    %v2154 = vrot.slane %v2150, 2
    %v2156 = vadd.f32 %v2073, %v2154
    %v2157 = vmul.f32 %v2156, 0.5
    %v2158 = vtanh.pop %v2157
    %v2159 = vmul.f32 %v2158, 0.5
    %v2160 = vadd.f32 %v2159, 0.5
    %v2161 = vadd.f32 %v2150, %v898
    %v2163 = vrot.slane %v2161, 2
    %2164 = vrot.lane.b32.xlu0 %v2163, 64
    %v2165 = vpop.permute.xlu0 %2164
    %v2167 = vmul.f32 %v2160, %v2165
    %2169 = vrot.lane.b32.xlu0 %v2167, 64
    %v2170 = vpop.permute.xlu0 %2169
    %v2172 = vadd.f32 %v2076, %v2170
    %v2173 = vtanh.pop %v2172
    %v2174 = vsub.f32 1.0, %v2160
    %2176 = vrot.lane.b32.xlu0 %v2173, 96
    %v2177 = vpop.permute.xlu0 %2176
    %v2179 = vmul.f32 %v2174, %v2177
    %v2180 = vrot.slane %v2070, 6
    %v2182 = vmul.f32 %v2160, %v2180
    %v2183 = vadd.f32 %v2179, %v2182
    %v2184 = vadd.f32 %v685, %v872
    %v2185 = vadd.f32 %v685, %v879
    %v2187 = vrot.slane %v2183, 6
    %2188 = vrot.lane.b32.xlu0 %v2187, 96
    %v2189 = vpop.permute.xlu0 %2188
    %v2190 = vsel %vm398, %v2189, 0
    %2192 = vmatprep.subr.mxu0 0.0
    %2193 = vmatpush1.msra.mxu0 %v884
    %2194 = vmatprep.subr.mxu0 0.0
    %2195 = vmatpush1.msra.mxu0 %v885
    %2196 = vmatprep.subr.mxu0 0.0
    %2197 = vmatpush1.msra.mxu0 %v886
    %2198 = vmatprep.subr.mxu0 0.0
    %2199 = vmatpush1.msra.mxu0 %v887
    %2200 = vmatprep.subr.mxu0 0.0
    %2201 = vmatpush1.msra.mxu0 0.0
    %2202 = vmatprep.subr.mxu0 0.0
    %2203 = vmatpush1.msra.mxu0 0.0
    %2204 = vmatprep.subr.mxu0 0.0
    %2205 = vmatpush1.msra.mxu0 0.0
    %2206 = vmatprep.subr.mxu0 0.0
    %2207 = vmatpush1.msra.mxu0 0.0
    %2208 = vmatprep.subr.mxu0 0.0
    %2209 = vmatpush1.msra.mxu0 0.0
    %2210 = vmatprep.subr.mxu0 0.0
    %2211 = vmatpush1.msra.mxu0 0.0
    %2212 = vmatprep.subr.mxu0 0.0
    %2213 = vmatpush1.msra.mxu0 0.0
    %2214 = vmatprep.subr.mxu0 0.0
    %2215 = vmatpush1.msra.mxu0 0.0
    %2216 = vmatprep.subr.mxu0 0.0
    %2217 = vmatpush1.msra.mxu0 0.0
    %2218 = vmatprep.subr.mxu0 0.0
    %2219 = vmatpush1.msra.mxu0 0.0
    %2220 = vmatprep.subr.mxu0 0.0
    %2221 = vmatpush1.msra.mxu0 0.0
    %2222 = vmatprep.subr.mxu0 0.0
    %2223 = vmatpush1.msra.mxu0 0.0
    %2224 = vmatprep.subr.mxu0 0.0
    %2225 = vmatpush1.msra.mxu0 0.0
    %2226 = vmatprep.subr.mxu0 0.0
    %2227 = vmatpush1.msra.mxu0 0.0
    %2228 = vmatprep.subr.mxu0 0.0
    %2229 = vmatpush1.msra.mxu0 0.0
    %2230 = vmatprep.subr.mxu0 0.0
    %2231 = vmatpush1.msra.mxu0 0.0
    %2232 = vmatprep.subr.mxu0 0.0
    %2233 = vmatpush1.msra.mxu0 0.0
    %2234 = vmatprep.subr.mxu0 0.0
    %2235 = vmatpush1.msra.mxu0 0.0
    %2236 = vmatprep.subr.mxu0 0.0
    %2237 = vmatpush1.msra.mxu0 0.0
    %2238 = vmatprep.subr.mxu0 0.0
    %2239 = vmatpush1.msra.mxu0 0.0
    %2240 = vmatprep.subr.mxu0 0.0
    %2241 = vmatpush1.msra.mxu0 0.0
    %2242 = vmatprep.subr.mxu0 0.0
    %2243 = vmatpush1.msra.mxu0 0.0
    %2244 = vmatprep.subr.mxu0 0.0
    %2245 = vmatpush1.msra.mxu0 0.0
    %2246 = vmatprep.subr.mxu0 0.0
    %2247 = vmatpush1.msra.mxu0 0.0
    %2248 = vmatprep.subr.mxu0 0.0
    %2249 = vmatpush1.msra.mxu0 0.0
    %2250 = vmatprep.subr.mxu0 0.0
    %2251 = vmatpush1.msra.mxu0 0.0
    %2252 = vmatprep.subr.mxu0 0.0
    %2253 = vmatpush1.msra.mxu0 0.0
    %2254 = vmatprep.subr.mxu0 0.0
    %2255 = vmatpush1.msra.mxu0 0.0
    %2256 = vmatprep.mubr.f32.mxu0 0.0
    %2257 = vmatmul.mubr.f32.gmra.mrb[0].mxu0 %v2190
    %v2258 = vpop.f32.mrb[0].mxu0
    %v2259 = vadd.f32 0.0, %v2258
    %v2260 = vpop.f32.mrb[0].mxu0
    %2261 = vdwg.mxu0
    %v2262 = vadd.f32 %v2184, %v2259
    %v2263 = vmul.f32 %v2262, 0.5
    %v2264 = vtanh.pop %v2263
    %v2265 = vmul.f32 %v2264, 0.5
    %v2266 = vadd.f32 %v2265, 0.5
    %v2267 = vadd.f32 %v2259, %v898
    %2269 = vrot.lane.b32.xlu0 %v2267, 64
    %v2270 = vpop.permute.xlu0 %2269
    %v2272 = vmul.f32 %v2266, %v2270
    %2274 = vrot.lane.b32.xlu0 %v2272, 64
    %v2275 = vpop.permute.xlu0 %2274
    %v2277 = vadd.f32 %v2185, %v2275
    %v2278 = vtanh.pop %v2277
    %v2279 = vsub.f32 1.0, %v2266
    %2281 = vrot.lane.b32.xlu0 %v2278, 96
    %v2282 = vpop.permute.xlu0 %2281
    %v2284 = vmul.f32 %v2279, %v2282
    %v2286 = vmul.f32 %v2266, %v2187
    %v2287 = vadd.f32 %v2284, %v2286
    %v2288 = vadd.f32 %v685, %v1845
    %v2289 = vadd.f32 %v685, %v1849
    %2291 = vrot.lane.b32.xlu0 %v2287, 96
    %v2292 = vpop.permute.xlu0 %2291
    %v2293 = vsel %vm398, %v2292, 0
    %2295 = vmatprep.subr.mxu0 0.0
    %2296 = vmatpush1.msra.mxu0 %v884
    %2297 = vmatprep.subr.mxu0 0.0
    %2298 = vmatpush1.msra.mxu0 %v885
    %2299 = vmatprep.subr.mxu0 0.0
    %2300 = vmatpush1.msra.mxu0 %v886
    %2301 = vmatprep.subr.mxu0 0.0
    %2302 = vmatpush1.msra.mxu0 %v887
    %2303 = vmatprep.subr.mxu0 0.0
    %2304 = vmatpush1.msra.mxu0 0.0
    %2305 = vmatprep.subr.mxu0 0.0
    %2306 = vmatpush1.msra.mxu0 0.0
    %2307 = vmatprep.subr.mxu0 0.0
    %2308 = vmatpush1.msra.mxu0 0.0
    %2309 = vmatprep.subr.mxu0 0.0
    %2310 = vmatpush1.msra.mxu0 0.0
    %2311 = vmatprep.subr.mxu0 0.0
    %2312 = vmatpush1.msra.mxu0 0.0
    %2313 = vmatprep.subr.mxu0 0.0
    %2314 = vmatpush1.msra.mxu0 0.0
    %2315 = vmatprep.subr.mxu0 0.0
    %2316 = vmatpush1.msra.mxu0 0.0
    %2317 = vmatprep.subr.mxu0 0.0
    %2318 = vmatpush1.msra.mxu0 0.0
    %2319 = vmatprep.subr.mxu0 0.0
    %2320 = vmatpush1.msra.mxu0 0.0
    %2321 = vmatprep.subr.mxu0 0.0
    %2322 = vmatpush1.msra.mxu0 0.0
    %2323 = vmatprep.subr.mxu0 0.0
    %2324 = vmatpush1.msra.mxu0 0.0
    %2325 = vmatprep.subr.mxu0 0.0
    %2326 = vmatpush1.msra.mxu0 0.0
    %2327 = vmatprep.subr.mxu0 0.0
    %2328 = vmatpush1.msra.mxu0 0.0
    %2329 = vmatprep.subr.mxu0 0.0
    %2330 = vmatpush1.msra.mxu0 0.0
    %2331 = vmatprep.subr.mxu0 0.0
    %2332 = vmatpush1.msra.mxu0 0.0
    %2333 = vmatprep.subr.mxu0 0.0
    %2334 = vmatpush1.msra.mxu0 0.0
    %2335 = vmatprep.subr.mxu0 0.0
    %2336 = vmatpush1.msra.mxu0 0.0
    %2337 = vmatprep.subr.mxu0 0.0
    %2338 = vmatpush1.msra.mxu0 0.0
    %2339 = vmatprep.subr.mxu0 0.0
    %2340 = vmatpush1.msra.mxu0 0.0
    %2341 = vmatprep.subr.mxu0 0.0
    %2342 = vmatpush1.msra.mxu0 0.0
    %2343 = vmatprep.subr.mxu0 0.0
    %2344 = vmatpush1.msra.mxu0 0.0
    %2345 = vmatprep.subr.mxu0 0.0
    %2346 = vmatpush1.msra.mxu0 0.0
    %2347 = vmatprep.subr.mxu0 0.0
    %2348 = vmatpush1.msra.mxu0 0.0
    %2349 = vmatprep.subr.mxu0 0.0
    %2350 = vmatpush1.msra.mxu0 0.0
    %2351 = vmatprep.subr.mxu0 0.0
    %2352 = vmatpush1.msra.mxu0 0.0
    %2353 = vmatprep.subr.mxu0 0.0
    %2354 = vmatpush1.msra.mxu0 0.0
    %2355 = vmatprep.subr.mxu0 0.0
    %2356 = vmatpush1.msra.mxu0 0.0
    %2357 = vmatprep.subr.mxu0 0.0
    %2358 = vmatpush1.msra.mxu0 0.0
    %2359 = vmatprep.mubr.f32.mxu0 0.0
    %2360 = vmatmul.mubr.f32.gmra.mrb[0].mxu0 %v2293
    %v2361 = vpop.f32.mrb[0].mxu0
    %v2362 = vadd.f32 0.0, %v2361
    %v2363 = vpop.f32.mrb[0].mxu0
    %2364 = vdwg.mxu0
    %v2366 = vrot.slane %v2362, 6
    %v2368 = vadd.f32 %v2288, %v2366
    %v2369 = vmul.f32 %v2368, 0.5
    %v2370 = vtanh.pop %v2369
    %v2371 = vmul.f32 %v2370, 0.5
    %v2372 = vadd.f32 %v2371, 0.5
    %v2373 = vadd.f32 %v2362, %v898
    %v2375 = vrot.slane %v2373, 6
    %2376 = vrot.lane.b32.xlu0 %v2375, 64
    %v2377 = vpop.permute.xlu0 %2376
    %v2379 = vmul.f32 %v2372, %v2377
    %2381 = vrot.lane.b32.xlu0 %v2379, 64
    %v2382 = vpop.permute.xlu0 %2381
    %v2384 = vadd.f32 %v2289, %v2382
    %v2385 = vtanh.pop %v2384
    %v2386 = vsub.f32 1.0, %v2372
    %2388 = vrot.lane.b32.xlu0 %v2385, 96
    %v2389 = vpop.permute.xlu0 %2388
    %v2391 = vmul.f32 %v2386, %v2389
    %v2392 = vrot.slane %v2287, 6
    %v2394 = vmul.f32 %v2372, %v2392
    %v2395 = vadd.f32 %v2391, %v2394
    %v2396 = vadd.f32 %v685, %v1958
    %v2397 = vadd.f32 %v685, %v1961
    %v2399 = vrot.slane %v2395, 2
    %2400 = vrot.lane.b32.xlu0 %v2399, 96
    %v2401 = vpop.permute.xlu0 %2400
    %v2402 = vsel %vm398, %v2401, 0
    %2404 = vmatprep.subr.mxu0 0.0
    %2405 = vmatpush1.msra.mxu0 %v884
    %2406 = vmatprep.subr.mxu0 0.0
    %2407 = vmatpush1.msra.mxu0 %v885
    %2408 = vmatprep.subr.mxu0 0.0
    %2409 = vmatpush1.msra.mxu0 %v886
    %2410 = vmatprep.subr.mxu0 0.0
    %2411 = vmatpush1.msra.mxu0 %v887
    %2412 = vmatprep.subr.mxu0 0.0
    %2413 = vmatpush1.msra.mxu0 0.0
    %2414 = vmatprep.subr.mxu0 0.0
    %2415 = vmatpush1.msra.mxu0 0.0
    %2416 = vmatprep.subr.mxu0 0.0
    %2417 = vmatpush1.msra.mxu0 0.0
    %2418 = vmatprep.subr.mxu0 0.0
    %2419 = vmatpush1.msra.mxu0 0.0
    %2420 = vmatprep.subr.mxu0 0.0
    %2421 = vmatpush1.msra.mxu0 0.0
    %2422 = vmatprep.subr.mxu0 0.0
    %2423 = vmatpush1.msra.mxu0 0.0
    %2424 = vmatprep.subr.mxu0 0.0
    %2425 = vmatpush1.msra.mxu0 0.0
    %2426 = vmatprep.subr.mxu0 0.0
    %2427 = vmatpush1.msra.mxu0 0.0
    %2428 = vmatprep.subr.mxu0 0.0
    %2429 = vmatpush1.msra.mxu0 0.0
    %2430 = vmatprep.subr.mxu0 0.0
    %2431 = vmatpush1.msra.mxu0 0.0
    %2432 = vmatprep.subr.mxu0 0.0
    %2433 = vmatpush1.msra.mxu0 0.0
    %2434 = vmatprep.subr.mxu0 0.0
    %2435 = vmatpush1.msra.mxu0 0.0
    %2436 = vmatprep.subr.mxu0 0.0
    %2437 = vmatpush1.msra.mxu0 0.0
    %2438 = vmatprep.subr.mxu0 0.0
    %2439 = vmatpush1.msra.mxu0 0.0
    %2440 = vmatprep.subr.mxu0 0.0
    %2441 = vmatpush1.msra.mxu0 0.0
    %2442 = vmatprep.subr.mxu0 0.0
    %2443 = vmatpush1.msra.mxu0 0.0
    %2444 = vmatprep.subr.mxu0 0.0
    %2445 = vmatpush1.msra.mxu0 0.0
    %2446 = vmatprep.subr.mxu0 0.0
    %2447 = vmatpush1.msra.mxu0 0.0
    %2448 = vmatprep.subr.mxu0 0.0
    %2449 = vmatpush1.msra.mxu0 0.0
    %2450 = vmatprep.subr.mxu0 0.0
    %2451 = vmatpush1.msra.mxu0 0.0
    %2452 = vmatprep.subr.mxu0 0.0
    %2453 = vmatpush1.msra.mxu0 0.0
    %2454 = vmatprep.subr.mxu0 0.0
    %2455 = vmatpush1.msra.mxu0 0.0
    %2456 = vmatprep.subr.mxu0 0.0
    %2457 = vmatpush1.msra.mxu0 0.0
    %2458 = vmatprep.subr.mxu0 0.0
    %2459 = vmatpush1.msra.mxu0 0.0
    %2460 = vmatprep.subr.mxu0 0.0
    %2461 = vmatpush1.msra.mxu0 0.0
    %2462 = vmatprep.subr.mxu0 0.0
    %2463 = vmatpush1.msra.mxu0 0.0
    %2464 = vmatprep.subr.mxu0 0.0
    %2465 = vmatpush1.msra.mxu0 0.0
    %2466 = vmatprep.subr.mxu0 0.0
    %2467 = vmatpush1.msra.mxu0 0.0
    %2468 = vmatprep.mubr.f32.mxu0 0.0
    %2469 = vmatmul.mubr.f32.gmra.mrb[0].mxu0 %v2402
    %v2470 = vpop.f32.mrb[0].mxu0
    %v2471 = vadd.f32 0.0, %v2470
    %v2472 = vpop.f32.mrb[0].mxu0
    %2473 = vdwg.mxu0
    %v2475 = vrot.slane %v2471, 4
    %v2477 = vadd.f32 %v2396, %v2475
    %v2478 = vmul.f32 %v2477, 0.5
    %v2479 = vtanh.pop %v2478
    %v2480 = vmul.f32 %v2479, 0.5
    %v2481 = vadd.f32 %v2480, 0.5
    %v2482 = vadd.f32 %v2471, %v898
    %v2484 = vrot.slane %v2482, 4
    %2485 = vrot.lane.b32.xlu0 %v2484, 64
    %v2486 = vpop.permute.xlu0 %2485
    %v2488 = vmul.f32 %v2481, %v2486
    %2490 = vrot.lane.b32.xlu0 %v2488, 64
    %v2491 = vpop.permute.xlu0 %2490
    %v2493 = vadd.f32 %v2397, %v2491
    %v2494 = vtanh.pop %v2493
    %v2495 = vsub.f32 1.0, %v2481
    %2497 = vrot.lane.b32.xlu0 %v2494, 96
    %v2498 = vpop.permute.xlu0 %2497
    %v2500 = vmul.f32 %v2495, %v2498
    %v2501 = vrot.slane %v2395, 6
    %v2503 = vmul.f32 %v2481, %v2501
    %v2504 = vadd.f32 %v2500, %v2503
    %v2505 = vadd.f32 %v685, %v2071
    %v2506 = vadd.f32 %v685, %v2074
    %v2508 = vrot.slane %v2504, 4
    %2509 = vrot.lane.b32.xlu0 %v2508, 96
    %v2510 = vpop.permute.xlu0 %2509
    %v2511 = vsel %vm398, %v2510, 0
    %2513 = vmatprep.subr.mxu0 0.0
    %2514 = vmatpush1.msra.mxu0 %v884
    %2515 = vmatprep.subr.mxu0 0.0
    %2516 = vmatpush1.msra.mxu0 %v885
    %2517 = vmatprep.subr.mxu0 0.0
    %2518 = vmatpush1.msra.mxu0 %v886
    %2519 = vmatprep.subr.mxu0 0.0
    %2520 = vmatpush1.msra.mxu0 %v887
    %2521 = vmatprep.subr.mxu0 0.0
    %2522 = vmatpush1.msra.mxu0 0.0
    %2523 = vmatprep.subr.mxu0 0.0
    %2524 = vmatpush1.msra.mxu0 0.0
    %2525 = vmatprep.subr.mxu0 0.0
    %2526 = vmatpush1.msra.mxu0 0.0
    %2527 = vmatprep.subr.mxu0 0.0
    %2528 = vmatpush1.msra.mxu0 0.0
    %2529 = vmatprep.subr.mxu0 0.0
    %2530 = vmatpush1.msra.mxu0 0.0
    %2531 = vmatprep.subr.mxu0 0.0
    %2532 = vmatpush1.msra.mxu0 0.0
    %2533 = vmatprep.subr.mxu0 0.0
    %2534 = vmatpush1.msra.mxu0 0.0
    %2535 = vmatprep.subr.mxu0 0.0
    %2536 = vmatpush1.msra.mxu0 0.0
    %2537 = vmatprep.subr.mxu0 0.0
    %2538 = vmatpush1.msra.mxu0 0.0
    %2539 = vmatprep.subr.mxu0 0.0
    %2540 = vmatpush1.msra.mxu0 0.0
    %2541 = vmatprep.subr.mxu0 0.0
    %2542 = vmatpush1.msra.mxu0 0.0
    %2543 = vmatprep.subr.mxu0 0.0
    %2544 = vmatpush1.msra.mxu0 0.0
    %2545 = vmatprep.subr.mxu0 0.0
    %2546 = vmatpush1.msra.mxu0 0.0
    %2547 = vmatprep.subr.mxu0 0.0
    %2548 = vmatpush1.msra.mxu0 0.0
    %2549 = vmatprep.subr.mxu0 0.0
    %2550 = vmatpush1.msra.mxu0 0.0
    %2551 = vmatprep.subr.mxu0 0.0
    %2552 = vmatpush1.msra.mxu0 0.0
    %2553 = vmatprep.subr.mxu0 0.0
    %2554 = vmatpush1.msra.mxu0 0.0
    %2555 = vmatprep.subr.mxu0 0.0
    %2556 = vmatpush1.msra.mxu0 0.0
    %2557 = vmatprep.subr.mxu0 0.0
    %2558 = vmatpush1.msra.mxu0 0.0
    %2559 = vmatprep.subr.mxu0 0.0
    %2560 = vmatpush1.msra.mxu0 0.0
    %2561 = vmatprep.subr.mxu0 0.0
    %2562 = vmatpush1.msra.mxu0 0.0
    %2563 = vmatprep.subr.mxu0 0.0
    %2564 = vmatpush1.msra.mxu0 0.0
    %2565 = vmatprep.subr.mxu0 0.0
    %2566 = vmatpush1.msra.mxu0 0.0
    %2567 = vmatprep.subr.mxu0 0.0
    %2568 = vmatpush1.msra.mxu0 0.0
    %2569 = vmatprep.subr.mxu0 0.0
    %2570 = vmatpush1.msra.mxu0 0.0
    %2571 = vmatprep.subr.mxu0 0.0
    %2572 = vmatpush1.msra.mxu0 0.0
    %2573 = vmatprep.subr.mxu0 0.0
    %2574 = vmatpush1.msra.mxu0 0.0
    %2575 = vmatprep.subr.mxu0 0.0
    %2576 = vmatpush1.msra.mxu0 0.0
    %2577 = vmatprep.mubr.f32.mxu0 0.0
    %2578 = vmatmul.mubr.f32.gmra.mrb[0].mxu0 %v2511
    %v2579 = vpop.f32.mrb[0].mxu0
    %v2580 = vadd.f32 0.0, %v2579
    %v2581 = vpop.f32.mrb[0].mxu0
    %2582 = vdwg.mxu0
    %v2584 = vrot.slane %v2580, 2
    %v2586 = vadd.f32 %v2505, %v2584
    %v2587 = vmul.f32 %v2586, 0.5
    %v2588 = vtanh.pop %v2587
    %v2589 = vmul.f32 %v2588, 0.5
    %v2590 = vadd.f32 %v2589, 0.5
    %v2591 = vadd.f32 %v2580, %v898
    %v2593 = vrot.slane %v2591, 2
    %2594 = vrot.lane.b32.xlu0 %v2593, 64
    %v2595 = vpop.permute.xlu0 %2594
    %v2597 = vmul.f32 %v2590, %v2595
    %2599 = vrot.lane.b32.xlu0 %v2597, 64
    %v2600 = vpop.permute.xlu0 %2599
    %v2602 = vadd.f32 %v2506, %v2600
    %v2603 = vtanh.pop %v2602
    %v2604 = vsub.f32 1.0, %v2590
    %2606 = vrot.lane.b32.xlu0 %v2603, 96
    %v2607 = vpop.permute.xlu0 %2606
    %v2609 = vmul.f32 %v2604, %v2607
    %v2610 = vrot.slane %v2504, 6
    %v2612 = vmul.f32 %v2590, %v2610
    %v2613 = vadd.f32 %v2609, %v2612
    %2615 = vrot.lane.b32.xlu0 %v2613, 96
    %v2616 = vpop.permute.xlu0 %2615
    %vm2618 = vcmask 261126
    %2619 = vst.msk [vmem:[#allocation10 - $0x6] sm:$0xc0] %vm2618, %v2616
    %v2621 = vunpack.c.l.s4 1966171168
    %v2622 = vunpack.c.0.s8 %v2621
    %v2623 = vlaneseq
    %v2624 = vshrl.u32 %v2623, 7
    %v2625 = vsub.s32 %v2622, %v2624
    %v2626 = vrot.slane %v1843, %v2625
    %v2627 = vcombine.high %v2626, %v2626
    %v2629 = vunpack.c.l.s4 1966171168
    %v2630 = vunpack.c.0.s8 %v2629
    %v2631 = vlaneseq
    %v2632 = vshrl.u32 %v2631, 7
    %v2633 = vsub.s32 %v2630, %v2632
    %v2634 = vrot.slane %v2626, %v2633
    %v2636 = vunpack.c.l.s4 1966171168
    %v2637 = vunpack.c.0.s8 %v2636
    %v2638 = vlaneseq
    %v2639 = vshrl.u32 %v2638, 7
    %v2640 = vsub.s32 %v2637, %v2639
    %v2641 = vrot.slane %v2627, %v2640
    %v2645 = vunpack.c.l.s4 1966171168
    %v2646 = vunpack.c.0.s8 %v2645
    %v2647 = vlaneseq
    %v2648 = vshrl.u32 %v2647, 7
    %v2649 = vsub.s32 %v2646, %v2648
    %v2650 = vrot.slane %v1957, %v2649
    %v2651 = vcombine.high %v2650, %v2650
    %v2653 = vunpack.c.l.s4 1966171168
    %v2654 = vunpack.c.0.s8 %v2653
    %v2655 = vlaneseq
    %v2656 = vshrl.u32 %v2655, 7
    %v2657 = vsub.s32 %v2654, %v2656
    %v2658 = vrot.slane %v2650, %v2657
    %v2660 = vunpack.c.l.s4 1966171168
    %v2661 = vunpack.c.0.s8 %v2660
    %v2662 = vlaneseq
    %v2663 = vshrl.u32 %v2662, 7
    %v2664 = vsub.s32 %v2661, %v2663
    %v2665 = vrot.slane %v2651, %v2664
    %v2666 = vcombine.high %v2658, %v2658
    %v2667 = vcombine.high %v2665, %v2665
    %v2668 = vcombine.high %v2070, %v2070
    %v2670 = vunpack.c.l.s4 1966171168
    %v2671 = vunpack.c.0.s8 %v2670
    %v2672 = vlaneseq
    %v2673 = vshrl.u32 %v2672, 7
    %v2674 = vsub.s32 %v2671, %v2673
    %v2675 = vrot.slane %v2668, %v2674
    %v2676 = vcombine.high %v2675, %v2675
    %v2678 = vunpack.c.l.s4 1966171168
    %v2679 = vunpack.c.0.s8 %v2678
    %v2680 = vlaneseq
    %v2681 = vshrl.u32 %v2680, 7
    %v2682 = vsub.s32 %v2679, %v2681
    %v2683 = vrot.slane %v2675, %v2682
    %v2685 = vunpack.c.l.s4 1966171168
    %v2686 = vunpack.c.0.s8 %v2685
    %v2687 = vlaneseq
    %v2688 = vshrl.u32 %v2687, 7
    %v2689 = vsub.s32 %v2686, %v2688
    %v2690 = vrot.slane %v2676, %v2689
    %v2691 = vcombine.high %v2183, %v2183
    %v2693 = vunpack.c.l.s4 1966171168
    %v2694 = vunpack.c.0.s8 %v2693
    %v2695 = vlaneseq
    %v2696 = vshrl.u32 %v2695, 7
    %v2697 = vsub.s32 %v2694, %v2696
    %v2698 = vrot.slane %v2691, %v2697
    %v2699 = vcombine.high %v2698, %v2698
    %v2701 = vunpack.c.l.s4 1966171168
    %v2702 = vunpack.c.0.s8 %v2701
    %v2703 = vlaneseq
    %v2704 = vshrl.u32 %v2703, 7
    %v2705 = vsub.s32 %v2702, %v2704
    %v2706 = vrot.slane %v2698, %v2705
    %v2708 = vunpack.c.l.s4 1966171168
    %v2709 = vunpack.c.0.s8 %v2708
    %v2710 = vlaneseq
    %v2711 = vshrl.u32 %v2710, 7
    %v2712 = vsub.s32 %v2709, %v2711
    %v2713 = vrot.slane %v2699, %v2712
    %v2714 = vcombine.high %v2706, %v2706
    %v2715 = vcombine.high %v2713, %v2713
    %v2717 = vunpack.c.l.s4 1966171168
    %v2718 = vunpack.c.0.s8 %v2717
    %v2719 = vlaneseq
    %v2720 = vshrl.u32 %v2719, 7
    %v2721 = vsub.s32 %v2718, %v2720
    %v2722 = vrot.slane %v2287, %v2721
    %v2723 = vcombine.high %v2722, %v2722
    %v2725 = vunpack.c.l.s4 1966171168
    %v2726 = vunpack.c.0.s8 %v2725
    %v2727 = vlaneseq
    %v2728 = vshrl.u32 %v2727, 7
    %v2729 = vsub.s32 %v2726, %v2728
    %v2730 = vrot.slane %v2722, %v2729
    %v2732 = vunpack.c.l.s4 1966171168
    %v2733 = vunpack.c.0.s8 %v2732
    %v2734 = vlaneseq
    %v2735 = vshrl.u32 %v2734, 7
    %v2736 = vsub.s32 %v2733, %v2735
    %v2737 = vrot.slane %v2723, %v2736
    %v2739 = vunpack.c.l.s4 1966171168
    %v2740 = vunpack.c.0.s8 %v2739
    %v2741 = vlaneseq
    %v2742 = vshrl.u32 %v2741, 7
    %v2743 = vsub.s32 %v2740, %v2742
    %v2744 = vrot.slane %v2395, %v2743
    %v2745 = vcombine.high %v2744, %v2744
    %v2747 = vunpack.c.l.s4 1966171168
    %v2748 = vunpack.c.0.s8 %v2747
    %v2749 = vlaneseq
    %v2750 = vshrl.u32 %v2749, 7
    %v2751 = vsub.s32 %v2748, %v2750
    %v2752 = vrot.slane %v2744, %v2751
    %v2754 = vunpack.c.l.s4 1966171168
    %v2755 = vunpack.c.0.s8 %v2754
    %v2756 = vlaneseq
    %v2757 = vshrl.u32 %v2756, 7
    %v2758 = vsub.s32 %v2755, %v2757
    %v2759 = vrot.slane %v2745, %v2758
    %v2760 = vcombine.high %v2752, %v2752
    %v2761 = vcombine.high %v2759, %v2759
    %v2762 = vcombine.high %v2504, %v2504
    %v2764 = vunpack.c.l.s4 1966171168
    %v2765 = vunpack.c.0.s8 %v2764
    %v2766 = vlaneseq
    %v2767 = vshrl.u32 %v2766, 7
    %v2768 = vsub.s32 %v2765, %v2767
    %v2769 = vrot.slane %v2762, %v2768
    %v2770 = vcombine.high %v2769, %v2769
    %v2772 = vunpack.c.l.s4 1966171168
    %v2773 = vunpack.c.0.s8 %v2772
    %v2774 = vlaneseq
    %v2775 = vshrl.u32 %v2774, 7
    %v2776 = vsub.s32 %v2773, %v2775
    %v2777 = vrot.slane %v2769, %v2776
    %v2779 = vunpack.c.l.s4 1966171168
    %v2780 = vunpack.c.0.s8 %v2779
    %v2781 = vlaneseq
    %v2782 = vshrl.u32 %v2781, 7
    %v2783 = vsub.s32 %v2780, %v2782
    %v2784 = vrot.slane %v2770, %v2783
    %v2785 = vcombine.high %v2613, %v2613
    %v2787 = vunpack.c.l.s4 1966171168
    %v2788 = vunpack.c.0.s8 %v2787
    %v2789 = vlaneseq
    %v2790 = vshrl.u32 %v2789, 7
    %v2791 = vsub.s32 %v2788, %v2790
    %v2792 = vrot.slane %v2785, %v2791
    %v2793 = vcombine.high %v2792, %v2792
    %v2795 = vunpack.c.l.s4 1966171168
    %v2796 = vunpack.c.0.s8 %v2795
    %v2797 = vlaneseq
    %v2798 = vshrl.u32 %v2797, 7
    %v2799 = vsub.s32 %v2796, %v2798
    %v2800 = vrot.slane %v2792, %v2799
    %v2802 = vunpack.c.l.s4 1966171168
    %v2803 = vunpack.c.0.s8 %v2802
    %v2804 = vlaneseq
    %v2805 = vshrl.u32 %v2804, 7
    %v2806 = vsub.s32 %v2803, %v2805
    %v2807 = vrot.slane %v2793, %v2806
    %v2808 = vcombine.high %v2800, %v2800
    %v2809 = vcombine.high %v2807, %v2807
    %v2810 = vlaneseq
    %v2811 = vshrl.u32 %v2810, 7
    %v2812 = vsub.s32 0, %v2811
    %v2813 = vrot.slane %v2666, %v2812
    %v2814 = vlaneseq
    %v2815 = vshrl.u32 %v2814, 7
    %v2816 = vsub.s32 0, %v2815
    %v2817 = vrot.slane %v2667, %v2816
    %v2820 = vlaneseq
    %v2821 = vshrl.u32 %v2820, 7
    %v2822 = vsub.s32 0, %v2821
    %v2823 = vrot.slane %v2683, %v2822
    %v2824 = vlaneseq
    %v2825 = vshrl.u32 %v2824, 7
    %v2826 = vsub.s32 0, %v2825
    %v2827 = vrot.slane %v2690, %v2826
    %v2830 = vlaneseq
    %v2831 = vshrl.u32 %v2830, 7
    %v2832 = vsub.s32 0, %v2831
    %v2833 = vrot.slane %v2714, %v2832
    %v2834 = vlaneseq
    %v2835 = vshrl.u32 %v2834, 7
    %v2836 = vsub.s32 0, %v2835
    %v2837 = vrot.slane %v2715, %v2836
    %v2840 = vlaneseq
    %v2841 = vshrl.u32 %v2840, 7
    %v2842 = vsub.s32 0, %v2841
    %v2843 = vrot.slane %v2730, %v2842
    %v2844 = vlaneseq
    %v2845 = vshrl.u32 %v2844, 7
    %v2846 = vsub.s32 0, %v2845
    %v2847 = vrot.slane %v2737, %v2846
    %v2850 = vlaneseq
    %v2851 = vshrl.u32 %v2850, 7
    %v2852 = vsub.s32 0, %v2851
    %v2853 = vrot.slane %v2760, %v2852
    %v2854 = vlaneseq
    %v2855 = vshrl.u32 %v2854, 7
    %v2856 = vsub.s32 0, %v2855
    %v2857 = vrot.slane %v2761, %v2856
    %v2860 = vlaneseq
    %v2861 = vshrl.u32 %v2860, 7
    %v2862 = vsub.s32 0, %v2861
    %v2863 = vrot.slane %v2777, %v2862
    %v2864 = vlaneseq
    %v2865 = vshrl.u32 %v2864, 7
    %v2866 = vsub.s32 0, %v2865
    %v2867 = vrot.slane %v2784, %v2866
    %v2870 = vlaneseq
    %v2871 = vshrl.u32 %v2870, 7
    %v2872 = vsub.s32 0, %v2871
    %v2873 = vrot.slane %v2808, %v2872
    %v2874 = vlaneseq
    %v2875 = vshrl.u32 %v2874, 7
    %v2876 = vsub.s32 0, %v2875
    %v2877 = vrot.slane %v2809, %v2876
    %vm2880 = vcmask 1040384
    %v2881 = vsel %vm2880, %v2634, %v2813
    %v2882 = vsel %vm2880, %v2641, %v2817
    %vm2883 = vcmask 1041408
    %v2884 = vsel %vm2883, %v2881, %v2823
    %v2885 = vsel %vm2883, %v2882, %v2827
    %vm2886 = vcmask 1042432
    %v2887 = vsel %vm2886, %v2884, %v2833
    %v2888 = vsel %vm2886, %v2885, %v2837
    %v2889 = vsel %vm693, %v2887, %v2843
    %v2890 = vsel %vm693, %v2888, %v2847
    %vm2891 = vcmask 1044480
    %v2892 = vsel %vm2891, %v2889, %v2853
    %v2893 = vsel %vm2891, %v2890, %v2857
    %vm2894 = vcmask 1045504
    %v2895 = vsel %vm2894, %v2892, %v2863
    %v2896 = vsel %vm2894, %v2893, %v2867
    %vm2897 = vcmask 1046528
    %v2898 = vsel %vm2897, %v2895, %v2873
    %v2899 = vsel %vm2897, %v2896, %v2877
    %v2900 = vld [vmem:[%s15] sm:$0xff]
    %v2901 = vld [vmem:[%s15 + $0x8] sm:$0xff]
    %v2902 = vld [vmem:[%s15 + $0x10] sm:$0xff]
    %v2903 = vld [vmem:[%s15 + $0x18] sm:$0xff]
    %v2904 = vld [vmem:[#allocation2] sm:$0x1]
    %v2906 = vlaneseq
    %v2907 = vshrl.u32 %v2906, 7
    %v2908 = vsub.s32 0, %v2907
    %v2909 = vrot.slane %v2904, %v2908
    %2913 = vrot.lane.b32.xlu0 %v2898, 96
    %v2914 = vpop.permute.xlu0 %2913
    %2915 = vrot.lane.b32.xlu0 %v2899, 96
    %v2916 = vpop.permute.xlu0 %2915
    %v2917 = vsel %vm398, %v2914, 0
    %v2919 = vsel %vm398, %v2916, 0
    %2921 = vmatprep.subr.mxu0 0.0
    %2922 = vmatpush1.msra.mxu0 %v2900
    %2923 = vmatprep.subr.mxu0 0.0
    %2924 = vmatpush1.msra.mxu0 %v2901
    %2925 = vmatprep.subr.mxu0 0.0
    %2926 = vmatpush1.msra.mxu0 %v2902
    %2927 = vmatprep.subr.mxu0 0.0
    %2928 = vmatpush1.msra.mxu0 %v2903
    %2929 = vmatprep.subr.mxu0 0.0
    %2930 = vmatpush1.msra.mxu0 0.0
    %2931 = vmatprep.subr.mxu0 0.0
    %2932 = vmatpush1.msra.mxu0 0.0
    %2933 = vmatprep.subr.mxu0 0.0
    %2934 = vmatpush1.msra.mxu0 0.0
    %2935 = vmatprep.subr.mxu0 0.0
    %2936 = vmatpush1.msra.mxu0 0.0
    %2937 = vmatprep.subr.mxu0 0.0
    %2938 = vmatpush1.msra.mxu0 0.0
    %2939 = vmatprep.subr.mxu0 0.0
    %2940 = vmatpush1.msra.mxu0 0.0
    %2941 = vmatprep.subr.mxu0 0.0
    %2942 = vmatpush1.msra.mxu0 0.0
    %2943 = vmatprep.subr.mxu0 0.0
    %2944 = vmatpush1.msra.mxu0 0.0
    %2945 = vmatprep.subr.mxu0 0.0
    %2946 = vmatpush1.msra.mxu0 0.0
    %2947 = vmatprep.subr.mxu0 0.0
    %2948 = vmatpush1.msra.mxu0 0.0
    %2949 = vmatprep.subr.mxu0 0.0
    %2950 = vmatpush1.msra.mxu0 0.0
    %2951 = vmatprep.subr.mxu0 0.0
    %2952 = vmatpush1.msra.mxu0 0.0
    %2953 = vmatprep.subr.mxu0 0.0
    %2954 = vmatpush1.msra.mxu0 0.0
    %2955 = vmatprep.subr.mxu0 0.0
    %2956 = vmatpush1.msra.mxu0 0.0
    %2957 = vmatprep.subr.mxu0 0.0
    %2958 = vmatpush1.msra.mxu0 0.0
    %2959 = vmatprep.subr.mxu0 0.0
    %2960 = vmatpush1.msra.mxu0 0.0
    %2961 = vmatprep.subr.mxu0 0.0
    %2962 = vmatpush1.msra.mxu0 0.0
    %2963 = vmatprep.subr.mxu0 0.0
    %2964 = vmatpush1.msra.mxu0 0.0
    %2965 = vmatprep.subr.mxu0 0.0
    %2966 = vmatpush1.msra.mxu0 0.0
    %2967 = vmatprep.subr.mxu0 0.0
    %2968 = vmatpush1.msra.mxu0 0.0
    %2969 = vmatprep.subr.mxu0 0.0
    %2970 = vmatpush1.msra.mxu0 0.0
    %2971 = vmatprep.subr.mxu0 0.0
    %2972 = vmatpush1.msra.mxu0 0.0
    %2973 = vmatprep.subr.mxu0 0.0
    %2974 = vmatpush1.msra.mxu0 0.0
    %2975 = vmatprep.subr.mxu0 0.0
    %2976 = vmatpush1.msra.mxu0 0.0
    %2977 = vmatprep.subr.mxu0 0.0
    %2978 = vmatpush1.msra.mxu0 0.0
    %2979 = vmatprep.subr.mxu0 0.0
    %2980 = vmatpush1.msra.mxu0 0.0
    %2981 = vmatprep.subr.mxu0 0.0
    %2982 = vmatpush1.msra.mxu0 0.0
    %2983 = vmatprep.subr.mxu0 0.0
    %2984 = vmatpush1.msra.mxu0 0.0
    %2985 = vmatprep.mubr.f32.mxu0 0.0
    %2986 = vmatmul.mubr.f32.gmra.mrb[0].mxu0 %v2917
    %v2987 = vpop.f32.mrb[0].mxu0
    %v2988 = vadd.f32 %v2909, %v2987
    %v2989 = vpop.f32.mrb[0].mxu0
    %2990 = vmatprep.mubr.f32.mxu0 0.0
    %2991 = vmatmul.mubr.f32.gmra.mrb[0].mxu0 %v2919
    %v2992 = vpop.f32.mrb[0].mxu0
    %v2993 = vadd.f32 %v2909, %v2992
    %v2994 = vpop.f32.mrb[0].mxu0
    %2995 = vdwg.mxu0
    %2998 = vset.pattern.permute.xlu0 0
    %2999 = vperm.xlu0 %2998, %v2988
    %v3000 = vpop.permute.xlu0 %2999
    %3001 = vset.pattern.permute.xlu0 0
    %3002 = vperm.xlu0 %3001, %v2993
    %v3003 = vpop.permute.xlu0 %3002
    %v3004 = vlaneseq
    %v3005 = vshrl.u32 %v3004, 7
    %v3006 = vsub.s32 %v101, %v3005
    %v3007 = vrot.slane %v3000, %v3006
    %v3008 = vlaneseq
    %v3009 = vshrl.u32 %v3008, 7
    %v3010 = vsub.s32 %v101, %v3009
    %v3011 = vrot.slane %v3003, %v3010
    %vm3012 = vcmask 1041409
    %v3013 = vsel %vm3012, %v3011, %v3007
    %vm3015 = vcmask 58368
    %3016 = vst.msk [vmem:[#allocation9] sm:$0x3] %vm3015, %v3013
    // Predicated region
    $region82: #{discriminator_forward.1} parent=1 // pred_check
      _
    $region83: #{discriminator_forward.1} parent=1 // pred_check_branch
      %3018 = sbr.rel (0) target = $region85
    $region84: #{discriminator_forward.1} parent=1 // pred_region
      %s3020 = ssub.s32 32, 32
      %3021 = vsyncadd [#allocation5], %s3020
      %s3023 = sshll.u32 [#allocation9], 4
      %s3024 = int_to_ptr.vmem [resolvable:$true] %s3023
      %3026 = dma.vmem_to_hbm [thread:$0]  %s3024, 32, %s17, [#allocation5]
    $region85: #{discriminator_forward.1} parent=1 // pred_fallthru
      _
    // Predicated region
    $region86: #{discriminator_forward.1} parent=1 // pred_check
      _
    $region87: #{discriminator_forward.1} parent=1 // pred_check_branch
      %3028 = sbr.rel (0) target = $region89
    $region88: #{discriminator_forward.1} parent=1 // pred_region
      %s3030 = ssub.s32 32, 32
      %3031 = vsyncadd [#allocation11], %s3030
      %s3033 = sshll.u32 [#allocation10], 4
      %s3034 = int_to_ptr.vmem [resolvable:$true] %s3033
      %3036 = dma.vmem_to_hbm [thread:$0]  %s3034, 32, %s18, [#allocation11]
    $region89: #{discriminator_forward.1} parent=1 // pred_fallthru
      _
    // Predicated region
    $region90: #{discriminator_forward.1} parent=1 // pred_check
      _
    $region91: #{discriminator_forward.1} parent=1 // pred_check_branch
      %3038 = sbr.rel (0) target = $region93
    $region92: #{discriminator_forward.1} parent=1 // pred_region
      %3039 = dma.done [#allocation5], 32
    $region93: #{discriminator_forward.1} parent=1 // pred_fallthru
      _
    // Predicated region
    $region94: #{discriminator_forward.1} parent=1 // pred_check
      _
    $region95: #{discriminator_forward.1} parent=1 // pred_check_branch
      %3041 = sbr.rel (0) target = $region97
    $region96: #{discriminator_forward.1} parent=1 // pred_region
      %3042 = dma.done [#allocation11], 32
    $region97: #{discriminator_forward.1} parent=1 // pred_fallthru
      _
    %3043 = vsyncpa [#allocation4], 1
    %3044 = vsyncpa [#allocation7], 1
    %3045 = vsyncpa [#allocation5], 1
    %3046 = vsyncpa [#allocation11], 1

</llo_original>
